<compile_context>
chip_gen: v5e
topology: v5e:2x2
jax: 0.10.0
libtpu: 0.0.40
codegen_flags: <defaults>
</compile_context>

<pallas_src>
import functools

import jax
import jax.numpy as jnp
from jax.experimental import pallas as pl
from jax.experimental.pallas import tpu as pltpu

KSIZE = 4
BN_EPS = 1e-5
CPAD = 32          # channel padding -> every matmul output is >= 128 lanes


def _round_up(v, m):
    return ((v + m - 1) // m) * m


# ----------------------------------------------------------------------------
# Kernel 1: latent 1x1 -> 4x4 layer (plain matmul) + BN-stats epilogue
# ----------------------------------------------------------------------------
def _latent_kernel(x_ref, w_ref, o_ref, ssum_ref, ssq_ref):
    y = jnp.dot(x_ref[...].astype(jnp.bfloat16), w_ref[...],
                preferred_element_type=jnp.float32)        # (N, 16*C0p)
    ssum_ref[...] = jnp.sum(y, axis=0, keepdims=True)
    ssq_ref[...] = jnp.sum(y * y, axis=0, keepdims=True)
    o_ref[...] = y.astype(o_ref.dtype)


def _latent_call(x, w):
    # TODO(synk): on v7x this tiny layer could be fused into the first
    # stride-2 call so both TensorCores see work even for this step.
    n, cin_p = x.shape
    nout = w.shape[1]
    return pl.pallas_call(
        _latent_kernel,
        grid=(1,),
        in_specs=[pl.BlockSpec((n, cin_p), lambda i: (0, 0)),
                  pl.BlockSpec((cin_p, nout), lambda i: (0, 0))],
        out_specs=[pl.BlockSpec((n, nout), lambda i: (0, 0)),
                   pl.BlockSpec((1, nout), lambda i: (0, 0)),
                   pl.BlockSpec((1, nout), lambda i: (0, 0))],
        out_shape=[jax.ShapeDtypeStruct((n, nout), jnp.bfloat16),
                   jax.ShapeDtypeStruct((1, nout), jnp.float32),
                   jax.ShapeDtypeStruct((1, nout), jnp.float32)],
    )(x, w)


# ----------------------------------------------------------------------------
# Kernel 2: stride-2 transposed conv (sub-pixel form), fused BN+ReLU prologue,
#           in-VMEM 9-tap patch assembly, depth-to-space via output layout.
# ----------------------------------------------------------------------------
def _s2_kernel(H, W, cin_p, cout_p, k_pad, final,
               x_ref, w_ref, s_ref, t_ref, o_ref, *stat_refs):
    hw = H * W
    # --- BN + ReLU of the previous layer, once per input element (f32) ------
    x = x_ref[0].astype(jnp.float32)                       # (HW, Cin_p)
    a = jnp.maximum(x * s_ref[...] + t_ref[...], 0.0)
    a = a.astype(jnp.bfloat16)

    # --- 9-tap sub-pixel patch, assembled in VMEM ----------------------------
    # tap (dr, dc) of output position p=(m,l) is a[p + (dr-1)*W + (dc-1)];
    # rows shifted past the image are zero (from the zero pads of a_ext) and
    # rows whose column index wraps across an image row are zeroed via masks.
    zrow = jnp.zeros((W + 1, cin_p), jnp.bfloat16)
    a_ext = jnp.concatenate([zrow, a, zrow], axis=0)       # (HW + 2W + 2, Cin_p)
    col = jax.lax.broadcasted_iota(jnp.int32, (hw, cin_p), 0) % W
    keep_l = col != 0
    keep_r = col != (W - 1)
    taps = []
    for dr in range(3):
        for dc in range(3):
            s = (dr - 1) * W + (dc - 1)
            tap = a_ext[W + 1 + s: W + 1 + s + hw, :]
            if dc == 0:
                tap = jnp.where(keep_l, tap, jnp.zeros_like(tap))
            elif dc == 2:
                tap = jnp.where(keep_r, tap, jnp.zeros_like(tap))
            taps.append(tap)
    if k_pad > 9 * cin_p:                                  # MXU K-axis padding
        taps.append(jnp.zeros((hw, k_pad - 9 * cin_p), jnp.bfloat16))
    patch = jnp.concatenate(taps, axis=1)                  # (HW, K_pad) bf16

    # --- one MXU matmul: K = 9*Cin_p (padded), Nout = 4*Cout_p ---------------
    y = jnp.dot(patch, w_ref[...], preferred_element_type=jnp.float32)

    if final:
        # TODO(synk): on v6e/v7x tanh could run on the bf16 downcast (bf16
        # EUP); kept in f32 so the same kernel is also right for v5e.
        y = jnp.tanh(y)
    else:
        ssum_ref, ssq_ref = stat_refs
        ssum_ref[0] = jnp.sum(y, axis=0, keepdims=True)
        ssq_ref[0] = jnp.sum(y * y, axis=0, keepdims=True)

    # --- depth-to-space via the output layout (leading-dim split only) ------
    # output dims: (1, m, py, l, px*Cout_p + co); flattening dims 1..4 gives
    # row-major (2H, 2W, Cout_p) exactly, so the handoff reshape is free.
    c2 = 2 * cout_p
    o_ref[0, :, 0, :, :] = y[:, :c2].reshape(H, W, c2).astype(o_ref.dtype)
    o_ref[0, :, 1, :, :] = y[:, c2:].reshape(H, W, c2).astype(o_ref.dtype)


def _s2_layer_call(act, w, scale, shift, *, H, W, cin_p, cout_p, k_pad, final):
    n = act.shape[0]
    hw = H * W
    nout = 4 * cout_p
    kern = functools.partial(_s2_kernel, H, W, cin_p, cout_p, k_pad, final)
    out_dtype = jnp.float32 if final else jnp.bfloat16
    out_shape = [jax.ShapeDtypeStruct((n, H, 2, W, 2 * cout_p), out_dtype)]
    out_specs = [pl.BlockSpec((1, H, 2, W, 2 * cout_p),
                              lambda b: (b, 0, 0, 0, 0))]
    if not final:   # BN-stats epilogue is skipped entirely on the tanh layer
        out_shape += [jax.ShapeDtypeStruct((n, 1, nout), jnp.float32)] * 2
        out_specs += [pl.BlockSpec((1, 1, nout), lambda b: (b, 0, 0))] * 2
    res = pl.pallas_call(
        kern,
        grid=(n,),
        in_specs=[pl.BlockSpec((1, hw, cin_p), lambda b: (b, 0, 0)),
                  pl.BlockSpec((k_pad, nout), lambda b: (0, 0)),
                  pl.BlockSpec((1, cin_p), lambda b: (0, 0)),
                  pl.BlockSpec((1, cin_p), lambda b: (0, 0))],
        out_specs=out_specs,
        out_shape=out_shape,
        compiler_params=pltpu.CompilerParams(
            dimension_semantics=("parallel",)),
    )(act, w, scale, shift)
    if final:
        return res[0]
    return res


# ----------------------------------------------------------------------------
# Weight preparation (done once, outside the forward pass)
# ----------------------------------------------------------------------------
def _first_layer_weight(w_pt, cin_p, cout_p):
    """ConvTranspose2d(k=4, s=1, p=0) on a 1x1 input == matmul.

    Column index = (kh*4 + kw)*Cout_p + co -> output rows are already
    row-major 4x4 spatial for the consumer.
    """
    cin, cout = w_pt.shape[0], w_pt.shape[1]
    w = jnp.zeros((cin_p, KSIZE, KSIZE, cout_p), jnp.float32)
    w = w.at[:cin, :, :, :cout].set(jnp.transpose(w_pt, (0, 2, 3, 1)))
    return w.reshape(cin_p, KSIZE * KSIZE * cout_p).astype(jnp.bfloat16)


def _s2_layer_weight(w_pt, cin_p, cout_p, k_pad):
    """ConvTranspose2d(k=4, s=2, p=1) -> sub-pixel dense-conv weight matrix.

    out[n, 2m+py, 2l+px, co] = sum_{dr,dc,ci} x[n, m+dr-1, l+dc-1, ci]
                                              * W[ci, co, py+3-2dr, px+3-2dc]
    Rows: tap-major (dr*3+dc)*Cin_p + ci (zero-padded to k_pad).
    Cols: phase-major (py*2+px)*Cout_p + co.
    """
    cin, cout = w_pt.shape[0], w_pt.shape[1]
    w = jnp.zeros((9, cin_p, 4, cout_p), jnp.float32)
    for dr in range(3):
        for dc in range(3):
            for py in range(2):
                for px in range(2):
                    kh = py + 3 - 2 * dr
                    kw = px + 3 - 2 * dc
                    if 0 <= kh < KSIZE and 0 <= kw < KSIZE:
                        w = w.at[dr * 3 + dc, :cin, py * 2 + px, :cout].set(
                            w_pt[:, :, kh, kw])
    w = w.reshape(9 * cin_p, 4 * cout_p)
    if k_pad > 9 * cin_p:
        w = jnp.concatenate(
            [w, jnp.zeros((k_pad - 9 * cin_p, 4 * cout_p), jnp.float32)],
            axis=0)
    return w.astype(jnp.bfloat16)


# ----------------------------------------------------------------------------
# BatchNorm scale/shift from the in-kernel partial statistics (tiny JAX glue)
# ----------------------------------------------------------------------------
def _bn_scale_shift(ssum, ssq, groups, cp, count, gamma_mask):
    lead = tuple(range(ssum.ndim - 1))
    s = jnp.sum(ssum, axis=lead).reshape(groups, cp).sum(axis=0)
    q = jnp.sum(ssq, axis=lead).reshape(groups, cp).sum(axis=0)
    mean = s / count
    var = jnp.maximum(q / count - mean * mean, 0.0)   # biased var (PyTorch BN)
    scale = gamma_mask * jax.lax.rsqrt(var + BN_EPS)  # gamma=1, padded chans 0
    shift = -mean * scale                             # beta = 0
    return scale.reshape(1, cp), shift.reshape(1, cp)


# ----------------------------------------------------------------------------
# CelebaGenerator: parameter construction mirroring the PyTorch __init__
# ----------------------------------------------------------------------------
def build_celeba_generator_params(key, isize, output_nc, ngf, nz):
    cngf, tisize = ngf // 2, 4
    while tisize != isize:
        cngf *= 2
        tisize *= 2
    cfgs = [dict(cin=nz, cout=cngf, kind="first")]
    csize = 4
    while csize < isize // 2:
        cfgs.append(dict(cin=cngf, cout=cngf // 2, kind="s2"))
        cngf //= 2
        csize *= 2
    cfgs.append(dict(cin=cngf, cout=output_nc, kind="s2"))

    layers = []
    for idx, cfg in enumerate(cfgs):
        key, wk = jax.random.split(key)
        cin, cout = cfg["cin"], cfg["cout"]
        cin_p, cout_p = _round_up(cin, CPAD), _round_up(cout, CPAD)
        # ConvTranspose2d weight layout (Cin, Cout, KH, KW); bias=False (BN).
        w_pt = 0.05 * jax.random.normal(wk, (cin, cout, KSIZE, KSIZE),
                                        jnp.float32)
        last = idx == len(cfgs) - 1
        if cfg["kind"] == "first":
            w = _first_layer_weight(w_pt, cin_p, cout_p)
            k_pad = cin_p
        else:
            k_pad = _round_up(9 * cin_p, 128)
            w = _s2_layer_weight(w_pt, cin_p, cout_p, k_pad)
        gamma_mask = None
        if not last:
            gamma_mask = jnp.concatenate(
                [jnp.ones((cout,), jnp.float32),
                 jnp.zeros((cout_p - cout,), jnp.float32)])
        layers.append(dict(kind=cfg["kind"], w=w, w_pt=w_pt,
                           cin=cin, cout=cout, cin_p=cin_p, cout_p=cout_p,
                           k_pad=k_pad, gamma_mask=gamma_mask, last=last))
    return layers


# ----------------------------------------------------------------------------
# Forward pass (NCHW in / NCHW out, matching the PyTorch module)
# ----------------------------------------------------------------------------
def celeba_generator_forward(layers, z_nchw):
    """z_nchw: (N, nz, 1, 1) -> (N, output_nc, isize, isize)."""
    n = z_nchw.shape[0]

    # ---- first layer: 1x1 latent -> 4x4, pure matmul ------------------------
    l0 = layers[0]
    x = z_nchw.reshape(n, l0["cin"])
    x = jnp.pad(x, ((0, 0), (0, l0["cin_p"] - l0["cin"])))
    y0, ssum, ssq = _latent_call(x, l0["w"])
    cp = l0["cout_p"]
    scale, shift = _bn_scale_shift(ssum, ssq, 16, cp, n * 16, l0["gamma_mask"])
    act = y0.reshape(n, 16, cp)          # (N, H*W, Cp): row-major 4x4 spatial
    h = w_sp = 4

    # ---- stride-2 layers (BN+ReLU of previous layer fused as prologue) ------
    for layer in layers[1:]:
        res = _s2_layer_call(act, layer["w"], scale, shift,
                             H=h, W=w_sp, cin_p=cp, cout_p=layer["cout_p"],
                             k_pad=layer["k_pad"], final=layer["last"])
        cp = layer["cout_p"]
        h, w_sp = 2 * h, 2 * w_sp
        if layer["last"]:
            out5 = res
        else:
            out5, ssum, ssq = res
            scale, shift = _bn_scale_shift(ssum, ssq, 4, cp, n * h * w_sp,
                                           layer["gamma_mask"])
        # (N, H, 2, W, 2*Cp) flattens to row-major (N, 2H*2W, Cp) for free.
        act = out5.reshape(n, h * w_sp, cp)

    img = act.reshape(n, h, w_sp, cp)[..., :layers[-1]["cout"]]
    return jnp.transpose(img, (0, 3, 1, 2))       # NHWC -> NCHW


# ----------------------------------------------------------------------------
# Pure-JAX reference (zero-insert formulation) for a correctness self-check
# ----------------------------------------------------------------------------
def _ref_conv_transpose(x_nhwc, w_pt, stride, padding):
    n, h, w, cin = x_nhwc.shape
    cout = w_pt.shape[1]
    hd = (h - 1) * stride + 1
    wd = (w - 1) * stride + 1
    xd = jnp.zeros((n, hd, wd, cin), x_nhwc.dtype)
    xd = xd.at[:, ::stride, ::stride, :].set(x_nhwc)
    pad = KSIZE - 1 - padding
    xp = jnp.pad(xd, ((0, 0), (pad, pad), (pad, pad), (0, 0)))
    ho = hd + 2 * pad - KSIZE + 1
    wo = wd + 2 * pad - KSIZE + 1
    w_conv = jnp.transpose(w_pt[:, :, ::-1, ::-1], (2, 3, 0, 1))
    out = jnp.zeros((n, ho, wo, cout), jnp.float32)
    for kh in range(KSIZE):
        for kw in range(KSIZE):
            out = out + jnp.einsum('nhwc,cd->nhwd',
                                   xp[:, kh:kh + ho, kw:kw + wo, :],
                                   w_conv[kh, kw])
    return out


def reference_forward(layers, z_nchw):
    x = jnp.transpose(z_nchw, (0, 2, 3, 1))
    for layer in layers:
        stride = 1 if layer["kind"] == "first" else 2
        padding = 0 if layer["kind"] == "first" else 1
        x = _ref_conv_transpose(x, layer["w_pt"], stride, padding)
        if layer["last"]:
            x = jnp.tanh(x)
        else:
            mean = jnp.mean(x, axis=(0, 1, 2), keepdims=True)
            var = jnp.mean(jnp.square(x - mean), axis=(0, 1, 2), keepdims=True)
            x = jnp.maximum((x - mean) * jax.lax.rsqrt(var + BN_EPS), 0.0)
    return jnp.transpose(x, (0, 3, 1, 2))


# ----------------------------------------------------------------------------
if __name__ == "__main__":
    # Small configuration: isize=32, output_nc=3, ngf=16, nz=16, batch=4.
    # Architecture: 1x1 -> 4x4 (C=64) -> 8x8 (C=32) -> 16x16 (C=16)
    #                  -> 32x32 (C=3) + Tanh.
    isize, output_nc, ngf, nz = 32, 3, 16, 16
    batch = 4

    key = jax.random.PRNGKey(0)
    pkey, xkey = jax.random.split(key)
    layers = build_celeba_generator_params(pkey, isize, output_nc, ngf, nz)
    z = jax.random.normal(xkey, (batch, nz, 1, 1), jnp.float32)

    fwd = jax.jit(lambda latent: celeba_generator_forward(layers, latent))
    out = jax.block_until_ready(fwd(z))

    ref_fwd = jax.jit(lambda latent: reference_forward(layers, latent))
    ref = jax.block_until_ready(ref_fwd(z))

    assert out.shape == (batch, output_nc, isize, isize), out.shape
    assert bool(jnp.all(jnp.isfinite(out)))
    assert bool(jnp.all(jnp.abs(out) <= 1.0 + 1e-6))       # tanh range
    max_diff = float(jnp.max(jnp.abs(out - ref)))           # bf16 tolerance
    assert max_diff < 0.2, max_diff
    print("KERNEL_OK")
</pallas_src>

<mosaic_0001>
module attributes {stable_mosaic.version = 11 : i64} {
  func.func @_s2_kernel(%arg0: i32, %arg1: memref<1x16x64xbf16, #tpu.memory_space<vmem>>, %arg2: memref<640x128xbf16, #tpu.memory_space<vmem>>, %arg3: memref<1x64xf32, #tpu.memory_space<vmem>>, %arg4: memref<1x64xf32, #tpu.memory_space<vmem>>, %arg5: memref<1x4x2x4x64xbf16, #tpu.memory_space<vmem>>, %arg6: memref<1x1x128xf32, #tpu.memory_space<vmem>>, %arg7: memref<1x1x128xf32, #tpu.memory_space<vmem>>) attributes {dimension_semantics = [#tpu.dimension_semantics<parallel>], iteration_bounds = array<i64: 4>, scalar_prefetch = 0 : i64, scratch_operands = 0 : i64, tpu.core_type = #tpu.core_type<tc>, window_params = [{transform_indices = @transform_0, window_bounds = array<i64: 1, 16, 64>}, {pipeline_mode = #tpu.pipeline_mode<synchronous>, transform_indices = @transform_1, window_bounds = array<i64: 640, 128>}, {pipeline_mode = #tpu.pipeline_mode<synchronous>, transform_indices = @transform_2, window_bounds = array<i64: 1, 64>}, {pipeline_mode = #tpu.pipeline_mode<synchronous>, transform_indices = @transform_3, window_bounds = array<i64: 1, 64>}, {transform_indices = @transform_4, window_bounds = array<i64: 1, 4, 2, 4, 64>}, {transform_indices = @transform_5, window_bounds = array<i64: 1, 1, 128>}, {transform_indices = @transform_6, window_bounds = array<i64: 1, 1, 128>}]} {
    %c0 = arith.constant 0 : index
    %c0_0 = arith.constant 0 : index
    %c0_1 = arith.constant 0 : index
    %0 = vector.load %arg1[%c0, %c0_0, %c0_1] : memref<1x16x64xbf16, #tpu.memory_space<vmem>>, vector<1x16x64xbf16>
    %1 = vector.shape_cast %0 : vector<1x16x64xbf16> to vector<16x64xbf16>
    %2 = arith.extf %1 : vector<16x64xbf16> to vector<16x64xf32>
    %c0_2 = arith.constant 0 : index
    %c0_3 = arith.constant 0 : index
    %3 = vector.load %arg3[%c0_2, %c0_3] : memref<1x64xf32, #tpu.memory_space<vmem>>, vector<1x64xf32>
    %4 = vector.broadcast %3 : vector<1x64xf32> to vector<16x64xf32>
    %5 = arith.mulf %2, %4 : vector<16x64xf32>
    %c0_4 = arith.constant 0 : index
    %c0_5 = arith.constant 0 : index
    %6 = vector.load %arg4[%c0_4, %c0_5] : memref<1x64xf32, #tpu.memory_space<vmem>>, vector<1x64xf32>
    %7 = vector.broadcast %6 : vector<1x64xf32> to vector<16x64xf32>
    %8 = arith.addf %5, %7 : vector<16x64xf32>
    %cst = arith.constant 0.000000e+00 : f32
    %9 = vector.broadcast %cst : f32 to vector<16x64xf32>
    %10 = arith.maximumf %8, %9 : vector<16x64xf32>
    %11 = arith.truncf %10 : vector<16x64xf32> to vector<16x64xbf16>
    %cst_6 = arith.constant 0.000000e+00 : bf16
    %12 = vector.broadcast %cst_6 : bf16 to vector<5x64xbf16>
    %13 = tpu.concatenate %12, %11, %12 in 0 : vector<5x64xbf16>, vector<16x64xbf16>, vector<5x64xbf16> -> vector<26x64xbf16>
    %14 = tpu.iota {dimensions = array<i32: 0>} : vector<16x64xi32>
    %c4_i32 = arith.constant 4 : i32
    %c0_i32 = arith.constant 0 : i32
    %15 = arith.cmpi eq, %c4_i32, %c0_i32 : i32
    %c1_i32 = arith.constant 1 : i32
    %16 = arith.select %15, %c1_i32, %c4_i32 : i32
    %17 = vector.broadcast %16 : i32 to vector<16x64xi32>
    %18 = arith.remsi %14, %17 : vector<16x64xi32>
    %c0_i32_7 = arith.constant 0 : i32
    %19 = vector.broadcast %c0_i32_7 : i32 to vector<16x64xi32>
    %20 = arith.cmpi ne, %18, %19 : vector<16x64xi32>
    %c0_i32_8 = arith.constant 0 : i32
    %21 = vector.broadcast %c0_i32_8 : i32 to vector<16x64xi32>
    %22 = arith.cmpi slt, %18, %21 : vector<16x64xi32>
    %c0_i32_9 = arith.constant 0 : i32
    %23 = arith.cmpi slt, %16, %c0_i32_9 : i32
    %24 = vector.broadcast %23 : i1 to vector<16x64xi1>
    %25 = vector.broadcast %24 : vector<16x64xi1> to vector<16x64xi1>
    %26 = arith.xori %22, %25 : vector<16x64xi1>
    %27 = arith.andi %26, %20 : vector<16x64xi1>
    %28 = vector.broadcast %16 : i32 to vector<16x64xi32>
    %29 = arith.addi %18, %28 : vector<16x64xi32>
    %30 = arith.select %27, %29, %18 : vector<16x64xi1>, vector<16x64xi32>
    %c0_i32_10 = arith.constant 0 : i32
    %31 = vector.broadcast %c0_i32_10 : i32 to vector<16x64xi32>
    %32 = arith.cmpi ne, %30, %31 : vector<16x64xi32>
    %c3_i32 = arith.constant 3 : i32
    %33 = vector.broadcast %c3_i32 : i32 to vector<16x64xi32>
    %34 = arith.cmpi ne, %30, %33 : vector<16x64xi32>
    %35 = vector.extract_strided_slice %13 {offsets = [0, 0], sizes = [16, 64], strides = [1, 1]} : vector<26x64xbf16> to vector<16x64xbf16>
    %cst_11 = arith.constant 0.000000e+00 : bf16
    %36 = vector.broadcast %cst_11 : bf16 to vector<16x64xbf16>
    %37 = arith.select %32, %35, %36 : vector<16x64xi1>, vector<16x64xbf16>
    %38 = vector.extract_strided_slice %13 {offsets = [1, 0], sizes = [16, 64], strides = [1, 1]} : vector<26x64xbf16> to vector<16x64xbf16>
    %39 = vector.extract_strided_slice %13 {offsets = [2, 0], sizes = [16, 64], strides = [1, 1]} : vector<26x64xbf16> to vector<16x64xbf16>
    %cst_12 = arith.constant 0.000000e+00 : bf16
    %40 = vector.broadcast %cst_12 : bf16 to vector<16x64xbf16>
    %41 = arith.select %34, %39, %40 : vector<16x64xi1>, vector<16x64xbf16>
    %42 = vector.extract_strided_slice %13 {offsets = [4, 0], sizes = [16, 64], strides = [1, 1]} : vector<26x64xbf16> to vector<16x64xbf16>
    %cst_13 = arith.constant 0.000000e+00 : bf16
    %43 = vector.broadcast %cst_13 : bf16 to vector<16x64xbf16>
    %44 = arith.select %32, %42, %43 : vector<16x64xi1>, vector<16x64xbf16>
    %45 = vector.extract_strided_slice %13 {offsets = [5, 0], sizes = [16, 64], strides = [1, 1]} : vector<26x64xbf16> to vector<16x64xbf16>
    %46 = vector.extract_strided_slice %13 {offsets = [6, 0], sizes = [16, 64], strides = [1, 1]} : vector<26x64xbf16> to vector<16x64xbf16>
    %cst_14 = arith.constant 0.000000e+00 : bf16
    %47 = vector.broadcast %cst_14 : bf16 to vector<16x64xbf16>
    %48 = arith.select %34, %46, %47 : vector<16x64xi1>, vector<16x64xbf16>
    %49 = vector.extract_strided_slice %13 {offsets = [8, 0], sizes = [16, 64], strides = [1, 1]} : vector<26x64xbf16> to vector<16x64xbf16>
    %cst_15 = arith.constant 0.000000e+00 : bf16
    %50 = vector.broadcast %cst_15 : bf16 to vector<16x64xbf16>
    %51 = arith.select %32, %49, %50 : vector<16x64xi1>, vector<16x64xbf16>
    %52 = vector.extract_strided_slice %13 {offsets = [9, 0], sizes = [16, 64], strides = [1, 1]} : vector<26x64xbf16> to vector<16x64xbf16>
    %53 = vector.extract_strided_slice %13 {offsets = [10, 0], sizes = [16, 64], strides = [1, 1]} : vector<26x64xbf16> to vector<16x64xbf16>
    %cst_16 = arith.constant 0.000000e+00 : bf16
    %54 = vector.broadcast %cst_16 : bf16 to vector<16x64xbf16>
    %55 = arith.select %34, %53, %54 : vector<16x64xi1>, vector<16x64xbf16>
    %cst_17 = arith.constant 0.000000e+00 : bf16
    %56 = vector.broadcast %cst_17 : bf16 to vector<16x64xbf16>
    %57 = tpu.concatenate %37, %38, %41, %44, %45, %48, %51, %52, %55, %56 in 1 : vector<16x64xbf16>, vector<16x64xbf16>, vector<16x64xbf16>, vector<16x64xbf16>, vector<16x64xbf16>, vector<16x64xbf16>, vector<16x64xbf16>, vector<16x64xbf16>, vector<16x64xbf16>, vector<16x64xbf16> -> vector<16x640xbf16>
    %c0_18 = arith.constant 0 : index
    %c0_19 = arith.constant 0 : index
    %58 = vector.load %arg2[%c0_18, %c0_19] : memref<640x128xbf16, #tpu.memory_space<vmem>>, vector<640x128xbf16>
    %cst_20 = arith.constant dense<0.000000e+00> : vector<16x128xf32>
    %59 = tpu.matmul %57, %58, %cst_20 {dimension_numbers = #tpu.dot_dimension_numbers<[1], [0], [0], [1], [0, 0, 1, 1], [], []>} : vector<16x640xbf16>, vector<640x128xbf16>, vector<16x128xf32> -> vector<16x128xf32>
    %cst_21 = arith.constant dense<0.000000e+00> : vector<128xf32>
    %60 = vector.multi_reduction <add>, %59, %cst_21 [0] : vector<16x128xf32> to vector<128xf32>
    %61 = vector.shape_cast %60 : vector<128xf32> to vector<1x128xf32>
    %c0_22 = arith.constant 0 : index
    %c0_23 = arith.constant 0 : index
    %c0_24 = arith.constant 0 : index
    %62 = vector.load %arg6[%c0_22, %c0_23, %c0_24] : memref<1x1x128xf32, #tpu.memory_space<vmem>>, vector<1x1x128xf32>
    %63 = vector.shape_cast %62 : vector<1x1x128xf32> to vector<1x128xf32>
    %64 = vector.shape_cast %61 : vector<1x128xf32> to vector<1x1x128xf32>
    tpu.vector_store %arg6[%c0_22, %c0_23, %c0_24], %64 {strides = array<i32>} : memref<1x1x128xf32, #tpu.memory_space<vmem>>, vector<1x1x128xf32>,
    %65 = arith.mulf %59, %59 : vector<16x128xf32>
    %cst_25 = arith.constant dense<0.000000e+00> : vector<128xf32>
    %66 = vector.multi_reduction <add>, %65, %cst_25 [0] : vector<16x128xf32> to vector<128xf32>
    %67 = vector.shape_cast %66 : vector<128xf32> to vector<1x128xf32>
    %c0_26 = arith.constant 0 : index
    %c0_27 = arith.constant 0 : index
    %c0_28 = arith.constant 0 : index
    %68 = vector.load %arg7[%c0_26, %c0_27, %c0_28] : memref<1x1x128xf32, #tpu.memory_space<vmem>>, vector<1x1x128xf32>
    %69 = vector.shape_cast %68 : vector<1x1x128xf32> to vector<1x128xf32>
    %70 = vector.shape_cast %67 : vector<1x128xf32> to vector<1x1x128xf32>
    tpu.vector_store %arg7[%c0_26, %c0_27, %c0_28], %70 {strides = array<i32>} : memref<1x1x128xf32, #tpu.memory_space<vmem>>, vector<1x1x128xf32>,
    %71 = vector.extract_strided_slice %59 {offsets = [0, 0], sizes = [16, 64], strides = [1, 1]} : vector<16x128xf32> to vector<16x64xf32>
    %72 = vector.shape_cast %71 : vector<16x64xf32> to vector<4x4x64xf32>
    %73 = arith.truncf %72 : vector<4x4x64xf32> to vector<4x4x64xbf16>
    %c0_29 = arith.constant 0 : index
    %c0_30 = arith.constant 0 : index
    %c0_31 = arith.constant 0 : index
    %c0_32 = arith.constant 0 : index
    %c0_33 = arith.constant 0 : index
    %74 = vector.load %arg5[%c0_29, %c0_30, %c0_31, %c0_32, %c0_33] : memref<1x4x2x4x64xbf16, #tpu.memory_space<vmem>>, vector<1x4x1x4x64xbf16>
    %75 = vector.shape_cast %74 : vector<1x4x1x4x64xbf16> to vector<4x4x64xbf16>
    %76 = vector.shape_cast %73 : vector<4x4x64xbf16> to vector<1x4x1x4x64xbf16>
    tpu.vector_store %arg5[%c0_29, %c0_30, %c0_31, %c0_32, %c0_33], %76 {strides = array<i32>} : memref<1x4x2x4x64xbf16, #tpu.memory_space<vmem>>, vector<1x4x1x4x64xbf16>,
    %77 = vector.extract_strided_slice %59 {offsets = [0, 64], sizes = [16, 64], strides = [1, 1]} : vector<16x128xf32> to vector<16x64xf32>
    %78 = vector.shape_cast %77 : vector<16x64xf32> to vector<4x4x64xf32>
    %79 = arith.truncf %78 : vector<4x4x64xf32> to vector<4x4x64xbf16>
    %c0_34 = arith.constant 0 : index
    %c0_35 = arith.constant 0 : index
    %c1 = arith.constant 1 : index
    %c0_36 = arith.constant 0 : index
    %c0_37 = arith.constant 0 : index
    %80 = vector.load %arg5[%c0_34, %c0_35, %c1, %c0_36, %c0_37] : memref<1x4x2x4x64xbf16, #tpu.memory_space<vmem>>, vector<1x4x1x4x64xbf16>
    %81 = vector.shape_cast %80 : vector<1x4x1x4x64xbf16> to vector<4x4x64xbf16>
    %82 = vector.shape_cast %79 : vector<4x4x64xbf16> to vector<1x4x1x4x64xbf16>
    tpu.vector_store %arg5[%c0_34, %c0_35, %c1, %c0_36, %c0_37], %82 {strides = array<i32>} : memref<1x4x2x4x64xbf16, #tpu.memory_space<vmem>>, vector<1x4x1x4x64xbf16>,
    return
  }
  func.func @transform_0(%arg0: i32) -> (i32, i32, i32) {
    %c0_i32 = arith.constant 0 : i32
    %c0_i32_0 = arith.constant 0 : i32
    %c0_i32_1 = arith.constant 0 : i32
    return %arg0, %c0_i32, %c0_i32_0 : i32, i32, i32
  }
  func.func @transform_1(%arg0: i32) -> (i32, i32) {
    %c0_i32 = arith.constant 0 : i32
    %c0_i32_0 = arith.constant 0 : i32
    %c0_i32_1 = arith.constant 0 : i32
    return %c0_i32, %c0_i32_0 : i32, i32
  }
  func.func @transform_2(%arg0: i32) -> (i32, i32) {
    %c0_i32 = arith.constant 0 : i32
    %c0_i32_0 = arith.constant 0 : i32
    %c0_i32_1 = arith.constant 0 : i32
    return %c0_i32, %c0_i32_0 : i32, i32
  }
  func.func @transform_3(%arg0: i32) -> (i32, i32) {
    %c0_i32 = arith.constant 0 : i32
    %c0_i32_0 = arith.constant 0 : i32
    %c0_i32_1 = arith.constant 0 : i32
    return %c0_i32, %c0_i32_0 : i32, i32
  }
  func.func @transform_4(%arg0: i32) -> (i32, i32, i32, i32, i32) {
    %c0_i32 = arith.constant 0 : i32
    %c0_i32_0 = arith.constant 0 : i32
    %c0_i32_1 = arith.constant 0 : i32
    %c0_i32_2 = arith.constant 0 : i32
    %c0_i32_3 = arith.constant 0 : i32
    return %arg0, %c0_i32, %c0_i32_0, %c0_i32_1, %c0_i32_2 : i32, i32, i32, i32, i32
  }
  func.func @transform_5(%arg0: i32) -> (i32, i32, i32) {
    %c0_i32 = arith.constant 0 : i32
    %c0_i32_0 = arith.constant 0 : i32
    %c0_i32_1 = arith.constant 0 : i32
    return %arg0, %c0_i32, %c0_i32_0 : i32, i32, i32
  }
  func.func @transform_6(%arg0: i32) -> (i32, i32, i32) {
    %c0_i32 = arith.constant 0 : i32
    %c0_i32_0 = arith.constant 0 : i32
    %c0_i32_1 = arith.constant 0 : i32
    return %arg0, %c0_i32, %c0_i32_0 : i32, i32, i32
  }
}

module attributes {stable_mosaic.version = 11 : i64} {
  func.func @_latent_kernel(%arg0: i32, %arg1: memref<4x32xf32, #tpu.memory_space<vmem>>, %arg2: memref<32x1024xbf16, #tpu.memory_space<vmem>>, %arg3: memref<4x1024xbf16, #tpu.memory_space<vmem>>, %arg4: memref<1x1024xf32, #tpu.memory_space<vmem>>, %arg5: memref<1x1024xf32, #tpu.memory_space<vmem>>) attributes {dimension_semantics = [#tpu.dimension_semantics<arbitrary>], iteration_bounds = array<i64: 1>, scalar_prefetch = 0 : i64, scratch_operands = 0 : i64, tpu.core_type = #tpu.core_type<tc>, window_params = [{pipeline_mode = #tpu.pipeline_mode<synchronous>, transform_indices = @transform_0, window_bounds = array<i64: 4, 32>}, {pipeline_mode = #tpu.pipeline_mode<synchronous>, transform_indices = @transform_1, window_bounds = array<i64: 32, 1024>}, {pipeline_mode = #tpu.pipeline_mode<synchronous>, transform_indices = @transform_2, window_bounds = array<i64: 4, 1024>}, {pipeline_mode = #tpu.pipeline_mode<synchronous>, transform_indices = @transform_3, window_bounds = array<i64: 1, 1024>}, {pipeline_mode = #tpu.pipeline_mode<synchronous>, transform_indices = @transform_4, window_bounds = array<i64: 1, 1024>}]} {
    %c0 = arith.constant 0 : index
    %c0_0 = arith.constant 0 : index
    %0 = vector.load %arg1[%c0, %c0_0] : memref<4x32xf32, #tpu.memory_space<vmem>>, vector<4x32xf32>
    %1 = arith.truncf %0 : vector<4x32xf32> to vector<4x32xbf16>
    %c0_1 = arith.constant 0 : index
    %c0_2 = arith.constant 0 : index
    %2 = vector.load %arg2[%c0_1, %c0_2] : memref<32x1024xbf16, #tpu.memory_space<vmem>>, vector<32x1024xbf16>
    %cst = arith.constant dense<0.000000e+00> : vector<4x1024xf32>
    %3 = tpu.matmul %1, %2, %cst {dimension_numbers = #tpu.dot_dimension_numbers<[1], [0], [0], [1], [0, 0, 1, 1], [], []>} : vector<4x32xbf16>, vector<32x1024xbf16>, vector<4x1024xf32> -> vector<4x1024xf32>
    %cst_3 = arith.constant dense<0.000000e+00> : vector<1024xf32>
    %4 = vector.multi_reduction <add>, %3, %cst_3 [0] : vector<4x1024xf32> to vector<1024xf32>
    %5 = vector.shape_cast %4 : vector<1024xf32> to vector<1x1024xf32>
    %c0_4 = arith.constant 0 : index
    %c0_5 = arith.constant 0 : index
    %6 = vector.load %arg4[%c0_4, %c0_5] : memref<1x1024xf32, #tpu.memory_space<vmem>>, vector<1x1024xf32>
    tpu.vector_store %arg4[%c0_4, %c0_5], %5 {strides = array<i32>} : memref<1x1024xf32, #tpu.memory_space<vmem>>, vector<1x1024xf32>,
    %7 = arith.mulf %3, %3 : vector<4x1024xf32>
    %cst_6 = arith.constant dense<0.000000e+00> : vector<1024xf32>
    %8 = vector.multi_reduction <add>, %7, %cst_6 [0] : vector<4x1024xf32> to vector<1024xf32>
    %9 = vector.shape_cast %8 : vector<1024xf32> to vector<1x1024xf32>
    %c0_7 = arith.constant 0 : index
    %c0_8 = arith.constant 0 : index
    %10 = vector.load %arg5[%c0_7, %c0_8] : memref<1x1024xf32, #tpu.memory_space<vmem>>, vector<1x1024xf32>
    tpu.vector_store %arg5[%c0_7, %c0_8], %9 {strides = array<i32>} : memref<1x1024xf32, #tpu.memory_space<vmem>>, vector<1x1024xf32>,
    %11 = arith.truncf %3 : vector<4x1024xf32> to vector<4x1024xbf16>
    %c0_9 = arith.constant 0 : index
    %c0_10 = arith.constant 0 : index
    %12 = vector.load %arg3[%c0_9, %c0_10] : memref<4x1024xbf16, #tpu.memory_space<vmem>>, vector<4x1024xbf16>
    tpu.vector_store %arg3[%c0_9, %c0_10], %11 {strides = array<i32>} : memref<4x1024xbf16, #tpu.memory_space<vmem>>, vector<4x1024xbf16>,
    return
  }
  func.func @transform_0(%arg0: i32) -> (i32, i32) {
    %c0_i32 = arith.constant 0 : i32
    %c0_i32_0 = arith.constant 0 : i32
    %c0_i32_1 = arith.constant 0 : i32
    return %c0_i32, %c0_i32_0 : i32, i32
  }
  func.func @transform_1(%arg0: i32) -> (i32, i32) {
    %c0_i32 = arith.constant 0 : i32
    %c0_i32_0 = arith.constant 0 : i32
    %c0_i32_1 = arith.constant 0 : i32
    return %c0_i32, %c0_i32_0 : i32, i32
  }
  func.func @transform_2(%arg0: i32) -> (i32, i32) {
    %c0_i32 = arith.constant 0 : i32
    %c0_i32_0 = arith.constant 0 : i32
    %c0_i32_1 = arith.constant 0 : i32
    return %c0_i32, %c0_i32_0 : i32, i32
  }
  func.func @transform_3(%arg0: i32) -> (i32, i32) {
    %c0_i32 = arith.constant 0 : i32
    %c0_i32_0 = arith.constant 0 : i32
    %c0_i32_1 = arith.constant 0 : i32
    return %c0_i32, %c0_i32_0 : i32, i32
  }
  func.func @transform_4(%arg0: i32) -> (i32, i32) {
    %c0_i32 = arith.constant 0 : i32
    %c0_i32_0 = arith.constant 0 : i32
    %c0_i32_1 = arith.constant 0 : i32
    return %c0_i32, %c0_i32_0 : i32, i32
  }
}

module attributes {stable_mosaic.version = 11 : i64} {
  func.func @_s2_kernel(%arg0: i32, %arg1: memref<1x64x32xbf16, #tpu.memory_space<vmem>>, %arg2: memref<384x128xbf16, #tpu.memory_space<vmem>>, %arg3: memref<1x32xf32, #tpu.memory_space<vmem>>, %arg4: memref<1x32xf32, #tpu.memory_space<vmem>>, %arg5: memref<1x8x2x8x64xbf16, #tpu.memory_space<vmem>>, %arg6: memref<1x1x128xf32, #tpu.memory_space<vmem>>, %arg7: memref<1x1x128xf32, #tpu.memory_space<vmem>>) attributes {dimension_semantics = [#tpu.dimension_semantics<parallel>], iteration_bounds = array<i64: 4>, scalar_prefetch = 0 : i64, scratch_operands = 0 : i64, tpu.core_type = #tpu.core_type<tc>, window_params = [{transform_indices = @transform_0, window_bounds = array<i64: 1, 64, 32>}, {pipeline_mode = #tpu.pipeline_mode<synchronous>, transform_indices = @transform_1, window_bounds = array<i64: 384, 128>}, {pipeline_mode = #tpu.pipeline_mode<synchronous>, transform_indices = @transform_2, window_bounds = array<i64: 1, 32>}, {pipeline_mode = #tpu.pipeline_mode<synchronous>, transform_indices = @transform_3, window_bounds = array<i64: 1, 32>}, {transform_indices = @transform_4, window_bounds = array<i64: 1, 8, 2, 8, 64>}, {transform_indices = @transform_5, window_bounds = array<i64: 1, 1, 128>}, {transform_indices = @transform_6, window_bounds = array<i64: 1, 1, 128>}]} {
    %c0 = arith.constant 0 : index
    %c0_0 = arith.constant 0 : index
    %c0_1 = arith.constant 0 : index
    %0 = vector.load %arg1[%c0, %c0_0, %c0_1] : memref<1x64x32xbf16, #tpu.memory_space<vmem>>, vector<1x64x32xbf16>
    %1 = vector.shape_cast %0 : vector<1x64x32xbf16> to vector<64x32xbf16>
    %2 = arith.extf %1 : vector<64x32xbf16> to vector<64x32xf32>
    %c0_2 = arith.constant 0 : index
    %c0_3 = arith.constant 0 : index
    %3 = vector.load %arg3[%c0_2, %c0_3] : memref<1x32xf32, #tpu.memory_space<vmem>>, vector<1x32xf32>
    %4 = vector.broadcast %3 : vector<1x32xf32> to vector<64x32xf32>
    %5 = arith.mulf %2, %4 : vector<64x32xf32>
    %c0_4 = arith.constant 0 : index
    %c0_5 = arith.constant 0 : index
    %6 = vector.load %arg4[%c0_4, %c0_5] : memref<1x32xf32, #tpu.memory_space<vmem>>, vector<1x32xf32>
    %7 = vector.broadcast %6 : vector<1x32xf32> to vector<64x32xf32>
    %8 = arith.addf %5, %7 : vector<64x32xf32>
    %cst = arith.constant 0.000000e+00 : f32
    %9 = vector.broadcast %cst : f32 to vector<64x32xf32>
    %10 = arith.maximumf %8, %9 : vector<64x32xf32>
    %11 = arith.truncf %10 : vector<64x32xf32> to vector<64x32xbf16>
    %cst_6 = arith.constant 0.000000e+00 : bf16
    %12 = vector.broadcast %cst_6 : bf16 to vector<9x32xbf16>
    %13 = tpu.concatenate %12, %11, %12 in 0 : vector<9x32xbf16>, vector<64x32xbf16>, vector<9x32xbf16> -> vector<82x32xbf16>
    %14 = tpu.iota {dimensions = array<i32: 0>} : vector<64x32xi32>
    %c8_i32 = arith.constant 8 : i32
    %c0_i32 = arith.constant 0 : i32
    %15 = arith.cmpi eq, %c8_i32, %c0_i32 : i32
    %c1_i32 = arith.constant 1 : i32
    %16 = arith.select %15, %c1_i32, %c8_i32 : i32
    %17 = vector.broadcast %16 : i32 to vector<64x32xi32>
    %18 = arith.remsi %14, %17 : vector<64x32xi32>
    %c0_i32_7 = arith.constant 0 : i32
    %19 = vector.broadcast %c0_i32_7 : i32 to vector<64x32xi32>
    %20 = arith.cmpi ne, %18, %19 : vector<64x32xi32>
    %c0_i32_8 = arith.constant 0 : i32
    %21 = vector.broadcast %c0_i32_8 : i32 to vector<64x32xi32>
    %22 = arith.cmpi slt, %18, %21 : vector<64x32xi32>
    %c0_i32_9 = arith.constant 0 : i32
    %23 = arith.cmpi slt, %16, %c0_i32_9 : i32
    %24 = vector.broadcast %23 : i1 to vector<64x32xi1>
    %25 = vector.broadcast %24 : vector<64x32xi1> to vector<64x32xi1>
    %26 = arith.xori %22, %25 : vector<64x32xi1>
    %27 = arith.andi %26, %20 : vector<64x32xi1>
    %28 = vector.broadcast %16 : i32 to vector<64x32xi32>
    %29 = arith.addi %18, %28 : vector<64x32xi32>
    %30 = arith.select %27, %29, %18 : vector<64x32xi1>, vector<64x32xi32>
    %c0_i32_10 = arith.constant 0 : i32
    %31 = vector.broadcast %c0_i32_10 : i32 to vector<64x32xi32>
    %32 = arith.cmpi ne, %30, %31 : vector<64x32xi32>
    %c7_i32 = arith.constant 7 : i32
    %33 = vector.broadcast %c7_i32 : i32 to vector<64x32xi32>
    %34 = arith.cmpi ne, %30, %33 : vector<64x32xi32>
    %35 = vector.extract_strided_slice %13 {offsets = [0, 0], sizes = [64, 32], strides = [1, 1]} : vector<82x32xbf16> to vector<64x32xbf16>
    %cst_11 = arith.constant 0.000000e+00 : bf16
    %36 = vector.broadcast %cst_11 : bf16 to vector<64x32xbf16>
    %37 = arith.select %32, %35, %36 : vector<64x32xi1>, vector<64x32xbf16>
    %38 = vector.extract_strided_slice %13 {offsets = [1, 0], sizes = [64, 32], strides = [1, 1]} : vector<82x32xbf16> to vector<64x32xbf16>
    %39 = vector.extract_strided_slice %13 {offsets = [2, 0], sizes = [64, 32], strides = [1, 1]} : vector<82x32xbf16> to vector<64x32xbf16>
    %cst_12 = arith.constant 0.000000e+00 : bf16
    %40 = vector.broadcast %cst_12 : bf16 to vector<64x32xbf16>
    %41 = arith.select %34, %39, %40 : vector<64x32xi1>, vector<64x32xbf16>
    %42 = vector.extract_strided_slice %13 {offsets = [8, 0], sizes = [64, 32], strides = [1, 1]} : vector<82x32xbf16> to vector<64x32xbf16>
    %cst_13 = arith.constant 0.000000e+00 : bf16
    %43 = vector.broadcast %cst_13 : bf16 to vector<64x32xbf16>
    %44 = arith.select %32, %42, %43 : vector<64x32xi1>, vector<64x32xbf16>
    %45 = vector.extract_strided_slice %13 {offsets = [9, 0], sizes = [64, 32], strides = [1, 1]} : vector<82x32xbf16> to vector<64x32xbf16>
    %46 = vector.extract_strided_slice %13 {offsets = [10, 0], sizes = [64, 32], strides = [1, 1]} : vector<82x32xbf16> to vector<64x32xbf16>
    %cst_14 = arith.constant 0.000000e+00 : bf16
    %47 = vector.broadcast %cst_14 : bf16 to vector<64x32xbf16>
    %48 = arith.select %34, %46, %47 : vector<64x32xi1>, vector<64x32xbf16>
    %49 = vector.extract_strided_slice %13 {offsets = [16, 0], sizes = [64, 32], strides = [1, 1]} : vector<82x32xbf16> to vector<64x32xbf16>
    %cst_15 = arith.constant 0.000000e+00 : bf16
    %50 = vector.broadcast %cst_15 : bf16 to vector<64x32xbf16>
    %51 = arith.select %32, %49, %50 : vector<64x32xi1>, vector<64x32xbf16>
    %52 = vector.extract_strided_slice %13 {offsets = [17, 0], sizes = [64, 32], strides = [1, 1]} : vector<82x32xbf16> to vector<64x32xbf16>
    %53 = vector.extract_strided_slice %13 {offsets = [18, 0], sizes = [64, 32], strides = [1, 1]} : vector<82x32xbf16> to vector<64x32xbf16>
    %cst_16 = arith.constant 0.000000e+00 : bf16
    %54 = vector.broadcast %cst_16 : bf16 to vector<64x32xbf16>
    %55 = arith.select %34, %53, %54 : vector<64x32xi1>, vector<64x32xbf16>
    %cst_17 = arith.constant 0.000000e+00 : bf16
    %56 = vector.broadcast %cst_17 : bf16 to vector<64x96xbf16>
    %57 = tpu.concatenate %37, %38, %41, %44, %45, %48, %51, %52, %55, %56 in 1 : vector<64x32xbf16>, vector<64x32xbf16>, vector<64x32xbf16>, vector<64x32xbf16>, vector<64x32xbf16>, vector<64x32xbf16>, vector<64x32xbf16>, vector<64x32xbf16>, vector<64x32xbf16>, vector<64x96xbf16> -> vector<64x384xbf16>
    %c0_18 = arith.constant 0 : index
    %c0_19 = arith.constant 0 : index
    %58 = vector.load %arg2[%c0_18, %c0_19] : memref<384x128xbf16, #tpu.memory_space<vmem>>, vector<384x128xbf16>
    %cst_20 = arith.constant dense<0.000000e+00> : vector<64x128xf32>
    %59 = tpu.matmul %57, %58, %cst_20 {dimension_numbers = #tpu.dot_dimension_numbers<[1], [0], [0], [1], [0, 0, 1, 1], [], []>} : vector<64x384xbf16>, vector<384x128xbf16>, vector<64x128xf32> -> vector<64x128xf32>
    %cst_21 = arith.constant dense<0.000000e+00> : vector<128xf32>
    %60 = vector.multi_reduction <add>, %59, %cst_21 [0] : vector<64x128xf32> to vector<128xf32>
    %61 = vector.shape_cast %60 : vector<128xf32> to vector<1x128xf32>
    %c0_22 = arith.constant 0 : index
    %c0_23 = arith.constant 0 : index
    %c0_24 = arith.constant 0 : index
    %62 = vector.load %arg6[%c0_22, %c0_23, %c0_24] : memref<1x1x128xf32, #tpu.memory_space<vmem>>, vector<1x1x128xf32>
    %63 = vector.shape_cast %62 : vector<1x1x128xf32> to vector<1x128xf32>
    %64 = vector.shape_cast %61 : vector<1x128xf32> to vector<1x1x128xf32>
    tpu.vector_store %arg6[%c0_22, %c0_23, %c0_24], %64 {strides = array<i32>} : memref<1x1x128xf32, #tpu.memory_space<vmem>>, vector<1x1x128xf32>,
    %65 = arith.mulf %59, %59 : vector<64x128xf32>
    %cst_25 = arith.constant dense<0.000000e+00> : vector<128xf32>
    %66 = vector.multi_reduction <add>, %65, %cst_25 [0] : vector<64x128xf32> to vector<128xf32>
    %67 = vector.shape_cast %66 : vector<128xf32> to vector<1x128xf32>
    %c0_26 = arith.constant 0 : index
    %c0_27 = arith.constant 0 : index
    %c0_28 = arith.constant 0 : index
    %68 = vector.load %arg7[%c0_26, %c0_27, %c0_28] : memref<1x1x128xf32, #tpu.memory_space<vmem>>, vector<1x1x128xf32>
    %69 = vector.shape_cast %68 : vector<1x1x128xf32> to vector<1x128xf32>
    %70 = vector.shape_cast %67 : vector<1x128xf32> to vector<1x1x128xf32>
    tpu.vector_store %arg7[%c0_26, %c0_27, %c0_28], %70 {strides = array<i32>} : memref<1x1x128xf32, #tpu.memory_space<vmem>>, vector<1x1x128xf32>,
    %71 = vector.extract_strided_slice %59 {offsets = [0, 0], sizes = [64, 64], strides = [1, 1]} : vector<64x128xf32> to vector<64x64xf32>
    %72 = vector.shape_cast %71 : vector<64x64xf32> to vector<8x8x64xf32>
    %73 = arith.truncf %72 : vector<8x8x64xf32> to vector<8x8x64xbf16>
    %c0_29 = arith.constant 0 : index
    %c0_30 = arith.constant 0 : index
    %c0_31 = arith.constant 0 : index
    %c0_32 = arith.constant 0 : index
    %c0_33 = arith.constant 0 : index
    %74 = vector.load %arg5[%c0_29, %c0_30, %c0_31, %c0_32, %c0_33] : memref<1x8x2x8x64xbf16, #tpu.memory_space<vmem>>, vector<1x8x1x8x64xbf16>
    %75 = vector.shape_cast %74 : vector<1x8x1x8x64xbf16> to vector<8x8x64xbf16>
    %76 = vector.shape_cast %73 : vector<8x8x64xbf16> to vector<1x8x1x8x64xbf16>
    tpu.vector_store %arg5[%c0_29, %c0_30, %c0_31, %c0_32, %c0_33], %76 {strides = array<i32>} : memref<1x8x2x8x64xbf16, #tpu.memory_space<vmem>>, vector<1x8x1x8x64xbf16>,
    %77 = vector.extract_strided_slice %59 {offsets = [0, 64], sizes = [64, 64], strides = [1, 1]} : vector<64x128xf32> to vector<64x64xf32>
    %78 = vector.shape_cast %77 : vector<64x64xf32> to vector<8x8x64xf32>
    %79 = arith.truncf %78 : vector<8x8x64xf32> to vector<8x8x64xbf16>
    %c0_34 = arith.constant 0 : index
    %c0_35 = arith.constant 0 : index
    %c1 = arith.constant 1 : index
    %c0_36 = arith.constant 0 : index
    %c0_37 = arith.constant 0 : index
    %80 = vector.load %arg5[%c0_34, %c0_35, %c1, %c0_36, %c0_37] : memref<1x8x2x8x64xbf16, #tpu.memory_space<vmem>>, vector<1x8x1x8x64xbf16>
    %81 = vector.shape_cast %80 : vector<1x8x1x8x64xbf16> to vector<8x8x64xbf16>
    %82 = vector.shape_cast %79 : vector<8x8x64xbf16> to vector<1x8x1x8x64xbf16>
    tpu.vector_store %arg5[%c0_34, %c0_35, %c1, %c0_36, %c0_37], %82 {strides = array<i32>} : memref<1x8x2x8x64xbf16, #tpu.memory_space<vmem>>, vector<1x8x1x8x64xbf16>,
    return
  }
  func.func @transform_0(%arg0: i32) -> (i32, i32, i32) {
    %c0_i32 = arith.constant 0 : i32
    %c0_i32_0 = arith.constant 0 : i32
    %c0_i32_1 = arith.constant 0 : i32
    return %arg0, %c0_i32, %c0_i32_0 : i32, i32, i32
  }
  func.func @transform_1(%arg0: i32) -> (i32, i32) {
    %c0_i32 = arith.constant 0 : i32
    %c0_i32_0 = arith.constant 0 : i32
    %c0_i32_1 = arith.constant 0 : i32
    return %c0_i32, %c0_i32_0 : i32, i32
  }
  func.func @transform_2(%arg0: i32) -> (i32, i32) {
    %c0_i32 = arith.constant 0 : i32
    %c0_i32_0 = arith.constant 0 : i32
    %c0_i32_1 = arith.constant 0 : i32
    return %c0_i32, %c0_i32_0 : i32, i32
  }
  func.func @transform_3(%arg0: i32) -> (i32, i32) {
    %c0_i32 = arith.constant 0 : i32
    %c0_i32_0 = arith.constant 0 : i32
    %c0_i32_1 = arith.constant 0 : i32
    return %c0_i32, %c0_i32_0 : i32, i32
  }
  func.func @transform_4(%arg0: i32) -> (i32, i32, i32, i32, i32) {
    %c0_i32 = arith.constant 0 : i32
    %c0_i32_0 = arith.constant 0 : i32
    %c0_i32_1 = arith.constant 0 : i32
    %c0_i32_2 = arith.constant 0 : i32
    %c0_i32_3 = arith.constant 0 : i32
    return %arg0, %c0_i32, %c0_i32_0, %c0_i32_1, %c0_i32_2 : i32, i32, i32, i32, i32
  }
  func.func @transform_5(%arg0: i32) -> (i32, i32, i32) {
    %c0_i32 = arith.constant 0 : i32
    %c0_i32_0 = arith.constant 0 : i32
    %c0_i32_1 = arith.constant 0 : i32
    return %arg0, %c0_i32, %c0_i32_0 : i32, i32, i32
  }
  func.func @transform_6(%arg0: i32) -> (i32, i32, i32) {
    %c0_i32 = arith.constant 0 : i32
    %c0_i32_0 = arith.constant 0 : i32
    %c0_i32_1 = arith.constant 0 : i32
    return %arg0, %c0_i32, %c0_i32_0 : i32, i32, i32
  }
}

module attributes {stable_mosaic.version = 11 : i64} {
  func.func @_s2_kernel(%arg0: i32, %arg1: memref<1x256x32xbf16, #tpu.memory_space<vmem>>, %arg2: memref<384x128xbf16, #tpu.memory_space<vmem>>, %arg3: memref<1x32xf32, #tpu.memory_space<vmem>>, %arg4: memref<1x32xf32, #tpu.memory_space<vmem>>, %arg5: memref<1x16x2x16x64xf32, #tpu.memory_space<vmem>>) attributes {dimension_semantics = [#tpu.dimension_semantics<parallel>], iteration_bounds = array<i64: 4>, scalar_prefetch = 0 : i64, scratch_operands = 0 : i64, tpu.core_type = #tpu.core_type<tc>, window_params = [{transform_indices = @transform_0, window_bounds = array<i64: 1, 256, 32>}, {pipeline_mode = #tpu.pipeline_mode<synchronous>, transform_indices = @transform_1, window_bounds = array<i64: 384, 128>}, {pipeline_mode = #tpu.pipeline_mode<synchronous>, transform_indices = @transform_2, window_bounds = array<i64: 1, 32>}, {pipeline_mode = #tpu.pipeline_mode<synchronous>, transform_indices = @transform_3, window_bounds = array<i64: 1, 32>}, {transform_indices = @transform_4, window_bounds = array<i64: 1, 16, 2, 16, 64>}]} {
    %c0 = arith.constant 0 : index
    %c0_0 = arith.constant 0 : index
    %c0_1 = arith.constant 0 : index
    %0 = vector.load %arg1[%c0, %c0_0, %c0_1] : memref<1x256x32xbf16, #tpu.memory_space<vmem>>, vector<1x256x32xbf16>
    %1 = vector.shape_cast %0 : vector<1x256x32xbf16> to vector<256x32xbf16>
    %2 = arith.extf %1 : vector<256x32xbf16> to vector<256x32xf32>
    %c0_2 = arith.constant 0 : index
    %c0_3 = arith.constant 0 : index
    %3 = vector.load %arg3[%c0_2, %c0_3] : memref<1x32xf32, #tpu.memory_space<vmem>>, vector<1x32xf32>
    %4 = vector.broadcast %3 : vector<1x32xf32> to vector<256x32xf32>
    %5 = arith.mulf %2, %4 : vector<256x32xf32>
    %c0_4 = arith.constant 0 : index
    %c0_5 = arith.constant 0 : index
    %6 = vector.load %arg4[%c0_4, %c0_5] : memref<1x32xf32, #tpu.memory_space<vmem>>, vector<1x32xf32>
    %7 = vector.broadcast %6 : vector<1x32xf32> to vector<256x32xf32>
    %8 = arith.addf %5, %7 : vector<256x32xf32>
    %cst = arith.constant 0.000000e+00 : f32
    %9 = vector.broadcast %cst : f32 to vector<256x32xf32>
    %10 = arith.maximumf %8, %9 : vector<256x32xf32>
    %11 = arith.truncf %10 : vector<256x32xf32> to vector<256x32xbf16>
    %cst_6 = arith.constant 0.000000e+00 : bf16
    %12 = vector.broadcast %cst_6 : bf16 to vector<17x32xbf16>
    %13 = tpu.concatenate %12, %11, %12 in 0 : vector<17x32xbf16>, vector<256x32xbf16>, vector<17x32xbf16> -> vector<290x32xbf16>
    %14 = tpu.iota {dimensions = array<i32: 0>} : vector<256x32xi32>
    %c16_i32 = arith.constant 16 : i32
    %c0_i32 = arith.constant 0 : i32
    %15 = arith.cmpi eq, %c16_i32, %c0_i32 : i32
    %c1_i32 = arith.constant 1 : i32
    %16 = arith.select %15, %c1_i32, %c16_i32 : i32
    %17 = vector.broadcast %16 : i32 to vector<256x32xi32>
    %18 = arith.remsi %14, %17 : vector<256x32xi32>
    %c0_i32_7 = arith.constant 0 : i32
    %19 = vector.broadcast %c0_i32_7 : i32 to vector<256x32xi32>
    %20 = arith.cmpi ne, %18, %19 : vector<256x32xi32>
    %c0_i32_8 = arith.constant 0 : i32
    %21 = vector.broadcast %c0_i32_8 : i32 to vector<256x32xi32>
    %22 = arith.cmpi slt, %18, %21 : vector<256x32xi32>
    %c0_i32_9 = arith.constant 0 : i32
    %23 = arith.cmpi slt, %16, %c0_i32_9 : i32
    %24 = vector.broadcast %23 : i1 to vector<256x32xi1>
    %25 = vector.broadcast %24 : vector<256x32xi1> to vector<256x32xi1>
    %26 = arith.xori %22, %25 : vector<256x32xi1>
    %27 = arith.andi %26, %20 : vector<256x32xi1>
    %28 = vector.broadcast %16 : i32 to vector<256x32xi32>
    %29 = arith.addi %18, %28 : vector<256x32xi32>
    %30 = arith.select %27, %29, %18 : vector<256x32xi1>, vector<256x32xi32>
    %c0_i32_10 = arith.constant 0 : i32
    %31 = vector.broadcast %c0_i32_10 : i32 to vector<256x32xi32>
    %32 = arith.cmpi ne, %30, %31 : vector<256x32xi32>
    %c15_i32 = arith.constant 15 : i32
    %33 = vector.broadcast %c15_i32 : i32 to vector<256x32xi32>
    %34 = arith.cmpi ne, %30, %33 : vector<256x32xi32>
    %35 = vector.extract_strided_slice %13 {offsets = [0, 0], sizes = [256, 32], strides = [1, 1]} : vector<290x32xbf16> to vector<256x32xbf16>
    %cst_11 = arith.constant 0.000000e+00 : bf16
    %36 = vector.broadcast %cst_11 : bf16 to vector<256x32xbf16>
    %37 = arith.select %32, %35, %36 : vector<256x32xi1>, vector<256x32xbf16>
    %38 = vector.extract_strided_slice %13 {offsets = [1, 0], sizes = [256, 32], strides = [1, 1]} : vector<290x32xbf16> to vector<256x32xbf16>
    %39 = vector.extract_strided_slice %13 {offsets = [2, 0], sizes = [256, 32], strides = [1, 1]} : vector<290x32xbf16> to vector<256x32xbf16>
    %cst_12 = arith.constant 0.000000e+00 : bf16
    %40 = vector.broadcast %cst_12 : bf16 to vector<256x32xbf16>
    %41 = arith.select %34, %39, %40 : vector<256x32xi1>, vector<256x32xbf16>
    %42 = vector.extract_strided_slice %13 {offsets = [16, 0], sizes = [256, 32], strides = [1, 1]} : vector<290x32xbf16> to vector<256x32xbf16>
    %cst_13 = arith.constant 0.000000e+00 : bf16
    %43 = vector.broadcast %cst_13 : bf16 to vector<256x32xbf16>
    %44 = arith.select %32, %42, %43 : vector<256x32xi1>, vector<256x32xbf16>
    %45 = vector.extract_strided_slice %13 {offsets = [17, 0], sizes = [256, 32], strides = [1, 1]} : vector<290x32xbf16> to vector<256x32xbf16>
    %46 = vector.extract_strided_slice %13 {offsets = [18, 0], sizes = [256, 32], strides = [1, 1]} : vector<290x32xbf16> to vector<256x32xbf16>
    %cst_14 = arith.constant 0.000000e+00 : bf16
    %47 = vector.broadcast %cst_14 : bf16 to vector<256x32xbf16>
    %48 = arith.select %34, %46, %47 : vector<256x32xi1>, vector<256x32xbf16>
    %49 = vector.extract_strided_slice %13 {offsets = [32, 0], sizes = [256, 32], strides = [1, 1]} : vector<290x32xbf16> to vector<256x32xbf16>
    %cst_15 = arith.constant 0.000000e+00 : bf16
    %50 = vector.broadcast %cst_15 : bf16 to vector<256x32xbf16>
    %51 = arith.select %32, %49, %50 : vector<256x32xi1>, vector<256x32xbf16>
    %52 = vector.extract_strided_slice %13 {offsets = [33, 0], sizes = [256, 32], strides = [1, 1]} : vector<290x32xbf16> to vector<256x32xbf16>
    %53 = vector.extract_strided_slice %13 {offsets = [34, 0], sizes = [256, 32], strides = [1, 1]} : vector<290x32xbf16> to vector<256x32xbf16>
    %cst_16 = arith.constant 0.000000e+00 : bf16
    %54 = vector.broadcast %cst_16 : bf16 to vector<256x32xbf16>
    %55 = arith.select %34, %53, %54 : vector<256x32xi1>, vector<256x32xbf16>
    %cst_17 = arith.constant 0.000000e+00 : bf16
    %56 = vector.broadcast %cst_17 : bf16 to vector<256x96xbf16>
    %57 = tpu.concatenate %37, %38, %41, %44, %45, %48, %51, %52, %55, %56 in 1 : vector<256x32xbf16>, vector<256x32xbf16>, vector<256x32xbf16>, vector<256x32xbf16>, vector<256x32xbf16>, vector<256x32xbf16>, vector<256x32xbf16>, vector<256x32xbf16>, vector<256x32xbf16>, vector<256x96xbf16> -> vector<256x384xbf16>
    %c0_18 = arith.constant 0 : index
    %c0_19 = arith.constant 0 : index
    %58 = vector.load %arg2[%c0_18, %c0_19] : memref<384x128xbf16, #tpu.memory_space<vmem>>, vector<384x128xbf16>
    %cst_20 = arith.constant dense<0.000000e+00> : vector<256x128xf32>
    %59 = tpu.matmul %57, %58, %cst_20 {dimension_numbers = #tpu.dot_dimension_numbers<[1], [0], [0], [1], [0, 0, 1, 1], [], []>} : vector<256x384xbf16>, vector<384x128xbf16>, vector<256x128xf32> -> vector<256x128xf32>
    %60 = math.tanh %59 : vector<256x128xf32>
    %61 = vector.extract_strided_slice %60 {offsets = [0, 0], sizes = [256, 64], strides = [1, 1]} : vector<256x128xf32> to vector<256x64xf32>
    %62 = vector.shape_cast %61 : vector<256x64xf32> to vector<16x16x64xf32>
    %c0_21 = arith.constant 0 : index
    %c0_22 = arith.constant 0 : index
    %c0_23 = arith.constant 0 : index
    %c0_24 = arith.constant 0 : index
    %c0_25 = arith.constant 0 : index
    %63 = vector.load %arg5[%c0_21, %c0_22, %c0_23, %c0_24, %c0_25] : memref<1x16x2x16x64xf32, #tpu.memory_space<vmem>>, vector<1x16x1x16x64xf32>
    %64 = vector.shape_cast %63 : vector<1x16x1x16x64xf32> to vector<16x16x64xf32>
    %65 = vector.shape_cast %62 : vector<16x16x64xf32> to vector<1x16x1x16x64xf32>
    tpu.vector_store %arg5[%c0_21, %c0_22, %c0_23, %c0_24, %c0_25], %65 {strides = array<i32>} : memref<1x16x2x16x64xf32, #tpu.memory_space<vmem>>, vector<1x16x1x16x64xf32>,
    %66 = vector.extract_strided_slice %60 {offsets = [0, 64], sizes = [256, 64], strides = [1, 1]} : vector<256x128xf32> to vector<256x64xf32>
    %67 = vector.shape_cast %66 : vector<256x64xf32> to vector<16x16x64xf32>
    %c0_26 = arith.constant 0 : index
    %c0_27 = arith.constant 0 : index
    %c1 = arith.constant 1 : index
    %c0_28 = arith.constant 0 : index
    %c0_29 = arith.constant 0 : index
    %68 = vector.load %arg5[%c0_26, %c0_27, %c1, %c0_28, %c0_29] : memref<1x16x2x16x64xf32, #tpu.memory_space<vmem>>, vector<1x16x1x16x64xf32>
    %69 = vector.shape_cast %68 : vector<1x16x1x16x64xf32> to vector<16x16x64xf32>
    %70 = vector.shape_cast %67 : vector<16x16x64xf32> to vector<1x16x1x16x64xf32>
    tpu.vector_store %arg5[%c0_26, %c0_27, %c1, %c0_28, %c0_29], %70 {strides = array<i32>} : memref<1x16x2x16x64xf32, #tpu.memory_space<vmem>>, vector<1x16x1x16x64xf32>,
    return
  }
  func.func @transform_0(%arg0: i32) -> (i32, i32, i32) {
    %c0_i32 = arith.constant 0 : i32
    %c0_i32_0 = arith.constant 0 : i32
    %c0_i32_1 = arith.constant 0 : i32
    return %arg0, %c0_i32, %c0_i32_0 : i32, i32, i32
  }
  func.func @transform_1(%arg0: i32) -> (i32, i32) {
    %c0_i32 = arith.constant 0 : i32
    %c0_i32_0 = arith.constant 0 : i32
    %c0_i32_1 = arith.constant 0 : i32
    return %c0_i32, %c0_i32_0 : i32, i32
  }
  func.func @transform_2(%arg0: i32) -> (i32, i32) {
    %c0_i32 = arith.constant 0 : i32
    %c0_i32_0 = arith.constant 0 : i32
    %c0_i32_1 = arith.constant 0 : i32
    return %c0_i32, %c0_i32_0 : i32, i32
  }
  func.func @transform_3(%arg0: i32) -> (i32, i32) {
    %c0_i32 = arith.constant 0 : i32
    %c0_i32_0 = arith.constant 0 : i32
    %c0_i32_1 = arith.constant 0 : i32
    return %c0_i32, %c0_i32_0 : i32, i32
  }
  func.func @transform_4(%arg0: i32) -> (i32, i32, i32, i32, i32) {
    %c0_i32 = arith.constant 0 : i32
    %c0_i32_0 = arith.constant 0 : i32
    %c0_i32_1 = arith.constant 0 : i32
    %c0_i32_2 = arith.constant 0 : i32
    %c0_i32_3 = arith.constant 0 : i32
    return %arg0, %c0_i32, %c0_i32_0, %c0_i32_1, %c0_i32_2 : i32, i32, i32, i32, i32
  }
}

</mosaic_0001>

<llo_original>
// kernel: _lambda_.5
$region0: #{_lambda_.5}
  #allocation0 [shape = 'u32[]', space=smem, size = 0x4, offset = 0x4, fixed_abs, tag = 'smem constant byte address 0x4 - core index']
  #allocation1 [shape = 'u32[72,128]{1,0:T(1,128)}', space=vmem, size = 0x9000, scoped, tag = 'internal scratch']
  %s0 = inlined_call_operand.vmem [shape: bf16[4,16,64], index: 0, kind: input, shape index: {}]
  %s1 = inlined_call_operand.hbm [shape: bf16[640,128], index: 1, kind: input, shape index: {}]
  %s2 = inlined_call_operand.vmem [shape: f32[1,64], index: 2, kind: input, shape index: {}]
  %s3 = inlined_call_operand.vmem [shape: f32[1,64], index: 3, kind: input, shape index: {}]
  %s4 = inlined_call_operand.vmem [shape: bf16[4,4,2,4,64], index: 4, kind: output, shape index: {0}]
  %s5 = inlined_call_operand.vmem [shape: f32[4,1,128], index: 5, kind: output, shape index: {1}]
  %s6 = inlined_call_operand.vmem [shape: f32[4,1,128], index: 6, kind: output, shape index: {2}]
  %7 = xla_tuple %s4, %s5, %s6
  %s8 = sld [smem:[#allocation0]]
  $region69: #{_lambda_.5} parent=0
    _
  %s10 = ssub.s32 1, %s8
  %s11 = scalar_select 0, %s10, %s8
  $region1: #{_lambda_.5} parent=0
    #allocation2 [shape = 'u8[163840]{0}', space=vmem, size = 0x28000, scoped, tag = 'input window, operand 1, single buffered']
    #allocation3 [shape = 's32[2]{0}', space=sflag, size = 0x8, scoped, tag = 'scoped memory for _lambda_.5']
    %12 = vsyncpa [#allocation3], 0
    loop: start=0, step=1, limit=6
    $region2: #{_lambda_.5} parent=1 // loop_pre_header
      _
    $region3: #{_lambda_.5} parent=1 // loop_header
      %s14 = sphi 0, %s18
      %p15 = scmp.ge.s32.totalorder %s14, 6
      %s24 = sphi 0, %s26
      %s27 = sphi 0, %s24
      %s28 = sphi 0, %s27
      %s44 = sphi 0, %s28
      %s48 = sphi 0, %s48
      %s50 = sphi 0, %s48
      %s51 = sphi 0, %s50
      %s65 = sphi 0, %s51
      %s69 = sphi 0, %s69
      %s71 = sphi 0, %s69
      %s72 = sphi 0, %s71
      %s86 = sphi 0, %s72
      %s90 = sphi 0, %s90
      %s92 = sphi 0, %s90
      %s93 = sphi 0, %s92
      %s107 = sphi 0, %s93
      %s113 = sphi 0, %s115
      %s116 = sphi 0, %s113
      %s117 = sphi 0, %s116
      %s133 = sphi 0, %s117
      %s139 = sphi 0, %s141
      %s142 = sphi 0, %s139
      %s143 = sphi 0, %s142
      %s159 = sphi 0, %s143
      %s165 = sphi 0, %s167
      %s168 = sphi 0, %s165
      %s169 = sphi 0, %s168
      %s185 = sphi 0, %s169
    $region4: #{_lambda_.5} parent=1 // loop_header_branch
      %17 = sbr.rel (%p15) target = $region8
    $region5: #{_lambda_.5} parent=1 // loop_body
      %s19 = ssub.s32 %s14, 1
      %s20 = ssub.s32 %s14, 2
      %s21 = sadd.s32 %s14, 1
      %s22 = ssub.s32 %s14, %s21
      %p23 = scmp.eq.s32.totalorder %s22, 0
      %s25 = sadd.s32 %s24, 1
      %s26 = scalar_select %p23, %s24, %s25
      %p29 = pneg %p23
      %p30 = scmp.eq.s32.totalorder %s14, 3
      %p31 = por %p29, %p30
      %p32 = scmp.ne.s32.totalorder %s24, %s27
      %p33 = scmp.eq.s32.totalorder %s14, 0
      %p34 = por %p32, %p33
      %p35 = scmp.ne.s32.totalorder %s24, %s27
      %p36 = scmp.eq.s32.totalorder %s19, 3
      %p37 = por %p35, %p36
      %p38 = scmp.ne.s32.totalorder %s27, %s28
      %p39 = scmp.eq.s32.totalorder %s19, 0
      %p40 = por %p38, %p39
      %p41 = scmp.ne.s32.totalorder %s27, %s28
      %p42 = scmp.eq.s32.totalorder %s20, 3
      %p43 = por %p41, %p42
      %p45 = scmp.ne.s32.totalorder %s28, %s44
      %p46 = scmp.eq.s32.totalorder %s20, 0
      %p47 = por %p45, %p46
      %s49 = sadd.s32 %s48, 1
      %p52 = scmp.eq.s32.totalorder %s14, 3
      %p53 = scmp.ne.s32.totalorder %s48, %s50
      %p54 = scmp.eq.s32.totalorder %s14, 0
      %p55 = por %p53, %p54
      %p56 = scmp.ne.s32.totalorder %s48, %s50
      %p57 = scmp.eq.s32.totalorder %s19, 3
      %p58 = por %p56, %p57
      %p59 = scmp.ne.s32.totalorder %s50, %s51
      %p60 = scmp.eq.s32.totalorder %s19, 0
      %p61 = por %p59, %p60
      %p62 = scmp.ne.s32.totalorder %s50, %s51
      %p63 = scmp.eq.s32.totalorder %s20, 3
      %p64 = por %p62, %p63
      %p66 = scmp.ne.s32.totalorder %s51, %s65
      %p67 = scmp.eq.s32.totalorder %s20, 0
      %p68 = por %p66, %p67
      %s70 = sadd.s32 %s69, 1
      %p73 = scmp.eq.s32.totalorder %s14, 3
      %p74 = scmp.ne.s32.totalorder %s69, %s71
      %p75 = scmp.eq.s32.totalorder %s14, 0
      %p76 = por %p74, %p75
      %p77 = scmp.ne.s32.totalorder %s69, %s71
      %p78 = scmp.eq.s32.totalorder %s19, 3
      %p79 = por %p77, %p78
      %p80 = scmp.ne.s32.totalorder %s71, %s72
      %p81 = scmp.eq.s32.totalorder %s19, 0
      %p82 = por %p80, %p81
      %p83 = scmp.ne.s32.totalorder %s71, %s72
      %p84 = scmp.eq.s32.totalorder %s20, 3
      %p85 = por %p83, %p84
      %p87 = scmp.ne.s32.totalorder %s72, %s86
      %p88 = scmp.eq.s32.totalorder %s20, 0
      %p89 = por %p87, %p88
      %s91 = sadd.s32 %s90, 1
      %p94 = scmp.eq.s32.totalorder %s14, 3
      %p95 = scmp.ne.s32.totalorder %s90, %s92
      %p96 = scmp.eq.s32.totalorder %s14, 0
      %p97 = por %p95, %p96
      %p98 = scmp.ne.s32.totalorder %s90, %s92
      %p99 = scmp.eq.s32.totalorder %s19, 3
      %p100 = por %p98, %p99
      %p101 = scmp.ne.s32.totalorder %s92, %s93
      %p102 = scmp.eq.s32.totalorder %s19, 0
      %p103 = por %p101, %p102
      %p104 = scmp.ne.s32.totalorder %s92, %s93
      %p105 = scmp.eq.s32.totalorder %s20, 3
      %p106 = por %p104, %p105
      %p108 = scmp.ne.s32.totalorder %s93, %s107
      %p109 = scmp.eq.s32.totalorder %s20, 0
      %p110 = por %p108, %p109
      %s111 = ssub.s32 %s14, %s21
      %p112 = scmp.eq.s32.totalorder %s111, 0
      %s114 = sadd.s32 %s113, 1
      %s115 = scalar_select %p112, %s113, %s114
      %p118 = pneg %p112
      %p119 = scmp.eq.s32.totalorder %s14, 3
      %p120 = por %p118, %p119
      %p121 = scmp.ne.s32.totalorder %s113, %s116
      %p122 = scmp.eq.s32.totalorder %s14, 0
      %p123 = por %p121, %p122
      %p124 = scmp.ne.s32.totalorder %s113, %s116
      %p125 = scmp.eq.s32.totalorder %s19, 3
      %p126 = por %p124, %p125
      %p127 = scmp.ne.s32.totalorder %s116, %s117
      %p128 = scmp.eq.s32.totalorder %s19, 0
      %p129 = por %p127, %p128
      %p130 = scmp.ne.s32.totalorder %s116, %s117
      %p131 = scmp.eq.s32.totalorder %s20, 3
      %p132 = por %p130, %p131
      %p134 = scmp.ne.s32.totalorder %s117, %s133
      %p135 = scmp.eq.s32.totalorder %s20, 0
      %p136 = por %p134, %p135
      %s137 = ssub.s32 %s14, %s21
      %p138 = scmp.eq.s32.totalorder %s137, 0
      %s140 = sadd.s32 %s139, 1
      %s141 = scalar_select %p138, %s139, %s140
      %p144 = pneg %p138
      %p145 = scmp.eq.s32.totalorder %s14, 3
      %p146 = por %p144, %p145
      %p147 = scmp.ne.s32.totalorder %s139, %s142
      %p148 = scmp.eq.s32.totalorder %s14, 0
      %p149 = por %p147, %p148
      %p150 = scmp.ne.s32.totalorder %s139, %s142
      %p151 = scmp.eq.s32.totalorder %s19, 3
      %p152 = por %p150, %p151
      %p153 = scmp.ne.s32.totalorder %s142, %s143
      %p154 = scmp.eq.s32.totalorder %s19, 0
      %p155 = por %p153, %p154
      %p156 = scmp.ne.s32.totalorder %s142, %s143
      %p157 = scmp.eq.s32.totalorder %s20, 3
      %p158 = por %p156, %p157
      %p160 = scmp.ne.s32.totalorder %s143, %s159
      %p161 = scmp.eq.s32.totalorder %s20, 0
      %p162 = por %p160, %p161
      %s163 = ssub.s32 %s14, %s21
      %p164 = scmp.eq.s32.totalorder %s163, 0
      %s166 = sadd.s32 %s165, 1
      %s167 = scalar_select %p164, %s165, %s166
      %p170 = pneg %p164
      %p171 = scmp.eq.s32.totalorder %s14, 3
      %p172 = por %p170, %p171
      %p173 = scmp.ne.s32.totalorder %s165, %s168
      %p174 = scmp.eq.s32.totalorder %s14, 0
      %p175 = por %p173, %p174
      %p176 = scmp.ne.s32.totalorder %s165, %s168
      %p177 = scmp.eq.s32.totalorder %s19, 3
      %p178 = por %p176, %p177
      %p179 = scmp.ne.s32.totalorder %s168, %s169
      %p180 = scmp.eq.s32.totalorder %s19, 0
      %p181 = por %p179, %p180
      %p182 = scmp.ne.s32.totalorder %s168, %s169
      %p183 = scmp.eq.s32.totalorder %s20, 3
      %p184 = por %p182, %p183
      %p186 = scmp.ne.s32.totalorder %s169, %s185
      %p187 = scmp.eq.s32.totalorder %s20, 0
      %p188 = por %p186, %p187
      %p189 = scmp.le.s32.totalorder 1, %s14
      %p190 = scmp.lt.s32.totalorder %s14, 5
      %p191 = pnand %p189, %p190
      %p192 = pneg %p191
      // Predicated region
      $region9: #{_lambda_.5} parent=5 // pred_check
        _
      $region10: #{_lambda_.5} parent=5 // pred_check_branch
        %194 = sbr.rel (%p191) target = $region12
      $region11: #{_lambda_.5} parent=5 // pred_region
        %s195 = ssub.s32 %s14, 1
        // Predicated region
        $region13: #{_lambda_.5} parent=11 // pred_check
          %p196 = pneg %p61
        $region14: #{_lambda_.5} parent=11 // pred_check_branch
          %198 = sbr.rel (%p196) target = $region16
        $region15: #{_lambda_.5} parent=11 // pred_region
          %200 = vsyncadd [#allocation3], 0
          %s201 = sshll.u32 %s1, 4
          %s202 = int_to_ptr.hbm [resolvable:$true] %s201
          %s203 = sshll.u32 [#allocation2], 4
          %s204 = int_to_ptr.vmem [resolvable:$true] %s203
          %209 = dma.hbm_to_vmem [thread:$0]  %s202, 5120, %s204, [#allocation3], 64, 64, 4
        $region16: #{_lambda_.5} parent=11 // pred_fallthru
          _
        // Predicated region
        $region17: #{_lambda_.5} parent=11 // pred_check
          %p210 = pneg %p82
        $region18: #{_lambda_.5} parent=11 // pred_check_branch
          %212 = sbr.rel (%p210) target = $region20
        $region19: #{_lambda_.5} parent=11 // pred_region
          _
        $region20: #{_lambda_.5} parent=11 // pred_fallthru
          _
        // Predicated region
        $region21: #{_lambda_.5} parent=11 // pred_check
          %p213 = pneg %p103
        $region22: #{_lambda_.5} parent=11 // pred_check_branch
          %215 = sbr.rel (%p213) target = $region24
        $region23: #{_lambda_.5} parent=11 // pred_region
          _
        $region24: #{_lambda_.5} parent=11 // pred_fallthru
          _
      $region12: #{_lambda_.5} parent=5 // pred_fallthru
        _
      %p216 = scmp.lt.s32.totalorder %s14, 4
      // Predicated region
      $region25: #{_lambda_.5} parent=5 // pred_check
        %p217 = pneg %p216
      $region26: #{_lambda_.5} parent=5 // pred_check_branch
        %219 = sbr.rel (%p217) target = $region28
      $region27: #{_lambda_.5} parent=5 // pred_region
        // Predicated region
        $region29: #{_lambda_.5} parent=27 // pred_check
          %p220 = pneg %p34
        $region30: #{_lambda_.5} parent=27 // pred_check_branch
          %222 = sbr.rel (%p220) target = $region32
        $region31: #{_lambda_.5} parent=27 // pred_region
          %p223 = scmp.lt.s32.totalorder %s14, 3
          %s224 = scalar_select %p223, %s14, 3
          %s225 = smul.addr %s224, 2
          %s226 = smul.addr %s225, 4
          %s227 = scalar_lea.vmem %s0, %s226
        $region32: #{_lambda_.5} parent=27 // pred_fallthru
          _
      $region28: #{_lambda_.5} parent=5 // pred_fallthru
        _
      %p228 = scmp.le.s32.totalorder 1, %s14
      %p229 = scmp.lt.s32.totalorder %s14, 5
      %p230 = pnand %p228, %p229
      %p231 = pneg %p230
      // Predicated region
      $region33: #{_lambda_.5} parent=5 // pred_check
        _
      $region34: #{_lambda_.5} parent=5 // pred_check_branch
        %233 = sbr.rel (%p230) target = $region36
      $region35: #{_lambda_.5} parent=5 // pred_region
        %s234 = ssub.s32 %s14, 1
        // Predicated region
        $region37: #{_lambda_.5} parent=35 // pred_check
          %p235 = pneg %p61
        $region38: #{_lambda_.5} parent=35 // pred_check_branch
          %237 = sbr.rel (%p235) target = $region40
        $region39: #{_lambda_.5} parent=35 // pred_region
          %239 = dma.done [#allocation3], 5120
        $region40: #{_lambda_.5} parent=35 // pred_fallthru
          _
        %p240 = scmp.lt.s32.totalorder %s19, 3
        %s241 = scalar_select %p240, %s19, 3
        %s242 = smul.addr %s241, 2
        %s243 = smul.addr %s242, 4
        %s244 = scalar_lea.vmem %s0, %s243
        %p245 = pneg %p40
        %p246 = pneg %p37
        %p247 = pneg %p61
        %p248 = pneg %p58
        %p249 = pneg %p82
        %p250 = pneg %p79
        %p251 = pneg %p103
        %p252 = pneg %p100
        %p253 = pneg %p129
        %p254 = pneg %p126
        %p255 = scmp.lt.s32.totalorder %s19, 3
        %s256 = scalar_select %p255, %s19, 3
        %s257 = smul.addr %s256, 8
        %s258 = smul.addr %s257, 2
        %s259 = scalar_lea.vmem %s4, %s258
        %p260 = pneg %p155
        %p261 = pneg %p152
        %p262 = scmp.lt.s32.totalorder %s19, 3
        %s263 = scalar_select %p262, %s19, 3
        %s264 = scalar_lea.vmem %s5, %s263
        %p265 = pneg %p181
        %p266 = pneg %p178
        %p267 = scmp.lt.s32.totalorder %s19, 3
        %s268 = scalar_select %p267, %s19, 3
        %s269 = scalar_lea.vmem %s6, %s268
        %p270 = scmp.lt.s32.totalorder %s19, 3
        %s271 = scalar_select %p270, %s19, 3
        %s272 = smul.addr %s271, 2
        %s273 = smul.addr %s272, 4
        %s274 = scalar_lea.vmem %s0, %s273
        %p275 = scmp.lt.s32.totalorder %s19, 3
        %s276 = scalar_select %p275, %s19, 3
        %s277 = smul.addr %s276, 8
        %s278 = smul.addr %s277, 2
        %s279 = scalar_lea.vmem %s4, %s278
        %p280 = scmp.lt.s32.totalorder %s19, 3
        %s281 = scalar_select %p280, %s19, 3
        %s282 = scalar_lea.vmem %s5, %s281
        %p283 = scmp.lt.s32.totalorder %s19, 3
        %s284 = scalar_select %p283, %s19, 3
        %s285 = scalar_lea.vmem %s6, %s284
        %v289 = vld [vmem:[%s274] sm:$0xf]
        %v290 = vld [vmem:[%s274 + $0x4] sm:$0xf]
        %v291 = vunpack.c.l.bf16 %v289
        %v292 = vunpack.c.l.bf16 %v290
        %v293 = vld [vmem:[%s2] sm:$0x1]
        %v295 = vperm.slane %v293, 0
        %v297 = vmul.f32 %v291, %v295
        %v298 = vmul.f32 %v292, %v295
        %v299 = vld [vmem:[%s3] sm:$0x1]
        %v301 = vperm.slane %v299, 0
        %v303 = vadd.f32 %v297, %v301
        %v304 = vadd.f32 %v298, %v301
        %v305 = vmax.f32 %v303, 0.0
        %v306 = vmax.f32 %v304, 0.0
        %v307 = vpack.c.bf16 %v305, %v305
        %v308 = vpack.c.bf16 %v306, %v306
        %v311 = vunpack.c.l.b16 %v307
        %v312 = vunpack.c.l.b16 %v308
        %v313 = vpack.c.b16 %v312, %v311
        %v315 = vshrl.u32 %v313, 16
        %v317 = vrot.slane %v315, 5
        %v318 = vshll.u32 %v313, 16
        %v320 = vrot.slane %v318, 6
        %v321 = vor.u32 %v317, %v320
        %vm323 = vcmask 1042432
        %vm324 = vsmask.f32 2304
        %vm325 = vmand %vm323, %vm324
        %v326 = vsel %vm325, 0, %v321
        %v327 = vsel %vm325, %v321, 0
        %v328 = vlaneseq
        %v329 = vshrl.u32 %v328, 7
        %v330 = vadd.s32 %v329, 8
        %vm331 = vcmp.lt.s32.totalorder %v329, 0
        %v332 = vsub.s32 0, %v329
        %v333 = vsel %vm331, %v332, %v329
        %v334 = vshrl.u32 %v333, 2
        %v335 = vand.u32 %v333, 3
        %v336 = vsub.s32 0, %v335
        %v337 = vsel %vm331, %v336, %v335
        %vm338 = vcmp.lt.s32.totalorder %v330, 0
        %v339 = vsub.s32 0, %v330
        %v340 = vsel %vm338, %v339, %v330
        %v341 = vshrl.u32 %v340, 2
        %v342 = vand.u32 %v340, 3
        %v343 = vsub.s32 0, %v342
        %v344 = vsel %vm338, %v343, %v342
        %vm345 = vcmp.ne.s32.totalorder %v337, 0
        %vm346 = vcmp.ne.s32.totalorder %v344, 0
        %vm347 = vcmp.lt.s32.totalorder %v337, 0
        %vm348 = vcmp.lt.s32.totalorder %v344, 0
        %vm349 = vmand %vm347, %vm345
        %vm350 = vmand %vm348, %vm346
        %v351 = vadd.s32 %v337, 4
        %v352 = vadd.s32 %v344, 4
        %v353 = vsel %vm349, %v351, %v337
        %v354 = vsel %vm350, %v352, %v344
        %vm355 = vcmp.ne.s32.totalorder %v353, 0
        %vm356 = vcmp.ne.s32.totalorder %v354, 0
        %vm357 = vcmp.ne.s32.totalorder %v353, 3
        %vm358 = vcmp.ne.s32.totalorder %v354, 3
        %vm359 = vmpackc.low %vm355, %vm355
        %vm360 = vmpackc.low %vm356, %vm356
        %v361 = vsel %vm359, 65537, 0
        %v362 = vsel %vm360, 65537, 0
        %v363 = vunpack.c.l.b16 %v361
        %v364 = vunpack.c.l.b16 %v362
        %v365 = vpack.c.b16 %v364, %v363
        %v366 = vunpack.c.l.b16 %v365
        %v367 = vunpack.c.h.b16 %v365
        %v368 = vunpack.c.l.b16 0
        %v369 = vunpack.c.h.b16 0
        %vm370 = vcmp.ne.s32.totalorder %v366, %v368
        %vm371 = vcmp.ne.s32.totalorder %v367, %v369
        %vm372 = vmpackc.low %vm371, %vm370
        %v373 = vsel %vm372, %v326, 0
        %vm374 = vmpackc.low %vm357, %vm357
        %vm375 = vmpackc.low %vm358, %vm358
        %v376 = vsel %vm374, 65537, 0
        %v377 = vsel %vm375, 65537, 0
        %v378 = vunpack.c.l.b16 %v376
        %v379 = vunpack.c.l.b16 %v377
        %v380 = vpack.c.b16 %v379, %v378
        %v381 = vrot.slane %v380, 7
        %v382 = vunpack.c.l.b16 %v381
        %v383 = vunpack.c.h.b16 %v381
        %v384 = vunpack.c.l.b16 0
        %v385 = vunpack.c.h.b16 0
        %vm386 = vcmp.ne.s32.totalorder %v382, %v384
        %vm387 = vcmp.ne.s32.totalorder %v383, %v385
        %vm388 = vmpackc.low %vm387, %vm386
        %v389 = vsel %vm388, %v326, 0
        %v390 = vsel %vm388, %v327, 0
        %v391 = vrot.slane %v365, 6
        %v392 = vunpack.c.l.b16 %v391
        %v393 = vunpack.c.h.b16 %v391
        %v394 = vunpack.c.l.b16 0
        %v395 = vunpack.c.h.b16 0
        %vm396 = vcmp.ne.s32.totalorder %v392, %v394
        %vm397 = vcmp.ne.s32.totalorder %v393, %v395
        %vm398 = vmpackc.low %vm397, %vm396
        %v399 = vsel %vm398, %v326, 0
        %v400 = vsel %vm398, %v327, 0
        %v401 = vrot.slane %v380, 5
        %v402 = vunpack.c.l.b16 %v401
        %v403 = vunpack.c.h.b16 %v401
        %v404 = vunpack.c.l.b16 0
        %v405 = vunpack.c.h.b16 0
        %vm406 = vcmp.ne.s32.totalorder %v402, %v404
        %vm407 = vcmp.ne.s32.totalorder %v403, %v405
        %vm408 = vmpackc.low %vm407, %vm406
        %v409 = vsel %vm408, %v326, 0
        %v410 = vsel %vm408, %v327, 0
        %v411 = vpack.c.b16 %v363, %v363
        %v412 = vpack.c.b16 %v364, %v364
        %v413 = vunpack.c.l.b16 %v411
        %v414 = vunpack.c.h.b16 %v411
        %v415 = vunpack.c.l.b16 0
        %v416 = vunpack.c.h.b16 0
        %vm417 = vcmp.ne.s32.totalorder %v413, %v415
        %vm418 = vcmp.ne.s32.totalorder %v414, %v416
        %vm419 = vmpackc.low %vm418, %vm417
        %v420 = vunpack.c.l.b16 %v412
        %v421 = vunpack.c.h.b16 %v412
        %v422 = vunpack.c.l.b16 0
        %v423 = vunpack.c.h.b16 0
        %vm424 = vcmp.ne.s32.totalorder %v420, %v422
        %vm425 = vcmp.ne.s32.totalorder %v421, %v423
        %vm426 = vmpackc.low %vm425, %vm424
        %v427 = vsel %vm419, %v326, 0
        %v428 = vsel %vm426, %v327, 0
        %v429 = vrot.slane %v380, 3
        %v430 = vunpack.c.l.b16 %v429
        %v431 = vunpack.c.h.b16 %v429
        %v432 = vunpack.c.l.b16 0
        %v433 = vunpack.c.h.b16 0
        %vm434 = vcmp.ne.s32.totalorder %v430, %v432
        %vm435 = vcmp.ne.s32.totalorder %v431, %v433
        %vm436 = vmpackc.low %vm435, %vm434
        %v437 = vsel %vm436, %v326, 0
        %v438 = vsel %vm436, %v327, 0
        %vm439 = vsmask.f32 7424
        %v441 = vshrl.u32 %v326, 16
        %v443 = vshll.u32 %v326, 16
        %v445 = vrot.slane %v443, 1
        %v446 = vor.u32 %v441, %v445
        %v448 = vshll.u32 %v327, 16
        %v450 = vrot.slane %v448, 1
        %v451 = vsel %vm439, %v446, %v450
        %452 = vrot.lane.b32.xlu0 %v451, 64
        %v453 = vpop.permute.xlu0 %452
        %vm456 = vcmask 1046528
        %v457 = vrot.slane %v389, 1
        %v458 = vrot.slane %v390, 1
        %v459 = vsel %vm456, %v457, %v458
        %vm462 = vcmask 1045504
        %v463 = vrot.slane %v399, 2
        %v464 = vrot.slane %v400, 2
        %v465 = vsel %vm462, %v463, %v464
        %466 = vrot.lane.b32.xlu0 %v465, 64
        %v467 = vpop.permute.xlu0 %466
        %vm468 = vsmask.f32 5376
        %v469 = vrot.slane %v441, 2
        %v470 = vrot.slane %v443, 3
        %v471 = vor.u32 %v469, %v470
        %v472 = vshrl.u32 %v327, 16
        %v474 = vrot.slane %v472, 2
        %v475 = vrot.slane %v448, 3
        %v476 = vor.u32 %v474, %v475
        %v477 = vsel %vm468, %v471, %v476
        %vm480 = vcmask 1044480
        %v481 = vrot.slane %v409, 3
        %v482 = vrot.slane %v410, 3
        %v483 = vsel %vm480, %v481, %v482
        %484 = vrot.lane.b32.xlu0 %v483, 64
        %v485 = vpop.permute.xlu0 %484
        %vm488 = vcmask 1043456
        %v489 = vrot.slane %v427, 4
        %v490 = vrot.slane %v428, 4
        %v491 = vsel %vm488, %v489, %v490
        %vm492 = vsmask.f32 3328
        %v493 = vrot.slane %v441, 4
        %v494 = vrot.slane %v443, 5
        %v495 = vor.u32 %v493, %v494
        %v496 = vrot.slane %v472, 4
        %v497 = vrot.slane %v448, 5
        %v498 = vor.u32 %v496, %v497
        %v499 = vsel %vm492, %v495, %v498
        %500 = vrot.lane.b32.xlu0 %v499, 64
        %v501 = vpop.permute.xlu0 %500
        %v504 = vrot.slane %v437, 5
        %v505 = vrot.slane %v438, 5
        %v506 = vsel %vm323, %v504, %v505
        %vm507 = vcmask 523264
        %v510 = vsel %vm507, %v373, %v453
        %v514 = vsel %vm507, %v459, %v467
        %v518 = vsel %vm507, %v477, %v485
        %v522 = vsel %vm507, %v491, %v501
        %v526 = vsel %vm507, %v506, 0
        %v528 = vld [vmem:[#allocation2] sm:$0xf]
        %v529 = vld [vmem:[#allocation2 + $0x4] sm:$0xf]
        %v530 = vld [vmem:[#allocation2 + $0x8] sm:$0xf]
        %v531 = vld [vmem:[#allocation2 + $0xc] sm:$0xf]
        %v532 = vld [vmem:[#allocation2 + $0x10] sm:$0xf]
        %v533 = vld [vmem:[#allocation2 + $0x14] sm:$0xf]
        %v534 = vld [vmem:[#allocation2 + $0x18] sm:$0xf]
        %v535 = vld [vmem:[#allocation2 + $0x1c] sm:$0xf]
        %v536 = vld [vmem:[#allocation2 + $0x20] sm:$0xf]
        %v537 = vld [vmem:[#allocation2 + $0x24] sm:$0xf]
        %v538 = vld [vmem:[#allocation2 + $0x28] sm:$0xf]
        %v539 = vld [vmem:[#allocation2 + $0x2c] sm:$0xf]
        %v540 = vld [vmem:[#allocation2 + $0x30] sm:$0xf]
        %v541 = vld [vmem:[#allocation2 + $0x34] sm:$0xf]
        %v542 = vld [vmem:[#allocation2 + $0x38] sm:$0xf]
        %v543 = vld [vmem:[#allocation2 + $0x3c] sm:$0xf]
        %v544 = vld [vmem:[#allocation2 + $0x40] sm:$0xf]
        %v545 = vld [vmem:[#allocation2 + $0x44] sm:$0xf]
        %v546 = vld [vmem:[#allocation2 + $0x48] sm:$0xf]
        %v547 = vld [vmem:[#allocation2 + $0x4c] sm:$0xf]
        %v548 = vld [vmem:[#allocation2 + $0x50] sm:$0xf]
        %v549 = vld [vmem:[#allocation2 + $0x54] sm:$0xf]
        %v550 = vld [vmem:[#allocation2 + $0x58] sm:$0xf]
        %v551 = vld [vmem:[#allocation2 + $0x5c] sm:$0xf]
        %v552 = vld [vmem:[#allocation2 + $0x60] sm:$0xf]
        %v553 = vld [vmem:[#allocation2 + $0x64] sm:$0xf]
        %v554 = vld [vmem:[#allocation2 + $0x68] sm:$0xf]
        %v555 = vld [vmem:[#allocation2 + $0x6c] sm:$0xf]
        %v556 = vld [vmem:[#allocation2 + $0x70] sm:$0xf]
        %v557 = vld [vmem:[#allocation2 + $0x74] sm:$0xf]
        %v558 = vld [vmem:[#allocation2 + $0x78] sm:$0xf]
        %v559 = vld [vmem:[#allocation2 + $0x7c] sm:$0xf]
        %v560 = vld [vmem:[#allocation2 + $0x80] sm:$0xf]
        %v561 = vld [vmem:[#allocation2 + $0x84] sm:$0xf]
        %v562 = vld [vmem:[#allocation2 + $0x88] sm:$0xf]
        %v563 = vld [vmem:[#allocation2 + $0x8c] sm:$0xf]
        %v564 = vld [vmem:[#allocation2 + $0x90] sm:$0xf]
        %v565 = vld [vmem:[#allocation2 + $0x94] sm:$0xf]
        %v566 = vld [vmem:[#allocation2 + $0x98] sm:$0xf]
        %v567 = vld [vmem:[#allocation2 + $0x9c] sm:$0xf]
        %v568 = vld [vmem:[#allocation2 + $0xa0] sm:$0xf]
        %v569 = vld [vmem:[#allocation2 + $0xa4] sm:$0xf]
        %v570 = vld [vmem:[#allocation2 + $0xa8] sm:$0xf]
        %v571 = vld [vmem:[#allocation2 + $0xac] sm:$0xf]
        %v572 = vld [vmem:[#allocation2 + $0xb0] sm:$0xf]
        %v573 = vld [vmem:[#allocation2 + $0xb4] sm:$0xf]
        %v574 = vld [vmem:[#allocation2 + $0xb8] sm:$0xf]
        %v575 = vld [vmem:[#allocation2 + $0xbc] sm:$0xf]
        %v576 = vld [vmem:[#allocation2 + $0xc0] sm:$0xf]
        %v577 = vld [vmem:[#allocation2 + $0xc4] sm:$0xf]
        %v578 = vld [vmem:[#allocation2 + $0xc8] sm:$0xf]
        %v579 = vld [vmem:[#allocation2 + $0xcc] sm:$0xf]
        %v580 = vld [vmem:[#allocation2 + $0xd0] sm:$0xf]
        %v581 = vld [vmem:[#allocation2 + $0xd4] sm:$0xf]
        %v582 = vld [vmem:[#allocation2 + $0xd8] sm:$0xf]
        %v583 = vld [vmem:[#allocation2 + $0xdc] sm:$0xf]
        %v584 = vld [vmem:[#allocation2 + $0xe0] sm:$0xf]
        %v585 = vld [vmem:[#allocation2 + $0xe4] sm:$0xf]
        %v586 = vld [vmem:[#allocation2 + $0xe8] sm:$0xf]
        %v587 = vld [vmem:[#allocation2 + $0xec] sm:$0xf]
        %v588 = vld [vmem:[#allocation2 + $0xf0] sm:$0xf]
        %v589 = vld [vmem:[#allocation2 + $0xf4] sm:$0xf]
        %v590 = vld [vmem:[#allocation2 + $0xf8] sm:$0xf]
        %v591 = vld [vmem:[#allocation2 + $0xfc] sm:$0xf]
        %v592 = vld [vmem:[#allocation2 + $0x100] sm:$0xf]
        %v593 = vld [vmem:[#allocation2 + $0x104] sm:$0xf]
        %v594 = vld [vmem:[#allocation2 + $0x108] sm:$0xf]
        %v595 = vld [vmem:[#allocation2 + $0x10c] sm:$0xf]
        %v596 = vld [vmem:[#allocation2 + $0x110] sm:$0xf]
        %v597 = vld [vmem:[#allocation2 + $0x114] sm:$0xf]
        %v598 = vld [vmem:[#allocation2 + $0x118] sm:$0xf]
        %v599 = vld [vmem:[#allocation2 + $0x11c] sm:$0xf]
        %v600 = vld [vmem:[#allocation2 + $0x120] sm:$0xf]
        %v601 = vld [vmem:[#allocation2 + $0x124] sm:$0xf]
        %v602 = vld [vmem:[#allocation2 + $0x128] sm:$0xf]
        %v603 = vld [vmem:[#allocation2 + $0x12c] sm:$0xf]
        %v604 = vld [vmem:[#allocation2 + $0x130] sm:$0xf]
        %v605 = vld [vmem:[#allocation2 + $0x134] sm:$0xf]
        %v606 = vld [vmem:[#allocation2 + $0x138] sm:$0xf]
        %v607 = vld [vmem:[#allocation2 + $0x13c] sm:$0xf]
        %v688 = vunpack.c.l.b16 %v528
        %v689 = vunpack.c.l.b16 %v529
        %v690 = vunpack.c.l.b16 %v530
        %v691 = vunpack.c.l.b16 %v531
        %v692 = vunpack.c.l.b16 %v532
        %v693 = vunpack.c.l.b16 %v533
        %v694 = vunpack.c.l.b16 %v534
        %v695 = vunpack.c.l.b16 %v535
        %v696 = vunpack.c.l.b16 %v536
        %v697 = vunpack.c.l.b16 %v537
        %v698 = vunpack.c.l.b16 %v538
        %v699 = vunpack.c.l.b16 %v539
        %v700 = vunpack.c.l.b16 %v540
        %v701 = vunpack.c.l.b16 %v541
        %v702 = vunpack.c.l.b16 %v542
        %v703 = vunpack.c.l.b16 %v543
        %v704 = vunpack.c.l.b16 %v544
        %v705 = vunpack.c.l.b16 %v545
        %v706 = vunpack.c.l.b16 %v546
        %v707 = vunpack.c.l.b16 %v547
        %v708 = vunpack.c.l.b16 %v548
        %v709 = vunpack.c.l.b16 %v549
        %v710 = vunpack.c.l.b16 %v550
        %v711 = vunpack.c.l.b16 %v551
        %v712 = vunpack.c.l.b16 %v552
        %v713 = vunpack.c.l.b16 %v553
        %v714 = vunpack.c.l.b16 %v554
        %v715 = vunpack.c.l.b16 %v555
        %v716 = vunpack.c.l.b16 %v556
        %v717 = vunpack.c.l.b16 %v557
        %v718 = vunpack.c.l.b16 %v558
        %v719 = vunpack.c.l.b16 %v559
        %v720 = vunpack.c.l.b16 %v560
        %v721 = vunpack.c.l.b16 %v561
        %v722 = vunpack.c.l.b16 %v562
        %v723 = vunpack.c.l.b16 %v563
        %v724 = vunpack.c.l.b16 %v564
        %v725 = vunpack.c.l.b16 %v565
        %v726 = vunpack.c.l.b16 %v566
        %v727 = vunpack.c.l.b16 %v567
        %v728 = vunpack.c.l.b16 %v568
        %v729 = vunpack.c.l.b16 %v569
        %v730 = vunpack.c.l.b16 %v570
        %v731 = vunpack.c.l.b16 %v571
        %v732 = vunpack.c.l.b16 %v572
        %v733 = vunpack.c.l.b16 %v573
        %v734 = vunpack.c.l.b16 %v574
        %v735 = vunpack.c.l.b16 %v575
        %v736 = vunpack.c.l.b16 %v576
        %v737 = vunpack.c.l.b16 %v577
        %v738 = vunpack.c.l.b16 %v578
        %v739 = vunpack.c.l.b16 %v579
        %v740 = vunpack.c.l.b16 %v580
        %v741 = vunpack.c.l.b16 %v581
        %v742 = vunpack.c.l.b16 %v582
        %v743 = vunpack.c.l.b16 %v583
        %v744 = vunpack.c.l.b16 %v584
        %v745 = vunpack.c.l.b16 %v585
        %v746 = vunpack.c.l.b16 %v586
        %v747 = vunpack.c.l.b16 %v587
        %v748 = vunpack.c.l.b16 %v588
        %v749 = vunpack.c.l.b16 %v589
        %v750 = vunpack.c.l.b16 %v590
        %v751 = vunpack.c.l.b16 %v591
        %v752 = vunpack.c.l.b16 %v592
        %v753 = vunpack.c.l.b16 %v593
        %v754 = vunpack.c.l.b16 %v594
        %v755 = vunpack.c.l.b16 %v595
        %v756 = vunpack.c.l.b16 %v596
        %v757 = vunpack.c.l.b16 %v597
        %v758 = vunpack.c.l.b16 %v598
        %v759 = vunpack.c.l.b16 %v599
        %v760 = vunpack.c.l.b16 %v600
        %v761 = vunpack.c.l.b16 %v601
        %v762 = vunpack.c.l.b16 %v602
        %v763 = vunpack.c.l.b16 %v603
        %v764 = vunpack.c.l.b16 %v604
        %v765 = vunpack.c.l.b16 %v605
        %v766 = vunpack.c.l.b16 %v606
        %v767 = vunpack.c.l.b16 %v607
        %v768 = vpack.c.b16 %v689, %v688
        %v769 = vpack.c.b16 %v691, %v690
        %v770 = vpack.c.b16 %v693, %v692
        %v771 = vpack.c.b16 %v695, %v694
        %v772 = vpack.c.b16 %v697, %v696
        %v773 = vpack.c.b16 %v699, %v698
        %v774 = vpack.c.b16 %v701, %v700
        %v775 = vpack.c.b16 %v703, %v702
        %v776 = vpack.c.b16 %v705, %v704
        %v777 = vpack.c.b16 %v707, %v706
        %v778 = vpack.c.b16 %v709, %v708
        %v779 = vpack.c.b16 %v711, %v710
        %v780 = vpack.c.b16 %v713, %v712
        %v781 = vpack.c.b16 %v715, %v714
        %v782 = vpack.c.b16 %v717, %v716
        %v783 = vpack.c.b16 %v719, %v718
        %v784 = vpack.c.b16 %v721, %v720
        %v785 = vpack.c.b16 %v723, %v722
        %v786 = vpack.c.b16 %v725, %v724
        %v787 = vpack.c.b16 %v727, %v726
        %v788 = vpack.c.b16 %v729, %v728
        %v789 = vpack.c.b16 %v731, %v730
        %v790 = vpack.c.b16 %v733, %v732
        %v791 = vpack.c.b16 %v735, %v734
        %v792 = vpack.c.b16 %v737, %v736
        %v793 = vpack.c.b16 %v739, %v738
        %v794 = vpack.c.b16 %v741, %v740
        %v795 = vpack.c.b16 %v743, %v742
        %v796 = vpack.c.b16 %v745, %v744
        %v797 = vpack.c.b16 %v747, %v746
        %v798 = vpack.c.b16 %v749, %v748
        %v799 = vpack.c.b16 %v751, %v750
        %v800 = vpack.c.b16 %v753, %v752
        %v801 = vpack.c.b16 %v755, %v754
        %v802 = vpack.c.b16 %v757, %v756
        %v803 = vpack.c.b16 %v759, %v758
        %v804 = vpack.c.b16 %v761, %v760
        %v805 = vpack.c.b16 %v763, %v762
        %v806 = vpack.c.b16 %v765, %v764
        %v807 = vpack.c.b16 %v767, %v766
        %848 = vmatpush.bf16.msra.mxu0 %v775
        %849 = vmatpush.bf16.msra.mxu0 %v774
        %850 = vmatpush.bf16.msra.mxu0 %v773
        %851 = vmatpush.bf16.msra.mxu0 %v772
        %852 = vmatpush.bf16.msra.mxu0 %v771
        %853 = vmatpush.bf16.msra.mxu0 %v770
        %854 = vmatpush.bf16.msra.mxu0 %v769
        %855 = vmatpush.bf16.msra.mxu0 %v768
        %856 = vmatmul.bf16.gmra.mxu0 %v510
        %v857 = vpop.f32.mrf.mxu0
        %v858 = vadd.f32 0.0, %v857
        %v859 = vpop.f32.mrf.mxu0
        %v860 = vadd.f32 0.0, %v859
        %861 = vdwg.mxu0
        %862 = vmatpush.bf16.msra.mxu0 %v783
        %863 = vmatpush.bf16.msra.mxu0 %v782
        %864 = vmatpush.bf16.msra.mxu0 %v781
        %865 = vmatpush.bf16.msra.mxu0 %v780
        %866 = vmatpush.bf16.msra.mxu0 %v779
        %867 = vmatpush.bf16.msra.mxu0 %v778
        %868 = vmatpush.bf16.msra.mxu0 %v777
        %869 = vmatpush.bf16.msra.mxu0 %v776
        %870 = vmatmul.bf16.gmra.mxu0 %v514
        %v871 = vpop.f32.mrf.mxu0
        %v872 = vadd.f32 %v858, %v871
        %v873 = vpop.f32.mrf.mxu0
        %v874 = vadd.f32 %v860, %v873
        %875 = vdwg.mxu0
        %876 = vmatpush.bf16.msra.mxu0 %v791
        %877 = vmatpush.bf16.msra.mxu0 %v790
        %878 = vmatpush.bf16.msra.mxu0 %v789
        %879 = vmatpush.bf16.msra.mxu0 %v788
        %880 = vmatpush.bf16.msra.mxu0 %v787
        %881 = vmatpush.bf16.msra.mxu0 %v786
        %882 = vmatpush.bf16.msra.mxu0 %v785
        %883 = vmatpush.bf16.msra.mxu0 %v784
        %884 = vmatmul.bf16.gmra.mxu0 %v518
        %v885 = vpop.f32.mrf.mxu0
        %v886 = vadd.f32 %v872, %v885
        %v887 = vpop.f32.mrf.mxu0
        %v888 = vadd.f32 %v874, %v887
        %889 = vdwg.mxu0
        %890 = vmatpush.bf16.msra.mxu0 %v799
        %891 = vmatpush.bf16.msra.mxu0 %v798
        %892 = vmatpush.bf16.msra.mxu0 %v797
        %893 = vmatpush.bf16.msra.mxu0 %v796
        %894 = vmatpush.bf16.msra.mxu0 %v795
        %895 = vmatpush.bf16.msra.mxu0 %v794
        %896 = vmatpush.bf16.msra.mxu0 %v793
        %897 = vmatpush.bf16.msra.mxu0 %v792
        %898 = vmatmul.bf16.gmra.mxu0 %v522
        %v899 = vpop.f32.mrf.mxu0
        %v900 = vadd.f32 %v886, %v899
        %v901 = vpop.f32.mrf.mxu0
        %v902 = vadd.f32 %v888, %v901
        %903 = vdwg.mxu0
        %904 = vmatpush.bf16.msra.mxu0 %v807
        %905 = vmatpush.bf16.msra.mxu0 %v806
        %906 = vmatpush.bf16.msra.mxu0 %v805
        %907 = vmatpush.bf16.msra.mxu0 %v804
        %908 = vmatpush.bf16.msra.mxu0 %v803
        %909 = vmatpush.bf16.msra.mxu0 %v802
        %910 = vmatpush.bf16.msra.mxu0 %v801
        %911 = vmatpush.bf16.msra.mxu0 %v800
        %912 = vmatmul.bf16.gmra.mxu0 %v526
        %v913 = vpop.f32.mrf.mxu0
        %v914 = vadd.f32 %v900, %v913
        %v915 = vpop.f32.mrf.mxu0
        %v916 = vadd.f32 %v902, %v915
        %917 = vdwg.mxu0
        %v918 = vadd.f32 %v914, %v916
        %v919 = vrot.slane %v918, 4
        %v920 = vadd.f32 %v918, %v919
        %v921 = vrot.slane %v920, 2
        %v922 = vadd.f32 %v920, %v921
        %v923 = vrot.slane %v922, 1
        %v924 = vadd.f32 %v922, %v923
        %925 = vst [vmem:[%s282] sm:$0x1] %v924
        %v926 = vmul.f32 %v914, %v914
        %v927 = vmul.f32 %v916, %v916
        %v928 = vadd.f32 %v926, %v927
        %v929 = vrot.slane %v928, 4
        %v930 = vadd.f32 %v928, %v929
        %v931 = vrot.slane %v930, 2
        %v932 = vadd.f32 %v930, %v931
        %v933 = vrot.slane %v932, 1
        %v934 = vadd.f32 %v932, %v933
        %935 = vst [vmem:[%s285] sm:$0x1] %v934
        %v938 = vrot.slane %v914, 4
        %v939 = vrot.slane %v916, 4
        %v942 = vpack.c.bf16 %v914, %v914
        %v943 = vpack.c.bf16 %v938, %v938
        %v944 = vpack.c.bf16 %v916, %v916
        %v945 = vpack.c.bf16 %v939, %v939
        %vm946 = vcmask 517120
        %947 = vst.msk [vmem:[%s279] sm:$0x3] %vm946, %v942
        %948 = vst.msk [vmem:[%s279 + $0x4] sm:$0x3] %vm946, %v943
        %949 = vst.msk [vmem:[%s279 + $0x8] sm:$0x3] %vm946, %v944
        %950 = vst.msk [vmem:[%s279 + $0xc] sm:$0x3] %vm946, %v945
        %v955 = vrot.slane %v942, 2
        %v956 = vrot.slane %v943, 2
        %v957 = vrot.slane %v944, 2
        %v958 = vrot.slane %v945, 2
        %vm959 = vcmask 1041408
        %v962 = vsel %vm959, %v942, %v955
        %v966 = vsel %vm959, %v943, %v956
        %v970 = vsel %vm959, %v944, %v957
        %v974 = vsel %vm959, %v945, %v958
        %976 = vrot.lane.b32.xlu0 %v962, 64
        %v977 = vpop.permute.xlu0 %976
        %978 = vrot.lane.b32.xlu0 %v966, 64
        %v979 = vpop.permute.xlu0 %978
        %980 = vrot.lane.b32.xlu0 %v970, 64
        %v981 = vpop.permute.xlu0 %980
        %982 = vrot.lane.b32.xlu0 %v974, 64
        %v983 = vpop.permute.xlu0 %982
        %s988 = scalar_lea.vmem %s279, 2
        %989 = vst.msk [vmem:[%s988] sm:$0x3] %vm946, %v977
        %990 = vst.msk [vmem:[%s988 + $0x4] sm:$0x3] %vm946, %v979
        %991 = vst.msk [vmem:[%s988 + $0x8] sm:$0x3] %vm946, %v981
        %992 = vst.msk [vmem:[%s988 + $0xc] sm:$0x3] %vm946, %v983
        %p993 = scmp.lt.s32.totalorder %s19, 3
        %s994 = scalar_select %p993, %s19, 3
        %s995 = smul.addr %s994, 8
        %s996 = smul.addr %s995, 2
        %s997 = scalar_lea.vmem %s4, %s996
        %p998 = scmp.lt.s32.totalorder %s19, 3
        %s999 = scalar_select %p998, %s19, 3
        %s1000 = scalar_lea.vmem %s5, %s999
        %p1001 = scmp.lt.s32.totalorder %s19, 3
        %s1002 = scalar_select %p1001, %s19, 3
        %s1003 = scalar_lea.vmem %s6, %s1002
        // Predicated region
        $region41: #{_lambda_.5} parent=35 // pred_check
          %p1004 = pneg %p126
        $region42: #{_lambda_.5} parent=35 // pred_check_branch
          %1006 = sbr.rel (%p1004) target = $region44
        $region43: #{_lambda_.5} parent=35 // pred_region
          _
        $region44: #{_lambda_.5} parent=35 // pred_fallthru
          _
        // Predicated region
        $region45: #{_lambda_.5} parent=35 // pred_check
          %p1007 = pneg %p152
        $region46: #{_lambda_.5} parent=35 // pred_check_branch
          %1009 = sbr.rel (%p1007) target = $region48
        $region47: #{_lambda_.5} parent=35 // pred_region
          _
        $region48: #{_lambda_.5} parent=35 // pred_fallthru
          _
        // Predicated region
        $region49: #{_lambda_.5} parent=35 // pred_check
          %p1010 = pneg %p178
        $region50: #{_lambda_.5} parent=35 // pred_check_branch
          %1012 = sbr.rel (%p1010) target = $region52
        $region51: #{_lambda_.5} parent=35 // pred_region
          _
        $region52: #{_lambda_.5} parent=35 // pred_fallthru
          _
      $region36: #{_lambda_.5} parent=5 // pred_fallthru
        _
      %p1013 = scmp.le.s32.totalorder 2, %s14
      // Predicated region
      $region53: #{_lambda_.5} parent=5 // pred_check
        %p1014 = pneg %p1013
      $region54: #{_lambda_.5} parent=5 // pred_check_branch
        %1016 = sbr.rel (%p1014) target = $region56
      $region55: #{_lambda_.5} parent=5 // pred_region
        %s1017 = ssub.s32 %s14, 2
        // Predicated region
        $region57: #{_lambda_.5} parent=55 // pred_check
          %p1018 = pneg %p132
        $region58: #{_lambda_.5} parent=55 // pred_check_branch
          %1020 = sbr.rel (%p1018) target = $region60
        $region59: #{_lambda_.5} parent=55 // pred_region
          %p1021 = scmp.lt.s32.totalorder %s20, 3
          %s1022 = scalar_select %p1021, %s20, 3
          %s1023 = smul.addr %s1022, 8
          %s1024 = smul.addr %s1023, 2
          %s1025 = scalar_lea.vmem %s4, %s1024
        $region60: #{_lambda_.5} parent=55 // pred_fallthru
          _
        // Predicated region
        $region61: #{_lambda_.5} parent=55 // pred_check
          %p1026 = pneg %p158
        $region62: #{_lambda_.5} parent=55 // pred_check_branch
          %1028 = sbr.rel (%p1026) target = $region64
        $region63: #{_lambda_.5} parent=55 // pred_region
          %p1029 = scmp.lt.s32.totalorder %s20, 3
          %s1030 = scalar_select %p1029, %s20, 3
          %s1031 = scalar_lea.vmem %s5, %s1030
        $region64: #{_lambda_.5} parent=55 // pred_fallthru
          _
        // Predicated region
        $region65: #{_lambda_.5} parent=55 // pred_check
          %p1032 = pneg %p184
        $region66: #{_lambda_.5} parent=55 // pred_check_branch
          %1034 = sbr.rel (%p1032) target = $region68
        $region67: #{_lambda_.5} parent=55 // pred_region
          %p1035 = scmp.lt.s32.totalorder %s20, 3
          %s1036 = scalar_select %p1035, %s20, 3
          %s1037 = scalar_lea.vmem %s6, %s1036
        $region68: #{_lambda_.5} parent=55 // pred_fallthru
          _
      $region56: #{_lambda_.5} parent=5 // pred_fallthru
        _
    $region6: #{_lambda_.5} parent=1 // loop_footer
      %s18 = sadd.s32 1, %s14
    $region7: #{_lambda_.5} parent=1 // loop_footer_branch
      %13 = sbr.rel target = $region3
    $region8: #{_lambda_.5} parent=1 // loop_exit
      _
    %1038 = vsyncpa [#allocation3], 1
    %s1039 = scalar_lea.sflag [#allocation3], 1
    %1040 = vsyncpa %s1039, 1

// kernel: _lambda_.4
$region0: #{_lambda_.4}
  #allocation0 [shape = 'u32[]', space=smem, size = 0x4, offset = 0x4, fixed_abs, tag = 'smem constant byte address 0x4 - core index']
  #allocation1 [shape = 'u32[72,128]{1,0:T(1,128)}', space=vmem, size = 0x9000, scoped, tag = 'internal scratch']
  %s0 = inlined_call_operand.vmem [shape: f32[4,32], index: 0, kind: input, shape index: {}]
  %s1 = inlined_call_operand.hbm [shape: bf16[32,1024], index: 1, kind: input, shape index: {}]
  %s2 = inlined_call_operand.vmem [shape: bf16[4,1024], index: 2, kind: output, shape index: {0}]
  %s3 = inlined_call_operand.vmem [shape: f32[1,1024], index: 3, kind: output, shape index: {1}]
  %s4 = inlined_call_operand.vmem [shape: f32[1,1024], index: 4, kind: output, shape index: {2}]
  %5 = xla_tuple %s2, %s3, %s4
  %s6 = sld [smem:[#allocation0]]
  $region38: #{_lambda_.4} parent=0
    _
  %s8 = ssub.s32 1, %s6
  %s9 = scalar_select 0, %s8, %s6
  $region1: #{_lambda_.4} parent=0
    #allocation2 [shape = 'u8[65536]{0}', space=vmem, size = 0x10000, scoped, tag = 'input window, operand 1, single buffered']
    #allocation3 [shape = 's32[1]{0}', space=sflag, size = 0x4, scoped, tag = 'scoped memory for _lambda_.4']
    %10 = vsyncpa [#allocation3], 0
    // Predicated region
    $region2: #{_lambda_.4} parent=1 // pred_check
      _
    $region3: #{_lambda_.4} parent=1 // pred_check_branch
      %12 = sbr.rel (0) target = $region5
    $region4: #{_lambda_.4} parent=1 // pred_region
      _
    $region5: #{_lambda_.4} parent=1 // pred_fallthru
      _
    // Predicated region
    $region6: #{_lambda_.4} parent=1 // pred_check
      _
    $region7: #{_lambda_.4} parent=1 // pred_check_branch
      %14 = sbr.rel (0) target = $region9
    $region8: #{_lambda_.4} parent=1 // pred_region
      %16 = vsyncadd [#allocation3], 0
      %s17 = sshll.u32 %s1, 4
      %s18 = int_to_ptr.hbm [resolvable:$true] %s17
      %s19 = sshll.u32 [#allocation2], 4
      %s20 = int_to_ptr.vmem [resolvable:$true] %s19
      %25 = dma.hbm_to_vmem [thread:$0]  %s18, 2048, %s20, [#allocation3], 512, 512, 32
    $region9: #{_lambda_.4} parent=1 // pred_fallthru
      _
    // Predicated region
    $region10: #{_lambda_.4} parent=1 // pred_check
      _
    $region11: #{_lambda_.4} parent=1 // pred_check_branch
      %27 = sbr.rel (0) target = $region13
    $region12: #{_lambda_.4} parent=1 // pred_region
      %29 = dma.done [#allocation3], 2048
    $region13: #{_lambda_.4} parent=1 // pred_fallthru
      _
    %v31 = vld [vmem:[%s0] sm:$0xf]
    %v32 = vpack.c.bf16 %v31, %v31
    %v33 = vld [vmem:[#allocation2] sm:$0xff]
    %v34 = vld [vmem:[#allocation2 + $0x8] sm:$0xff]
    %v35 = vld [vmem:[#allocation2 + $0x10] sm:$0xff]
    %v36 = vld [vmem:[#allocation2 + $0x18] sm:$0xff]
    %v37 = vld [vmem:[#allocation2 + $0x20] sm:$0xff]
    %v38 = vld [vmem:[#allocation2 + $0x28] sm:$0xff]
    %v39 = vld [vmem:[#allocation2 + $0x30] sm:$0xff]
    %v40 = vld [vmem:[#allocation2 + $0x38] sm:$0xff]
    %v41 = vld [vmem:[#allocation2 + $0x40] sm:$0xff]
    %v42 = vld [vmem:[#allocation2 + $0x48] sm:$0xff]
    %v43 = vld [vmem:[#allocation2 + $0x50] sm:$0xff]
    %v44 = vld [vmem:[#allocation2 + $0x58] sm:$0xff]
    %v45 = vld [vmem:[#allocation2 + $0x60] sm:$0xff]
    %v46 = vld [vmem:[#allocation2 + $0x68] sm:$0xff]
    %v47 = vld [vmem:[#allocation2 + $0x70] sm:$0xff]
    %v48 = vld [vmem:[#allocation2 + $0x78] sm:$0xff]
    %v65 = vunpack.c.l.b16 %v33
    %v66 = vunpack.c.h.b16 %v33
    %v67 = vunpack.c.l.b16 %v34
    %v68 = vunpack.c.h.b16 %v34
    %v69 = vunpack.c.l.b16 %v35
    %v70 = vunpack.c.h.b16 %v35
    %v71 = vunpack.c.l.b16 %v36
    %v72 = vunpack.c.h.b16 %v36
    %v73 = vunpack.c.l.b16 %v37
    %v74 = vunpack.c.h.b16 %v37
    %v75 = vunpack.c.l.b16 %v38
    %v76 = vunpack.c.h.b16 %v38
    %v77 = vunpack.c.l.b16 %v39
    %v78 = vunpack.c.h.b16 %v39
    %v79 = vunpack.c.l.b16 %v40
    %v80 = vunpack.c.h.b16 %v40
    %v81 = vunpack.c.l.b16 %v41
    %v82 = vunpack.c.h.b16 %v41
    %v83 = vunpack.c.l.b16 %v42
    %v84 = vunpack.c.h.b16 %v42
    %v85 = vunpack.c.l.b16 %v43
    %v86 = vunpack.c.h.b16 %v43
    %v87 = vunpack.c.l.b16 %v44
    %v88 = vunpack.c.h.b16 %v44
    %v89 = vunpack.c.l.b16 %v45
    %v90 = vunpack.c.h.b16 %v45
    %v91 = vunpack.c.l.b16 %v46
    %v92 = vunpack.c.h.b16 %v46
    %v93 = vunpack.c.l.b16 %v47
    %v94 = vunpack.c.h.b16 %v47
    %v95 = vunpack.c.l.b16 %v48
    %v96 = vunpack.c.h.b16 %v48
    %v97 = vpack.c.b16 %v73, %v65
    %v98 = vpack.c.b16 %v74, %v66
    %v99 = vpack.c.b16 %v75, %v67
    %v100 = vpack.c.b16 %v76, %v68
    %v101 = vpack.c.b16 %v77, %v69
    %v102 = vpack.c.b16 %v78, %v70
    %v103 = vpack.c.b16 %v79, %v71
    %v104 = vpack.c.b16 %v80, %v72
    %v105 = vpack.c.b16 %v89, %v81
    %v106 = vpack.c.b16 %v90, %v82
    %v107 = vpack.c.b16 %v91, %v83
    %v108 = vpack.c.b16 %v92, %v84
    %v109 = vpack.c.b16 %v93, %v85
    %v110 = vpack.c.b16 %v94, %v86
    %v111 = vpack.c.b16 %v95, %v87
    %v112 = vpack.c.b16 %v96, %v88
    %vm129 = vcmask 261120
    %v131 = vsel %vm129, %v32, 0
    %133 = vmatpush.bf16.msra.mxu0 0
    %134 = vmatpush.bf16.msra.mxu0 0
    %135 = vmatpush.bf16.msra.mxu0 0
    %136 = vmatpush.bf16.msra.mxu0 0
    %137 = vmatpush.bf16.msra.mxu0 0
    %138 = vmatpush.bf16.msra.mxu0 0
    %139 = vmatpush.bf16.msra.mxu0 %v105
    %140 = vmatpush.bf16.msra.mxu0 %v97
    %141 = vmatmul.bf16.gmra.mxu0 %v131
    %v142 = vpop.f32.mrf.mxu0
    %v143 = vadd.f32 0.0, %v142
    %v144 = vpop.f32.mrf.mxu0
    %145 = vdwg.mxu0
    %146 = vmatpush.bf16.msra.mxu0 0
    %147 = vmatpush.bf16.msra.mxu0 0
    %148 = vmatpush.bf16.msra.mxu0 0
    %149 = vmatpush.bf16.msra.mxu0 0
    %150 = vmatpush.bf16.msra.mxu0 0
    %151 = vmatpush.bf16.msra.mxu0 0
    %152 = vmatpush.bf16.msra.mxu0 %v106
    %153 = vmatpush.bf16.msra.mxu0 %v98
    %154 = vmatmul.bf16.gmra.mxu0 %v131
    %v155 = vpop.f32.mrf.mxu0
    %v156 = vadd.f32 0.0, %v155
    %v157 = vpop.f32.mrf.mxu0
    %158 = vdwg.mxu0
    %159 = vmatpush.bf16.msra.mxu0 0
    %160 = vmatpush.bf16.msra.mxu0 0
    %161 = vmatpush.bf16.msra.mxu0 0
    %162 = vmatpush.bf16.msra.mxu0 0
    %163 = vmatpush.bf16.msra.mxu0 0
    %164 = vmatpush.bf16.msra.mxu0 0
    %165 = vmatpush.bf16.msra.mxu0 %v107
    %166 = vmatpush.bf16.msra.mxu0 %v99
    %167 = vmatmul.bf16.gmra.mxu0 %v131
    %v168 = vpop.f32.mrf.mxu0
    %v169 = vadd.f32 0.0, %v168
    %v170 = vpop.f32.mrf.mxu0
    %171 = vdwg.mxu0
    %172 = vmatpush.bf16.msra.mxu0 0
    %173 = vmatpush.bf16.msra.mxu0 0
    %174 = vmatpush.bf16.msra.mxu0 0
    %175 = vmatpush.bf16.msra.mxu0 0
    %176 = vmatpush.bf16.msra.mxu0 0
    %177 = vmatpush.bf16.msra.mxu0 0
    %178 = vmatpush.bf16.msra.mxu0 %v108
    %179 = vmatpush.bf16.msra.mxu0 %v100
    %180 = vmatmul.bf16.gmra.mxu0 %v131
    %v181 = vpop.f32.mrf.mxu0
    %v182 = vadd.f32 0.0, %v181
    %v183 = vpop.f32.mrf.mxu0
    %184 = vdwg.mxu0
    %185 = vmatpush.bf16.msra.mxu0 0
    %186 = vmatpush.bf16.msra.mxu0 0
    %187 = vmatpush.bf16.msra.mxu0 0
    %188 = vmatpush.bf16.msra.mxu0 0
    %189 = vmatpush.bf16.msra.mxu0 0
    %190 = vmatpush.bf16.msra.mxu0 0
    %191 = vmatpush.bf16.msra.mxu0 %v109
    %192 = vmatpush.bf16.msra.mxu0 %v101
    %193 = vmatmul.bf16.gmra.mxu0 %v131
    %v194 = vpop.f32.mrf.mxu0
    %v195 = vadd.f32 0.0, %v194
    %v196 = vpop.f32.mrf.mxu0
    %197 = vdwg.mxu0
    %198 = vmatpush.bf16.msra.mxu0 0
    %199 = vmatpush.bf16.msra.mxu0 0
    %200 = vmatpush.bf16.msra.mxu0 0
    %201 = vmatpush.bf16.msra.mxu0 0
    %202 = vmatpush.bf16.msra.mxu0 0
    %203 = vmatpush.bf16.msra.mxu0 0
    %204 = vmatpush.bf16.msra.mxu0 %v110
    %205 = vmatpush.bf16.msra.mxu0 %v102
    %206 = vmatmul.bf16.gmra.mxu0 %v131
    %v207 = vpop.f32.mrf.mxu0
    %v208 = vadd.f32 0.0, %v207
    %v209 = vpop.f32.mrf.mxu0
    %210 = vdwg.mxu0
    %211 = vmatpush.bf16.msra.mxu0 0
    %212 = vmatpush.bf16.msra.mxu0 0
    %213 = vmatpush.bf16.msra.mxu0 0
    %214 = vmatpush.bf16.msra.mxu0 0
    %215 = vmatpush.bf16.msra.mxu0 0
    %216 = vmatpush.bf16.msra.mxu0 0
    %217 = vmatpush.bf16.msra.mxu0 %v111
    %218 = vmatpush.bf16.msra.mxu0 %v103
    %219 = vmatmul.bf16.gmra.mxu0 %v131
    %v220 = vpop.f32.mrf.mxu0
    %v221 = vadd.f32 0.0, %v220
    %v222 = vpop.f32.mrf.mxu0
    %223 = vdwg.mxu0
    %224 = vmatpush.bf16.msra.mxu0 0
    %225 = vmatpush.bf16.msra.mxu0 0
    %226 = vmatpush.bf16.msra.mxu0 0
    %227 = vmatpush.bf16.msra.mxu0 0
    %228 = vmatpush.bf16.msra.mxu0 0
    %229 = vmatpush.bf16.msra.mxu0 0
    %230 = vmatpush.bf16.msra.mxu0 %v112
    %231 = vmatpush.bf16.msra.mxu0 %v104
    %232 = vmatmul.bf16.gmra.mxu0 %v131
    %v233 = vpop.f32.mrf.mxu0
    %v234 = vadd.f32 0.0, %v233
    %v235 = vpop.f32.mrf.mxu0
    %236 = vdwg.mxu0
    %vm237 = vcmask 1043456
    %v238 = vsel %vm237, %v143, 0.0
    %v239 = vrot.slane %v238, 4
    %v240 = vadd.f32 %v238, %v239
    %v241 = vrot.slane %v240, 2
    %v242 = vadd.f32 %v240, %v241
    %v243 = vrot.slane %v242, 1
    %v244 = vadd.f32 %v242, %v243
    %v245 = vsel %vm237, %v156, 0.0
    %v246 = vrot.slane %v245, 4
    %v247 = vadd.f32 %v245, %v246
    %v248 = vrot.slane %v247, 2
    %v249 = vadd.f32 %v247, %v248
    %v250 = vrot.slane %v249, 1
    %v251 = vadd.f32 %v249, %v250
    %v252 = vsel %vm237, %v169, 0.0
    %v253 = vrot.slane %v252, 4
    %v254 = vadd.f32 %v252, %v253
    %v255 = vrot.slane %v254, 2
    %v256 = vadd.f32 %v254, %v255
    %v257 = vrot.slane %v256, 1
    %v258 = vadd.f32 %v256, %v257
    %v259 = vsel %vm237, %v182, 0.0
    %v260 = vrot.slane %v259, 4
    %v261 = vadd.f32 %v259, %v260
    %v262 = vrot.slane %v261, 2
    %v263 = vadd.f32 %v261, %v262
    %v264 = vrot.slane %v263, 1
    %v265 = vadd.f32 %v263, %v264
    %v266 = vsel %vm237, %v195, 0.0
    %v267 = vrot.slane %v266, 4
    %v268 = vadd.f32 %v266, %v267
    %v269 = vrot.slane %v268, 2
    %v270 = vadd.f32 %v268, %v269
    %v271 = vrot.slane %v270, 1
    %v272 = vadd.f32 %v270, %v271
    %v273 = vsel %vm237, %v208, 0.0
    %v274 = vrot.slane %v273, 4
    %v275 = vadd.f32 %v273, %v274
    %v276 = vrot.slane %v275, 2
    %v277 = vadd.f32 %v275, %v276
    %v278 = vrot.slane %v277, 1
    %v279 = vadd.f32 %v277, %v278
    %v280 = vsel %vm237, %v221, 0.0
    %v281 = vrot.slane %v280, 4
    %v282 = vadd.f32 %v280, %v281
    %v283 = vrot.slane %v282, 2
    %v284 = vadd.f32 %v282, %v283
    %v285 = vrot.slane %v284, 1
    %v286 = vadd.f32 %v284, %v285
    %v287 = vsel %vm237, %v234, 0.0
    %v288 = vrot.slane %v287, 4
    %v289 = vadd.f32 %v287, %v288
    %v290 = vrot.slane %v289, 2
    %v291 = vadd.f32 %v289, %v290
    %v292 = vrot.slane %v291, 1
    %v293 = vadd.f32 %v291, %v292
    %v302 = vrot.slane %v251, 7
    %v303 = vrot.slane %v258, 6
    %v304 = vrot.slane %v265, 5
    %v305 = vrot.slane %v272, 4
    %v306 = vrot.slane %v279, 3
    %v307 = vrot.slane %v286, 2
    %v308 = vrot.slane %v293, 1
    %vm309 = vcmask 1040384
    %v310 = vsel %vm309, %v244, %v302
    %vm311 = vcmask 1042434
    %v312 = vsel %vm311, %v303, %v304
    %vm313 = vcmask 1041408
    %v314 = vsel %vm313, %v310, %v312
    %vm315 = vcmask 1044484
    %v316 = vsel %vm315, %v305, %v306
    %vm317 = vcmask 1046534
    %v318 = vsel %vm317, %v307, %v308
    %vm319 = vcmask 1045508
    %v320 = vsel %vm319, %v316, %v318
    %v321 = vsel %vm237, %v314, %v320
    %323 = vst [vmem:[%s3] sm:$0xff] %v321
    %v324 = vmul.f32 %v143, %v143
    %v325 = vmul.f32 %v156, %v156
    %v326 = vmul.f32 %v169, %v169
    %v327 = vmul.f32 %v182, %v182
    %v328 = vmul.f32 %v195, %v195
    %v329 = vmul.f32 %v208, %v208
    %v330 = vmul.f32 %v221, %v221
    %v331 = vmul.f32 %v234, %v234
    %v332 = vsel %vm237, %v324, 0.0
    %v333 = vrot.slane %v332, 4
    %v334 = vadd.f32 %v332, %v333
    %v335 = vrot.slane %v334, 2
    %v336 = vadd.f32 %v334, %v335
    %v337 = vrot.slane %v336, 1
    %v338 = vadd.f32 %v336, %v337
    %v339 = vsel %vm237, %v325, 0.0
    %v340 = vrot.slane %v339, 4
    %v341 = vadd.f32 %v339, %v340
    %v342 = vrot.slane %v341, 2
    %v343 = vadd.f32 %v341, %v342
    %v344 = vrot.slane %v343, 1
    %v345 = vadd.f32 %v343, %v344
    %v346 = vsel %vm237, %v326, 0.0
    %v347 = vrot.slane %v346, 4
    %v348 = vadd.f32 %v346, %v347
    %v349 = vrot.slane %v348, 2
    %v350 = vadd.f32 %v348, %v349
    %v351 = vrot.slane %v350, 1
    %v352 = vadd.f32 %v350, %v351
    %v353 = vsel %vm237, %v327, 0.0
    %v354 = vrot.slane %v353, 4
    %v355 = vadd.f32 %v353, %v354
    %v356 = vrot.slane %v355, 2
    %v357 = vadd.f32 %v355, %v356
    %v358 = vrot.slane %v357, 1
    %v359 = vadd.f32 %v357, %v358
    %v360 = vsel %vm237, %v328, 0.0
    %v361 = vrot.slane %v360, 4
    %v362 = vadd.f32 %v360, %v361
    %v363 = vrot.slane %v362, 2
    %v364 = vadd.f32 %v362, %v363
    %v365 = vrot.slane %v364, 1
    %v366 = vadd.f32 %v364, %v365
    %v367 = vsel %vm237, %v329, 0.0
    %v368 = vrot.slane %v367, 4
    %v369 = vadd.f32 %v367, %v368
    %v370 = vrot.slane %v369, 2
    %v371 = vadd.f32 %v369, %v370
    %v372 = vrot.slane %v371, 1
    %v373 = vadd.f32 %v371, %v372
    %v374 = vsel %vm237, %v330, 0.0
    %v375 = vrot.slane %v374, 4
    %v376 = vadd.f32 %v374, %v375
    %v377 = vrot.slane %v376, 2
    %v378 = vadd.f32 %v376, %v377
    %v379 = vrot.slane %v378, 1
    %v380 = vadd.f32 %v378, %v379
    %v381 = vsel %vm237, %v331, 0.0
    %v382 = vrot.slane %v381, 4
    %v383 = vadd.f32 %v381, %v382
    %v384 = vrot.slane %v383, 2
    %v385 = vadd.f32 %v383, %v384
    %v386 = vrot.slane %v385, 1
    %v387 = vadd.f32 %v385, %v386
    %v396 = vrot.slane %v345, 7
    %v397 = vrot.slane %v352, 6
    %v398 = vrot.slane %v359, 5
    %v399 = vrot.slane %v366, 4
    %v400 = vrot.slane %v373, 3
    %v401 = vrot.slane %v380, 2
    %v402 = vrot.slane %v387, 1
    %v403 = vsel %vm309, %v338, %v396
    %v404 = vsel %vm311, %v397, %v398
    %v405 = vsel %vm313, %v403, %v404
    %v406 = vsel %vm315, %v399, %v400
    %v407 = vsel %vm317, %v401, %v402
    %v408 = vsel %vm319, %v406, %v407
    %v409 = vsel %vm237, %v405, %v408
    %411 = vst [vmem:[%s4] sm:$0xff] %v409
    %v412 = vpack.c.bf16 %v156, %v143
    %v413 = vpack.c.bf16 %v182, %v169
    %v414 = vpack.c.bf16 %v208, %v195
    %v415 = vpack.c.bf16 %v234, %v221
    %v420 = vrot.slane %v412, 2
    %v421 = vrot.slane %v413, 4
    %v422 = vrot.slane %v413, 6
    %v423 = vrot.slane %v414, 2
    %v424 = vrot.slane %v415, 4
    %v425 = vrot.slane %v415, 6
    %v428 = vsel %vm313, %v412, %v420
    %v431 = vsel %vm319, %v421, %v422
    %v432 = vsel %vm237, %v428, %v431
    %v435 = vsel %vm313, %v414, %v423
    %v438 = vsel %vm319, %v424, %v425
    %v439 = vsel %vm237, %v435, %v438
    %442 = vst [vmem:[%s2] sm:$0xff] %v432
    %443 = vst [vmem:[%s2 + $0x8] sm:$0xff] %v439
    // Predicated region
    $region14: #{_lambda_.4} parent=1 // pred_check
      _
    $region15: #{_lambda_.4} parent=1 // pred_check_branch
      %445 = sbr.rel (0) target = $region17
    $region16: #{_lambda_.4} parent=1 // pred_region
      _
    $region17: #{_lambda_.4} parent=1 // pred_fallthru
      _
    // Predicated region
    $region18: #{_lambda_.4} parent=1 // pred_check
      _
    $region19: #{_lambda_.4} parent=1 // pred_check_branch
      %447 = sbr.rel (0) target = $region21
    $region20: #{_lambda_.4} parent=1 // pred_region
      _
    $region21: #{_lambda_.4} parent=1 // pred_fallthru
      _
    // Predicated region
    $region22: #{_lambda_.4} parent=1 // pred_check
      _
    $region23: #{_lambda_.4} parent=1 // pred_check_branch
      %449 = sbr.rel (0) target = $region25
    $region24: #{_lambda_.4} parent=1 // pred_region
      _
    $region25: #{_lambda_.4} parent=1 // pred_fallthru
      _
    // Predicated region
    $region26: #{_lambda_.4} parent=1 // pred_check
      _
    $region27: #{_lambda_.4} parent=1 // pred_check_branch
      %451 = sbr.rel (0) target = $region29
    $region28: #{_lambda_.4} parent=1 // pred_region
      _
    $region29: #{_lambda_.4} parent=1 // pred_fallthru
      _
    // Predicated region
    $region30: #{_lambda_.4} parent=1 // pred_check
      _
    $region31: #{_lambda_.4} parent=1 // pred_check_branch
      %453 = sbr.rel (0) target = $region33
    $region32: #{_lambda_.4} parent=1 // pred_region
      _
    $region33: #{_lambda_.4} parent=1 // pred_fallthru
      _
    // Predicated region
    $region34: #{_lambda_.4} parent=1 // pred_check
      _
    $region35: #{_lambda_.4} parent=1 // pred_check_branch
      %455 = sbr.rel (0) target = $region37
    $region36: #{_lambda_.4} parent=1 // pred_region
      _
    $region37: #{_lambda_.4} parent=1 // pred_fallthru
      _
    %456 = vsyncpa [#allocation3], 1

// kernel: _lambda_.6
$region0: #{_lambda_.6}
  #allocation0 [shape = 'u32[]', space=smem, size = 0x4, offset = 0x4, fixed_abs, tag = 'smem constant byte address 0x4 - core index']
  #allocation1 [shape = 'u32[72,128]{1,0:T(1,128)}', space=vmem, size = 0x9000, scoped, tag = 'internal scratch']
  %s0 = inlined_call_operand.vmem [shape: bf16[4,64,32], index: 0, kind: input, shape index: {}]
  %s1 = inlined_call_operand.hbm [shape: bf16[384,128], index: 1, kind: input, shape index: {}]
  %s2 = inlined_call_operand.vmem [shape: f32[1,32], index: 2, kind: input, shape index: {}]
  %s3 = inlined_call_operand.vmem [shape: f32[1,32], index: 3, kind: input, shape index: {}]
  %s4 = inlined_call_operand.vmem [shape: bf16[4,8,2,8,64], index: 4, kind: output, shape index: {0}]
  %s5 = inlined_call_operand.vmem [shape: f32[4,1,128], index: 5, kind: output, shape index: {1}]
  %s6 = inlined_call_operand.vmem [shape: f32[4,1,128], index: 6, kind: output, shape index: {2}]
  %7 = xla_tuple %s4, %s5, %s6
  %s8 = sld [smem:[#allocation0]]
  $region69: #{_lambda_.6} parent=0
    _
  %s10 = ssub.s32 1, %s8
  %s11 = scalar_select 0, %s10, %s8
  $region1: #{_lambda_.6} parent=0
    #allocation2 [shape = 'u8[98304]{0}', space=vmem, size = 0x18000, scoped, tag = 'input window, operand 1, single buffered']
    #allocation3 [shape = 's32[2]{0}', space=sflag, size = 0x8, scoped, tag = 'scoped memory for _lambda_.6']
    %12 = vsyncpa [#allocation3], 0
    loop: start=0, step=1, limit=6
    $region2: #{_lambda_.6} parent=1 // loop_pre_header
      _
    $region3: #{_lambda_.6} parent=1 // loop_header
      %s14 = sphi 0, %s18
      %p15 = scmp.ge.s32.totalorder %s14, 6
      %s24 = sphi 0, %s26
      %s27 = sphi 0, %s24
      %s28 = sphi 0, %s27
      %s44 = sphi 0, %s28
      %s48 = sphi 0, %s48
      %s50 = sphi 0, %s48
      %s51 = sphi 0, %s50
      %s65 = sphi 0, %s51
      %s69 = sphi 0, %s69
      %s71 = sphi 0, %s69
      %s72 = sphi 0, %s71
      %s86 = sphi 0, %s72
      %s90 = sphi 0, %s90
      %s92 = sphi 0, %s90
      %s93 = sphi 0, %s92
      %s107 = sphi 0, %s93
      %s113 = sphi 0, %s115
      %s116 = sphi 0, %s113
      %s117 = sphi 0, %s116
      %s133 = sphi 0, %s117
      %s139 = sphi 0, %s141
      %s142 = sphi 0, %s139
      %s143 = sphi 0, %s142
      %s159 = sphi 0, %s143
      %s165 = sphi 0, %s167
      %s168 = sphi 0, %s165
      %s169 = sphi 0, %s168
      %s185 = sphi 0, %s169
    $region4: #{_lambda_.6} parent=1 // loop_header_branch
      %17 = sbr.rel (%p15) target = $region8
    $region5: #{_lambda_.6} parent=1 // loop_body
      %s19 = ssub.s32 %s14, 1
      %s20 = ssub.s32 %s14, 2
      %s21 = sadd.s32 %s14, 1
      %s22 = ssub.s32 %s14, %s21
      %p23 = scmp.eq.s32.totalorder %s22, 0
      %s25 = sadd.s32 %s24, 1
      %s26 = scalar_select %p23, %s24, %s25
      %p29 = pneg %p23
      %p30 = scmp.eq.s32.totalorder %s14, 3
      %p31 = por %p29, %p30
      %p32 = scmp.ne.s32.totalorder %s24, %s27
      %p33 = scmp.eq.s32.totalorder %s14, 0
      %p34 = por %p32, %p33
      %p35 = scmp.ne.s32.totalorder %s24, %s27
      %p36 = scmp.eq.s32.totalorder %s19, 3
      %p37 = por %p35, %p36
      %p38 = scmp.ne.s32.totalorder %s27, %s28
      %p39 = scmp.eq.s32.totalorder %s19, 0
      %p40 = por %p38, %p39
      %p41 = scmp.ne.s32.totalorder %s27, %s28
      %p42 = scmp.eq.s32.totalorder %s20, 3
      %p43 = por %p41, %p42
      %p45 = scmp.ne.s32.totalorder %s28, %s44
      %p46 = scmp.eq.s32.totalorder %s20, 0
      %p47 = por %p45, %p46
      %s49 = sadd.s32 %s48, 1
      %p52 = scmp.eq.s32.totalorder %s14, 3
      %p53 = scmp.ne.s32.totalorder %s48, %s50
      %p54 = scmp.eq.s32.totalorder %s14, 0
      %p55 = por %p53, %p54
      %p56 = scmp.ne.s32.totalorder %s48, %s50
      %p57 = scmp.eq.s32.totalorder %s19, 3
      %p58 = por %p56, %p57
      %p59 = scmp.ne.s32.totalorder %s50, %s51
      %p60 = scmp.eq.s32.totalorder %s19, 0
      %p61 = por %p59, %p60
      %p62 = scmp.ne.s32.totalorder %s50, %s51
      %p63 = scmp.eq.s32.totalorder %s20, 3
      %p64 = por %p62, %p63
      %p66 = scmp.ne.s32.totalorder %s51, %s65
      %p67 = scmp.eq.s32.totalorder %s20, 0
      %p68 = por %p66, %p67
      %s70 = sadd.s32 %s69, 1
      %p73 = scmp.eq.s32.totalorder %s14, 3
      %p74 = scmp.ne.s32.totalorder %s69, %s71
      %p75 = scmp.eq.s32.totalorder %s14, 0
      %p76 = por %p74, %p75
      %p77 = scmp.ne.s32.totalorder %s69, %s71
      %p78 = scmp.eq.s32.totalorder %s19, 3
      %p79 = por %p77, %p78
      %p80 = scmp.ne.s32.totalorder %s71, %s72
      %p81 = scmp.eq.s32.totalorder %s19, 0
      %p82 = por %p80, %p81
      %p83 = scmp.ne.s32.totalorder %s71, %s72
      %p84 = scmp.eq.s32.totalorder %s20, 3
      %p85 = por %p83, %p84
      %p87 = scmp.ne.s32.totalorder %s72, %s86
      %p88 = scmp.eq.s32.totalorder %s20, 0
      %p89 = por %p87, %p88
      %s91 = sadd.s32 %s90, 1
      %p94 = scmp.eq.s32.totalorder %s14, 3
      %p95 = scmp.ne.s32.totalorder %s90, %s92
      %p96 = scmp.eq.s32.totalorder %s14, 0
      %p97 = por %p95, %p96
      %p98 = scmp.ne.s32.totalorder %s90, %s92
      %p99 = scmp.eq.s32.totalorder %s19, 3
      %p100 = por %p98, %p99
      %p101 = scmp.ne.s32.totalorder %s92, %s93
      %p102 = scmp.eq.s32.totalorder %s19, 0
      %p103 = por %p101, %p102
      %p104 = scmp.ne.s32.totalorder %s92, %s93
      %p105 = scmp.eq.s32.totalorder %s20, 3
      %p106 = por %p104, %p105
      %p108 = scmp.ne.s32.totalorder %s93, %s107
      %p109 = scmp.eq.s32.totalorder %s20, 0
      %p110 = por %p108, %p109
      %s111 = ssub.s32 %s14, %s21
      %p112 = scmp.eq.s32.totalorder %s111, 0
      %s114 = sadd.s32 %s113, 1
      %s115 = scalar_select %p112, %s113, %s114
      %p118 = pneg %p112
      %p119 = scmp.eq.s32.totalorder %s14, 3
      %p120 = por %p118, %p119
      %p121 = scmp.ne.s32.totalorder %s113, %s116
      %p122 = scmp.eq.s32.totalorder %s14, 0
      %p123 = por %p121, %p122
      %p124 = scmp.ne.s32.totalorder %s113, %s116
      %p125 = scmp.eq.s32.totalorder %s19, 3
      %p126 = por %p124, %p125
      %p127 = scmp.ne.s32.totalorder %s116, %s117
      %p128 = scmp.eq.s32.totalorder %s19, 0
      %p129 = por %p127, %p128
      %p130 = scmp.ne.s32.totalorder %s116, %s117
      %p131 = scmp.eq.s32.totalorder %s20, 3
      %p132 = por %p130, %p131
      %p134 = scmp.ne.s32.totalorder %s117, %s133
      %p135 = scmp.eq.s32.totalorder %s20, 0
      %p136 = por %p134, %p135
      %s137 = ssub.s32 %s14, %s21
      %p138 = scmp.eq.s32.totalorder %s137, 0
      %s140 = sadd.s32 %s139, 1
      %s141 = scalar_select %p138, %s139, %s140
      %p144 = pneg %p138
      %p145 = scmp.eq.s32.totalorder %s14, 3
      %p146 = por %p144, %p145
      %p147 = scmp.ne.s32.totalorder %s139, %s142
      %p148 = scmp.eq.s32.totalorder %s14, 0
      %p149 = por %p147, %p148
      %p150 = scmp.ne.s32.totalorder %s139, %s142
      %p151 = scmp.eq.s32.totalorder %s19, 3
      %p152 = por %p150, %p151
      %p153 = scmp.ne.s32.totalorder %s142, %s143
      %p154 = scmp.eq.s32.totalorder %s19, 0
      %p155 = por %p153, %p154
      %p156 = scmp.ne.s32.totalorder %s142, %s143
      %p157 = scmp.eq.s32.totalorder %s20, 3
      %p158 = por %p156, %p157
      %p160 = scmp.ne.s32.totalorder %s143, %s159
      %p161 = scmp.eq.s32.totalorder %s20, 0
      %p162 = por %p160, %p161
      %s163 = ssub.s32 %s14, %s21
      %p164 = scmp.eq.s32.totalorder %s163, 0
      %s166 = sadd.s32 %s165, 1
      %s167 = scalar_select %p164, %s165, %s166
      %p170 = pneg %p164
      %p171 = scmp.eq.s32.totalorder %s14, 3
      %p172 = por %p170, %p171
      %p173 = scmp.ne.s32.totalorder %s165, %s168
      %p174 = scmp.eq.s32.totalorder %s14, 0
      %p175 = por %p173, %p174
      %p176 = scmp.ne.s32.totalorder %s165, %s168
      %p177 = scmp.eq.s32.totalorder %s19, 3
      %p178 = por %p176, %p177
      %p179 = scmp.ne.s32.totalorder %s168, %s169
      %p180 = scmp.eq.s32.totalorder %s19, 0
      %p181 = por %p179, %p180
      %p182 = scmp.ne.s32.totalorder %s168, %s169
      %p183 = scmp.eq.s32.totalorder %s20, 3
      %p184 = por %p182, %p183
      %p186 = scmp.ne.s32.totalorder %s169, %s185
      %p187 = scmp.eq.s32.totalorder %s20, 0
      %p188 = por %p186, %p187
      %p189 = scmp.le.s32.totalorder 1, %s14
      %p190 = scmp.lt.s32.totalorder %s14, 5
      %p191 = pnand %p189, %p190
      %p192 = pneg %p191
      // Predicated region
      $region9: #{_lambda_.6} parent=5 // pred_check
        _
      $region10: #{_lambda_.6} parent=5 // pred_check_branch
        %194 = sbr.rel (%p191) target = $region12
      $region11: #{_lambda_.6} parent=5 // pred_region
        %s195 = ssub.s32 %s14, 1
        // Predicated region
        $region13: #{_lambda_.6} parent=11 // pred_check
          %p196 = pneg %p61
        $region14: #{_lambda_.6} parent=11 // pred_check_branch
          %198 = sbr.rel (%p196) target = $region16
        $region15: #{_lambda_.6} parent=11 // pred_region
          %200 = vsyncadd [#allocation3], 0
          %s201 = sshll.u32 %s1, 4
          %s202 = int_to_ptr.hbm [resolvable:$true] %s201
          %s203 = sshll.u32 [#allocation2], 4
          %s204 = int_to_ptr.vmem [resolvable:$true] %s203
          %209 = dma.hbm_to_vmem [thread:$0]  %s202, 3072, %s204, [#allocation3], 64, 64, 4
        $region16: #{_lambda_.6} parent=11 // pred_fallthru
          _
        // Predicated region
        $region17: #{_lambda_.6} parent=11 // pred_check
          %p210 = pneg %p82
        $region18: #{_lambda_.6} parent=11 // pred_check_branch
          %212 = sbr.rel (%p210) target = $region20
        $region19: #{_lambda_.6} parent=11 // pred_region
          _
        $region20: #{_lambda_.6} parent=11 // pred_fallthru
          _
        // Predicated region
        $region21: #{_lambda_.6} parent=11 // pred_check
          %p213 = pneg %p103
        $region22: #{_lambda_.6} parent=11 // pred_check_branch
          %215 = sbr.rel (%p213) target = $region24
        $region23: #{_lambda_.6} parent=11 // pred_region
          _
        $region24: #{_lambda_.6} parent=11 // pred_fallthru
          _
      $region12: #{_lambda_.6} parent=5 // pred_fallthru
        _
      %p216 = scmp.lt.s32.totalorder %s14, 4
      // Predicated region
      $region25: #{_lambda_.6} parent=5 // pred_check
        %p217 = pneg %p216
      $region26: #{_lambda_.6} parent=5 // pred_check_branch
        %219 = sbr.rel (%p217) target = $region28
      $region27: #{_lambda_.6} parent=5 // pred_region
        // Predicated region
        $region29: #{_lambda_.6} parent=27 // pred_check
          %p220 = pneg %p34
        $region30: #{_lambda_.6} parent=27 // pred_check_branch
          %222 = sbr.rel (%p220) target = $region32
        $region31: #{_lambda_.6} parent=27 // pred_region
          %p223 = scmp.lt.s32.totalorder %s14, 3
          %s224 = scalar_select %p223, %s14, 3
          %s225 = smul.addr %s224, 8
          %s226 = smul.addr %s225, 4
          %s227 = scalar_lea.vmem %s0, %s226
        $region32: #{_lambda_.6} parent=27 // pred_fallthru
          _
      $region28: #{_lambda_.6} parent=5 // pred_fallthru
        _
      %p228 = scmp.le.s32.totalorder 1, %s14
      %p229 = scmp.lt.s32.totalorder %s14, 5
      %p230 = pnand %p228, %p229
      %p231 = pneg %p230
      // Predicated region
      $region33: #{_lambda_.6} parent=5 // pred_check
        _
      $region34: #{_lambda_.6} parent=5 // pred_check_branch
        %233 = sbr.rel (%p230) target = $region36
      $region35: #{_lambda_.6} parent=5 // pred_region
        %s234 = ssub.s32 %s14, 1
        // Predicated region
        $region37: #{_lambda_.6} parent=35 // pred_check
          %p235 = pneg %p61
        $region38: #{_lambda_.6} parent=35 // pred_check_branch
          %237 = sbr.rel (%p235) target = $region40
        $region39: #{_lambda_.6} parent=35 // pred_region
          %239 = dma.done [#allocation3], 3072
        $region40: #{_lambda_.6} parent=35 // pred_fallthru
          _
        %p240 = scmp.lt.s32.totalorder %s19, 3
        %s241 = scalar_select %p240, %s19, 3
        %s242 = smul.addr %s241, 8
        %s243 = smul.addr %s242, 4
        %s244 = scalar_lea.vmem %s0, %s243
        %p245 = pneg %p40
        %p246 = pneg %p37
        %p247 = pneg %p61
        %p248 = pneg %p58
        %p249 = pneg %p82
        %p250 = pneg %p79
        %p251 = pneg %p103
        %p252 = pneg %p100
        %p253 = pneg %p129
        %p254 = pneg %p126
        %p255 = scmp.lt.s32.totalorder %s19, 3
        %s256 = scalar_select %p255, %s19, 3
        %s257 = smul.addr %s256, 16
        %s258 = smul.addr %s257, 4
        %s259 = scalar_lea.vmem %s4, %s258
        %p260 = pneg %p155
        %p261 = pneg %p152
        %p262 = scmp.lt.s32.totalorder %s19, 3
        %s263 = scalar_select %p262, %s19, 3
        %s264 = scalar_lea.vmem %s5, %s263
        %p265 = pneg %p181
        %p266 = pneg %p178
        %p267 = scmp.lt.s32.totalorder %s19, 3
        %s268 = scalar_select %p267, %s19, 3
        %s269 = scalar_lea.vmem %s6, %s268
        %p270 = scmp.lt.s32.totalorder %s19, 3
        %s271 = scalar_select %p270, %s19, 3
        %s272 = smul.addr %s271, 8
        %s273 = smul.addr %s272, 4
        %s274 = scalar_lea.vmem %s0, %s273
        %p275 = scmp.lt.s32.totalorder %s19, 3
        %s276 = scalar_select %p275, %s19, 3
        %s277 = smul.addr %s276, 16
        %s278 = smul.addr %s277, 4
        %s279 = scalar_lea.vmem %s4, %s278
        %p280 = scmp.lt.s32.totalorder %s19, 3
        %s281 = scalar_select %p280, %s19, 3
        %s282 = scalar_lea.vmem %s5, %s281
        %p283 = scmp.lt.s32.totalorder %s19, 3
        %s284 = scalar_select %p283, %s19, 3
        %s285 = scalar_lea.vmem %s6, %s284
        %v289 = vld [vmem:[%s274] sm:$0xf]
        %v290 = vld [vmem:[%s274 + $0x4] sm:$0xf]
        %v291 = vld [vmem:[%s274 + $0x8] sm:$0xf]
        %v292 = vld [vmem:[%s274 + $0xc] sm:$0xf]
        %v293 = vld [vmem:[%s274 + $0x10] sm:$0xf]
        %v294 = vld [vmem:[%s274 + $0x14] sm:$0xf]
        %v295 = vld [vmem:[%s274 + $0x18] sm:$0xf]
        %v296 = vld [vmem:[%s274 + $0x1c] sm:$0xf]
        %v297 = vunpack.c.l.bf16 %v289
        %v298 = vunpack.c.l.bf16 %v290
        %v299 = vunpack.c.l.bf16 %v291
        %v300 = vunpack.c.l.bf16 %v292
        %v301 = vunpack.c.l.bf16 %v293
        %v302 = vunpack.c.l.bf16 %v294
        %v303 = vunpack.c.l.bf16 %v295
        %v304 = vunpack.c.l.bf16 %v296
        %v305 = vld [vmem:[%s2] sm:$0x1]
        %v307 = vperm.slane %v305, 0
        %v309 = vmul.f32 %v297, %v307
        %v310 = vmul.f32 %v298, %v307
        %v311 = vmul.f32 %v299, %v307
        %v312 = vmul.f32 %v300, %v307
        %v313 = vmul.f32 %v301, %v307
        %v314 = vmul.f32 %v302, %v307
        %v315 = vmul.f32 %v303, %v307
        %v316 = vmul.f32 %v304, %v307
        %v317 = vld [vmem:[%s3] sm:$0x1]
        %v319 = vperm.slane %v317, 0
        %v321 = vadd.f32 %v309, %v319
        %v322 = vadd.f32 %v310, %v319
        %v323 = vadd.f32 %v311, %v319
        %v324 = vadd.f32 %v312, %v319
        %v325 = vadd.f32 %v313, %v319
        %v326 = vadd.f32 %v314, %v319
        %v327 = vadd.f32 %v315, %v319
        %v328 = vadd.f32 %v316, %v319
        %v329 = vmax.f32 %v321, 0.0
        %v330 = vmax.f32 %v322, 0.0
        %v331 = vmax.f32 %v323, 0.0
        %v332 = vmax.f32 %v324, 0.0
        %v333 = vmax.f32 %v325, 0.0
        %v334 = vmax.f32 %v326, 0.0
        %v335 = vmax.f32 %v327, 0.0
        %v336 = vmax.f32 %v328, 0.0
        %v337 = vpack.c.bf16 %v329, %v329
        %v338 = vpack.c.bf16 %v330, %v330
        %v339 = vpack.c.bf16 %v331, %v331
        %v340 = vpack.c.bf16 %v332, %v332
        %v341 = vpack.c.bf16 %v333, %v333
        %v342 = vpack.c.bf16 %v334, %v334
        %v343 = vpack.c.bf16 %v335, %v335
        %v344 = vpack.c.bf16 %v336, %v336
        %v353 = vunpack.c.l.b16 %v337
        %v354 = vunpack.c.l.b16 %v338
        %v355 = vunpack.c.l.b16 %v339
        %v356 = vunpack.c.l.b16 %v340
        %v357 = vunpack.c.l.b16 %v341
        %v358 = vunpack.c.l.b16 %v342
        %v359 = vunpack.c.l.b16 %v343
        %v360 = vunpack.c.l.b16 %v344
        %v361 = vpack.c.b16 %v354, %v353
        %v362 = vpack.c.b16 %v356, %v355
        %v363 = vpack.c.b16 %v358, %v357
        %v364 = vpack.c.b16 %v360, %v359
        %vm365 = vsmask.f32 4352
        %v367 = vshrl.u32 %v361, 16
        %v369 = vrot.slane %v367, 3
        %v370 = vshll.u32 %v361, 16
        %v372 = vrot.slane %v370, 4
        %v373 = vor.u32 %v369, %v372
        %v375 = vshrl.u32 %v362, 16
        %v377 = vrot.slane %v375, 3
        %v378 = vshll.u32 %v362, 16
        %v380 = vrot.slane %v378, 4
        %v381 = vor.u32 %v377, %v380
        %v382 = vsel %vm365, %v373, %v381
        %v384 = vshrl.u32 %v363, 16
        %v386 = vrot.slane %v384, 3
        %v387 = vshll.u32 %v363, 16
        %v389 = vrot.slane %v387, 4
        %v390 = vor.u32 %v386, %v389
        %v391 = vsel %vm365, %v381, %v390
        %v393 = vshrl.u32 %v364, 16
        %v395 = vrot.slane %v393, 3
        %v396 = vshll.u32 %v364, 16
        %v398 = vrot.slane %v396, 4
        %v399 = vor.u32 %v395, %v398
        %v400 = vsel %vm365, %v390, %v399
        %vm406 = vcmask 1044480
        %vm407 = vmand %vm406, %vm365
        %v408 = vsel %vm407, 0, %v373
        %v409 = vsel %vm407, %v399, 0
        %v410 = vlaneseq
        %v411 = vshrl.u32 %v410, 7
        %v412 = vadd.s32 %v411, 8
        %v413 = vadd.s32 %v411, 16
        %v414 = vadd.s32 %v411, 24
        %v415 = vadd.s32 %v411, 32
        %v416 = vadd.s32 %v411, 40
        %v417 = vadd.s32 %v411, 48
        %v418 = vadd.s32 %v411, 56
        %vm419 = vcmp.lt.s32.totalorder %v411, 0
        %v420 = vsub.s32 0, %v411
        %v421 = vsel %vm419, %v420, %v411
        %v422 = vshrl.u32 %v421, 3
        %v423 = vand.u32 %v421, 7
        %v424 = vsub.s32 0, %v423
        %v425 = vsel %vm419, %v424, %v423
        %vm426 = vcmp.lt.s32.totalorder %v412, 0
        %v427 = vsub.s32 0, %v412
        %v428 = vsel %vm426, %v427, %v412
        %v429 = vshrl.u32 %v428, 3
        %v430 = vand.u32 %v428, 7
        %v431 = vsub.s32 0, %v430
        %v432 = vsel %vm426, %v431, %v430
        %vm433 = vcmp.lt.s32.totalorder %v413, 0
        %v434 = vsub.s32 0, %v413
        %v435 = vsel %vm433, %v434, %v413
        %v436 = vshrl.u32 %v435, 3
        %v437 = vand.u32 %v435, 7
        %v438 = vsub.s32 0, %v437
        %v439 = vsel %vm433, %v438, %v437
        %vm440 = vcmp.lt.s32.totalorder %v414, 0
        %v441 = vsub.s32 0, %v414
        %v442 = vsel %vm440, %v441, %v414
        %v443 = vshrl.u32 %v442, 3
        %v444 = vand.u32 %v442, 7
        %v445 = vsub.s32 0, %v444
        %v446 = vsel %vm440, %v445, %v444
        %vm447 = vcmp.lt.s32.totalorder %v415, 0
        %v448 = vsub.s32 0, %v415
        %v449 = vsel %vm447, %v448, %v415
        %v450 = vshrl.u32 %v449, 3
        %v451 = vand.u32 %v449, 7
        %v452 = vsub.s32 0, %v451
        %v453 = vsel %vm447, %v452, %v451
        %vm454 = vcmp.lt.s32.totalorder %v416, 0
        %v455 = vsub.s32 0, %v416
        %v456 = vsel %vm454, %v455, %v416
        %v457 = vshrl.u32 %v456, 3
        %v458 = vand.u32 %v456, 7
        %v459 = vsub.s32 0, %v458
        %v460 = vsel %vm454, %v459, %v458
        %vm461 = vcmp.lt.s32.totalorder %v417, 0
        %v462 = vsub.s32 0, %v417
        %v463 = vsel %vm461, %v462, %v417
        %v464 = vshrl.u32 %v463, 3
        %v465 = vand.u32 %v463, 7
        %v466 = vsub.s32 0, %v465
        %v467 = vsel %vm461, %v466, %v465
        %vm468 = vcmp.lt.s32.totalorder %v418, 0
        %v469 = vsub.s32 0, %v418
        %v470 = vsel %vm468, %v469, %v418
        %v471 = vshrl.u32 %v470, 3
        %v472 = vand.u32 %v470, 7
        %v473 = vsub.s32 0, %v472
        %v474 = vsel %vm468, %v473, %v472
        %vm475 = vcmp.ne.s32.totalorder %v425, 0
        %vm476 = vcmp.ne.s32.totalorder %v432, 0
        %vm477 = vcmp.ne.s32.totalorder %v439, 0
        %vm478 = vcmp.ne.s32.totalorder %v446, 0
        %vm479 = vcmp.ne.s32.totalorder %v453, 0
        %vm480 = vcmp.ne.s32.totalorder %v460, 0
        %vm481 = vcmp.ne.s32.totalorder %v467, 0
        %vm482 = vcmp.ne.s32.totalorder %v474, 0
        %vm483 = vcmp.lt.s32.totalorder %v425, 0
        %vm484 = vcmp.lt.s32.totalorder %v432, 0
        %vm485 = vcmp.lt.s32.totalorder %v439, 0
        %vm486 = vcmp.lt.s32.totalorder %v446, 0
        %vm487 = vcmp.lt.s32.totalorder %v453, 0
        %vm488 = vcmp.lt.s32.totalorder %v460, 0
        %vm489 = vcmp.lt.s32.totalorder %v467, 0
        %vm490 = vcmp.lt.s32.totalorder %v474, 0
        %vm491 = vmand %vm483, %vm475
        %vm492 = vmand %vm484, %vm476
        %vm493 = vmand %vm485, %vm477
        %vm494 = vmand %vm486, %vm478
        %vm495 = vmand %vm487, %vm479
        %vm496 = vmand %vm488, %vm480
        %vm497 = vmand %vm489, %vm481
        %vm498 = vmand %vm490, %vm482
        %v499 = vadd.s32 %v425, 8
        %v500 = vadd.s32 %v432, 8
        %v501 = vadd.s32 %v439, 8
        %v502 = vadd.s32 %v446, 8
        %v503 = vadd.s32 %v453, 8
        %v504 = vadd.s32 %v460, 8
        %v505 = vadd.s32 %v467, 8
        %v506 = vadd.s32 %v474, 8
        %v507 = vsel %vm491, %v499, %v425
        %v508 = vsel %vm492, %v500, %v432
        %v509 = vsel %vm493, %v501, %v439
        %v510 = vsel %vm494, %v502, %v446
        %v511 = vsel %vm495, %v503, %v453
        %v512 = vsel %vm496, %v504, %v460
        %v513 = vsel %vm497, %v505, %v467
        %v514 = vsel %vm498, %v506, %v474
        %vm515 = vcmp.ne.s32.totalorder %v507, 0
        %vm516 = vcmp.ne.s32.totalorder %v508, 0
        %vm517 = vcmp.ne.s32.totalorder %v509, 0
        %vm518 = vcmp.ne.s32.totalorder %v510, 0
        %vm519 = vcmp.ne.s32.totalorder %v511, 0
        %vm520 = vcmp.ne.s32.totalorder %v512, 0
        %vm521 = vcmp.ne.s32.totalorder %v513, 0
        %vm522 = vcmp.ne.s32.totalorder %v514, 0
        %vm523 = vcmp.ne.s32.totalorder %v507, 7
        %vm524 = vcmp.ne.s32.totalorder %v508, 7
        %vm525 = vcmp.ne.s32.totalorder %v509, 7
        %vm526 = vcmp.ne.s32.totalorder %v510, 7
        %vm527 = vcmp.ne.s32.totalorder %v511, 7
        %vm528 = vcmp.ne.s32.totalorder %v512, 7
        %vm529 = vcmp.ne.s32.totalorder %v513, 7
        %vm530 = vcmp.ne.s32.totalorder %v514, 7
        %vm531 = vmpackc.low %vm515, %vm515
        %vm532 = vmpackc.low %vm516, %vm516
        %vm533 = vmpackc.low %vm517, %vm517
        %vm534 = vmpackc.low %vm518, %vm518
        %vm535 = vmpackc.low %vm519, %vm519
        %vm536 = vmpackc.low %vm520, %vm520
        %vm537 = vmpackc.low %vm521, %vm521
        %vm538 = vmpackc.low %vm522, %vm522
        %v539 = vsel %vm531, 65537, 0
        %v540 = vsel %vm532, 65537, 0
        %v541 = vsel %vm533, 65537, 0
        %v542 = vsel %vm534, 65537, 0
        %v543 = vsel %vm535, 65537, 0
        %v544 = vsel %vm536, 65537, 0
        %v545 = vsel %vm537, 65537, 0
        %v546 = vsel %vm538, 65537, 0
        %v547 = vunpack.c.l.b16 %v539
        %v548 = vunpack.c.l.b16 %v540
        %v549 = vunpack.c.l.b16 %v541
        %v550 = vunpack.c.l.b16 %v542
        %v551 = vunpack.c.l.b16 %v543
        %v552 = vunpack.c.l.b16 %v544
        %v553 = vunpack.c.l.b16 %v545
        %v554 = vunpack.c.l.b16 %v546
        %v555 = vpack.c.b16 %v548, %v547
        %v556 = vpack.c.b16 %v550, %v549
        %v557 = vpack.c.b16 %v552, %v551
        %v558 = vpack.c.b16 %v554, %v553
        %v559 = vunpack.c.l.b16 %v555
        %v560 = vunpack.c.h.b16 %v555
        %v561 = vunpack.c.l.b16 0
        %v562 = vunpack.c.h.b16 0
        %vm563 = vcmp.ne.s32.totalorder %v559, %v561
        %vm564 = vcmp.ne.s32.totalorder %v560, %v562
        %vm565 = vmpackc.low %vm564, %vm563
        %v566 = vunpack.c.l.b16 %v556
        %v567 = vunpack.c.h.b16 %v556
        %v568 = vunpack.c.l.b16 0
        %v569 = vunpack.c.h.b16 0
        %vm570 = vcmp.ne.s32.totalorder %v566, %v568
        %vm571 = vcmp.ne.s32.totalorder %v567, %v569
        %vm572 = vmpackc.low %vm571, %vm570
        %v573 = vunpack.c.l.b16 %v557
        %v574 = vunpack.c.h.b16 %v557
        %v575 = vunpack.c.l.b16 0
        %v576 = vunpack.c.h.b16 0
        %vm577 = vcmp.ne.s32.totalorder %v573, %v575
        %vm578 = vcmp.ne.s32.totalorder %v574, %v576
        %vm579 = vmpackc.low %vm578, %vm577
        %v580 = vunpack.c.l.b16 %v558
        %v581 = vunpack.c.h.b16 %v558
        %v582 = vunpack.c.l.b16 0
        %v583 = vunpack.c.h.b16 0
        %vm584 = vcmp.ne.s32.totalorder %v580, %v582
        %vm585 = vcmp.ne.s32.totalorder %v581, %v583
        %vm586 = vmpackc.low %vm585, %vm584
        %v587 = vsel %vm565, %v408, 0
        %v588 = vsel %vm572, %v382, 0
        %v589 = vsel %vm579, %v391, 0
        %v590 = vsel %vm586, %v400, 0
        %vm591 = vmpackc.low %vm523, %vm523
        %vm592 = vmpackc.low %vm524, %vm524
        %vm593 = vmpackc.low %vm525, %vm525
        %vm594 = vmpackc.low %vm526, %vm526
        %vm595 = vmpackc.low %vm527, %vm527
        %vm596 = vmpackc.low %vm528, %vm528
        %vm597 = vmpackc.low %vm529, %vm529
        %vm598 = vmpackc.low %vm530, %vm530
        %v599 = vsel %vm591, 65537, 0
        %v600 = vsel %vm592, 65537, 0
        %v601 = vsel %vm593, 65537, 0
        %v602 = vsel %vm594, 65537, 0
        %v603 = vsel %vm595, 65537, 0
        %v604 = vsel %vm596, 65537, 0
        %v605 = vsel %vm597, 65537, 0
        %v606 = vsel %vm598, 65537, 0
        %v607 = vunpack.c.l.b16 %v599
        %v608 = vunpack.c.l.b16 %v600
        %v609 = vunpack.c.l.b16 %v601
        %v610 = vunpack.c.l.b16 %v602
        %v611 = vunpack.c.l.b16 %v603
        %v612 = vunpack.c.l.b16 %v604
        %v613 = vunpack.c.l.b16 %v605
        %v614 = vunpack.c.l.b16 %v606
        %v615 = vpack.c.b16 %v608, %v607
        %v616 = vpack.c.b16 %v610, %v609
        %v617 = vpack.c.b16 %v612, %v611
        %v618 = vpack.c.b16 %v614, %v613
        %vm619 = vcmask 1040384
        %v620 = vrot.slane %v615, 7
        %v621 = vrot.slane %v616, 7
        %v622 = vsel %vm619, %v620, %v621
        %v623 = vrot.slane %v617, 7
        %v624 = vsel %vm619, %v621, %v623
        %v625 = vrot.slane %v618, 7
        %v626 = vsel %vm619, %v623, %v625
        %v627 = vunpack.c.l.b16 %v620
        %v628 = vunpack.c.h.b16 %v620
        %v629 = vunpack.c.l.b16 0
        %v630 = vunpack.c.h.b16 0
        %vm631 = vcmp.ne.s32.totalorder %v627, %v629
        %vm632 = vcmp.ne.s32.totalorder %v628, %v630
        %vm633 = vmpackc.low %vm632, %vm631
        %v634 = vunpack.c.l.b16 %v622
        %v635 = vunpack.c.h.b16 %v622
        %v636 = vunpack.c.l.b16 0
        %v637 = vunpack.c.h.b16 0
        %vm638 = vcmp.ne.s32.totalorder %v634, %v636
        %vm639 = vcmp.ne.s32.totalorder %v635, %v637
        %vm640 = vmpackc.low %vm639, %vm638
        %v641 = vunpack.c.l.b16 %v624
        %v642 = vunpack.c.h.b16 %v624
        %v643 = vunpack.c.l.b16 0
        %v644 = vunpack.c.h.b16 0
        %vm645 = vcmp.ne.s32.totalorder %v641, %v643
        %vm646 = vcmp.ne.s32.totalorder %v642, %v644
        %vm647 = vmpackc.low %vm646, %vm645
        %v648 = vunpack.c.l.b16 %v626
        %v649 = vunpack.c.h.b16 %v626
        %v650 = vunpack.c.l.b16 0
        %v651 = vunpack.c.h.b16 0
        %vm652 = vcmp.ne.s32.totalorder %v648, %v650
        %vm653 = vcmp.ne.s32.totalorder %v649, %v651
        %vm654 = vmpackc.low %vm653, %vm652
        %v655 = vunpack.c.l.b16 %v625
        %v656 = vunpack.c.h.b16 %v625
        %v657 = vunpack.c.l.b16 0
        %v658 = vunpack.c.h.b16 0
        %vm659 = vcmp.ne.s32.totalorder %v655, %v657
        %vm660 = vcmp.ne.s32.totalorder %v656, %v658
        %vm661 = vmpackc.low %vm660, %vm659
        %v662 = vsel %vm633, %v408, 0
        %v663 = vsel %vm640, %v382, 0
        %v664 = vsel %vm647, %v391, 0
        %v665 = vsel %vm654, %v400, 0
        %v666 = vsel %vm661, %v409, 0
        %v667 = vpack.c.b16 %v547, %v547
        %v668 = vpack.c.b16 %v549, %v548
        %v669 = vpack.c.b16 %v551, %v550
        %v670 = vpack.c.b16 %v553, %v552
        %v671 = vpack.c.b16 %v554, %v554
        %v672 = vunpack.c.l.b16 %v667
        %v673 = vunpack.c.h.b16 %v667
        %v674 = vunpack.c.l.b16 0
        %v675 = vunpack.c.h.b16 0
        %vm676 = vcmp.ne.s32.totalorder %v672, %v674
        %vm677 = vcmp.ne.s32.totalorder %v673, %v675
        %vm678 = vmpackc.low %vm677, %vm676
        %v679 = vunpack.c.l.b16 %v668
        %v680 = vunpack.c.h.b16 %v668
        %v681 = vunpack.c.l.b16 0
        %v682 = vunpack.c.h.b16 0
        %vm683 = vcmp.ne.s32.totalorder %v679, %v681
        %vm684 = vcmp.ne.s32.totalorder %v680, %v682
        %vm685 = vmpackc.low %vm684, %vm683
        %v686 = vunpack.c.l.b16 %v669
        %v687 = vunpack.c.h.b16 %v669
        %v688 = vunpack.c.l.b16 0
        %v689 = vunpack.c.h.b16 0
        %vm690 = vcmp.ne.s32.totalorder %v686, %v688
        %vm691 = vcmp.ne.s32.totalorder %v687, %v689
        %vm692 = vmpackc.low %vm691, %vm690
        %v693 = vunpack.c.l.b16 %v670
        %v694 = vunpack.c.h.b16 %v670
        %v695 = vunpack.c.l.b16 0
        %v696 = vunpack.c.h.b16 0
        %vm697 = vcmp.ne.s32.totalorder %v693, %v695
        %vm698 = vcmp.ne.s32.totalorder %v694, %v696
        %vm699 = vmpackc.low %vm698, %vm697
        %v700 = vunpack.c.l.b16 %v671
        %v701 = vunpack.c.h.b16 %v671
        %v702 = vunpack.c.l.b16 0
        %v703 = vunpack.c.h.b16 0
        %vm704 = vcmp.ne.s32.totalorder %v700, %v702
        %vm705 = vcmp.ne.s32.totalorder %v701, %v703
        %vm706 = vmpackc.low %vm705, %vm704
        %v707 = vsel %vm678, %v408, 0
        %v708 = vsel %vm685, %v382, 0
        %v709 = vsel %vm692, %v391, 0
        %v710 = vsel %vm699, %v400, 0
        %v711 = vsel %vm706, %v409, 0
        %v712 = vrot.slane %v615, 3
        %v713 = vrot.slane %v616, 3
        %v714 = vsel %vm406, %v712, %v713
        %v715 = vrot.slane %v617, 3
        %v716 = vsel %vm406, %v713, %v715
        %v717 = vrot.slane %v618, 3
        %v718 = vsel %vm406, %v715, %v717
        %v719 = vunpack.c.l.b16 %v712
        %v720 = vunpack.c.h.b16 %v712
        %v721 = vunpack.c.l.b16 0
        %v722 = vunpack.c.h.b16 0
        %vm723 = vcmp.ne.s32.totalorder %v719, %v721
        %vm724 = vcmp.ne.s32.totalorder %v720, %v722
        %vm725 = vmpackc.low %vm724, %vm723
        %v726 = vunpack.c.l.b16 %v714
        %v727 = vunpack.c.h.b16 %v714
        %v728 = vunpack.c.l.b16 0
        %v729 = vunpack.c.h.b16 0
        %vm730 = vcmp.ne.s32.totalorder %v726, %v728
        %vm731 = vcmp.ne.s32.totalorder %v727, %v729
        %vm732 = vmpackc.low %vm731, %vm730
        %v733 = vunpack.c.l.b16 %v716
        %v734 = vunpack.c.h.b16 %v716
        %v735 = vunpack.c.l.b16 0
        %v736 = vunpack.c.h.b16 0
        %vm737 = vcmp.ne.s32.totalorder %v733, %v735
        %vm738 = vcmp.ne.s32.totalorder %v734, %v736
        %vm739 = vmpackc.low %vm738, %vm737
        %v740 = vunpack.c.l.b16 %v718
        %v741 = vunpack.c.h.b16 %v718
        %v742 = vunpack.c.l.b16 0
        %v743 = vunpack.c.h.b16 0
        %vm744 = vcmp.ne.s32.totalorder %v740, %v742
        %vm745 = vcmp.ne.s32.totalorder %v741, %v743
        %vm746 = vmpackc.low %vm745, %vm744
        %v747 = vunpack.c.l.b16 %v717
        %v748 = vunpack.c.h.b16 %v717
        %v749 = vunpack.c.l.b16 0
        %v750 = vunpack.c.h.b16 0
        %vm751 = vcmp.ne.s32.totalorder %v747, %v749
        %vm752 = vcmp.ne.s32.totalorder %v748, %v750
        %vm753 = vmpackc.low %vm752, %vm751
        %v754 = vsel %vm725, %v408, 0
        %v755 = vsel %vm732, %v382, 0
        %v756 = vsel %vm739, %v391, 0
        %v757 = vsel %vm746, %v400, 0
        %v758 = vsel %vm753, %v409, 0
        %v759 = vsel %vm565, %v382, 0
        %v760 = vsel %vm572, %v391, 0
        %v761 = vsel %vm579, %v400, 0
        %v762 = vsel %vm586, %v409, 0
        %v763 = vsel %vm633, %v382, 0
        %v764 = vsel %vm640, %v391, 0
        %v765 = vsel %vm647, %v400, 0
        %v766 = vsel %vm654, %v409, 0
        %vm767 = vsmask.f32 7424
        %v769 = vshrl.u32 %v408, 16
        %v771 = vshll.u32 %v408, 16
        %v773 = vrot.slane %v771, 1
        %v774 = vor.u32 %v769, %v773
        %v776 = vshll.u32 %v382, 16
        %v778 = vrot.slane %v776, 1
        %v779 = vsel %vm767, %v774, %v778
        %v780 = vshrl.u32 %v382, 16
        %v782 = vor.u32 %v780, %v778
        %v784 = vshll.u32 %v391, 16
        %v786 = vrot.slane %v784, 1
        %v787 = vsel %vm767, %v782, %v786
        %v788 = vshrl.u32 %v391, 16
        %v790 = vor.u32 %v788, %v786
        %v792 = vshll.u32 %v400, 16
        %v794 = vrot.slane %v792, 1
        %v795 = vsel %vm767, %v790, %v794
        %v796 = vshrl.u32 %v400, 16
        %v798 = vor.u32 %v796, %v794
        %v800 = vshll.u32 %v409, 16
        %v802 = vrot.slane %v800, 1
        %v803 = vsel %vm767, %v798, %v802
        %804 = vrot.lane.b32.xlu0 %v779, 32
        %v805 = vpop.permute.xlu0 %804
        %806 = vrot.lane.b32.xlu0 %v787, 32
        %v807 = vpop.permute.xlu0 %806
        %808 = vrot.lane.b32.xlu0 %v795, 32
        %v809 = vpop.permute.xlu0 %808
        %810 = vrot.lane.b32.xlu0 %v803, 32
        %v811 = vpop.permute.xlu0 %810
        %vm817 = vcmask 1046528
        %v818 = vrot.slane %v662, 1
        %v819 = vrot.slane %v663, 1
        %v820 = vsel %vm817, %v818, %v819
        %v821 = vrot.slane %v664, 1
        %v822 = vsel %vm817, %v819, %v821
        %v823 = vrot.slane %v665, 1
        %v824 = vsel %vm817, %v821, %v823
        %v825 = vrot.slane %v666, 1
        %v826 = vsel %vm817, %v823, %v825
        %827 = vrot.lane.b32.xlu0 %v820, 64
        %v828 = vpop.permute.xlu0 %827
        %829 = vrot.lane.b32.xlu0 %v822, 64
        %v830 = vpop.permute.xlu0 %829
        %831 = vrot.lane.b32.xlu0 %v824, 64
        %v832 = vpop.permute.xlu0 %831
        %833 = vrot.lane.b32.xlu0 %v826, 64
        %v834 = vpop.permute.xlu0 %833
        %vm840 = vcmask 1043456
        %v841 = vrot.slane %v707, 4
        %v842 = vrot.slane %v708, 4
        %v843 = vsel %vm840, %v841, %v842
        %v844 = vrot.slane %v709, 4
        %v845 = vsel %vm840, %v842, %v844
        %v846 = vrot.slane %v710, 4
        %v847 = vsel %vm840, %v844, %v846
        %v848 = vrot.slane %v711, 4
        %v849 = vsel %vm840, %v846, %v848
        %850 = vrot.lane.b32.xlu0 %v843, 96
        %v851 = vpop.permute.xlu0 %850
        %852 = vrot.lane.b32.xlu0 %v845, 96
        %v853 = vpop.permute.xlu0 %852
        %854 = vrot.lane.b32.xlu0 %v847, 96
        %v855 = vpop.permute.xlu0 %854
        %856 = vrot.lane.b32.xlu0 %v849, 96
        %v857 = vpop.permute.xlu0 %856
        %vm858 = vsmask.f32 3328
        %v859 = vrot.slane %v769, 4
        %v860 = vrot.slane %v771, 5
        %v861 = vor.u32 %v859, %v860
        %v862 = vrot.slane %v780, 4
        %v863 = vrot.slane %v776, 5
        %v864 = vor.u32 %v862, %v863
        %v865 = vsel %vm858, %v861, %v864
        %v866 = vrot.slane %v788, 4
        %v867 = vrot.slane %v784, 5
        %v868 = vor.u32 %v866, %v867
        %v869 = vsel %vm858, %v864, %v868
        %v870 = vrot.slane %v796, 4
        %v871 = vrot.slane %v792, 5
        %v872 = vor.u32 %v870, %v871
        %v873 = vsel %vm858, %v868, %v872
        %v874 = vshrl.u32 %v409, 16
        %v876 = vrot.slane %v874, 4
        %v877 = vrot.slane %v800, 5
        %v878 = vor.u32 %v876, %v877
        %v879 = vsel %vm858, %v872, %v878
        %vm885 = vcmask 1042432
        %v886 = vrot.slane %v754, 5
        %v887 = vrot.slane %v755, 5
        %v888 = vsel %vm885, %v886, %v887
        %v889 = vrot.slane %v756, 5
        %v890 = vsel %vm885, %v887, %v889
        %v891 = vrot.slane %v757, 5
        %v892 = vsel %vm885, %v889, %v891
        %v893 = vrot.slane %v758, 5
        %v894 = vsel %vm885, %v891, %v893
        %895 = vrot.lane.b32.xlu0 %v888, 32
        %v896 = vpop.permute.xlu0 %895
        %897 = vrot.lane.b32.xlu0 %v890, 32
        %v898 = vpop.permute.xlu0 %897
        %899 = vrot.lane.b32.xlu0 %v892, 32
        %v900 = vpop.permute.xlu0 %899
        %901 = vrot.lane.b32.xlu0 %v894, 32
        %v902 = vpop.permute.xlu0 %901
        %907 = vrot.lane.b32.xlu0 %v759, 64
        %v908 = vpop.permute.xlu0 %907
        %909 = vrot.lane.b32.xlu0 %v760, 64
        %v910 = vpop.permute.xlu0 %909
        %911 = vrot.lane.b32.xlu0 %v761, 64
        %v912 = vpop.permute.xlu0 %911
        %913 = vrot.lane.b32.xlu0 %v762, 64
        %v914 = vpop.permute.xlu0 %913
        %v915 = vor.u32 %v874, %v802
        %v917 = vshll.u32 0, 16
        %v919 = vrot.slane %v917, 1
        %v920 = vsel %vm767, %v915, %v919
        %921 = vrot.lane.b32.xlu0 %v787, 96
        %v922 = vpop.permute.xlu0 %921
        %923 = vrot.lane.b32.xlu0 %v795, 96
        %v924 = vpop.permute.xlu0 %923
        %925 = vrot.lane.b32.xlu0 %v803, 96
        %v926 = vpop.permute.xlu0 %925
        %927 = vrot.lane.b32.xlu0 %v920, 96
        %v928 = vpop.permute.xlu0 %927
        %v934 = vrot.slane %v763, 1
        %v935 = vrot.slane %v764, 1
        %v936 = vsel %vm817, %v934, %v935
        %v937 = vrot.slane %v765, 1
        %v938 = vsel %vm817, %v935, %v937
        %v939 = vrot.slane %v766, 1
        %v940 = vsel %vm817, %v937, %v939
        %v941 = vrot.slane 0, 1
        %v942 = vsel %vm817, %v939, %v941
        %vm943 = vcmask 261120
        %v946 = vsel %vm943, %v587, %v805
        %v949 = vsel %vm943, %v588, %v807
        %v952 = vsel %vm943, %v589, %v809
        %v955 = vsel %vm943, %v590, %v811
        %vm956 = vcmask 523264
        %v958 = vsel %vm956, %v946, %v828
        %v960 = vsel %vm956, %v949, %v830
        %v962 = vsel %vm956, %v952, %v832
        %v964 = vsel %vm956, %v955, %v834
        %vm965 = vcmask 785408
        %v967 = vsel %vm965, %v958, %v851
        %v970 = vsel %vm965, %v960, %v853
        %v973 = vsel %vm965, %v962, %v855
        %v976 = vsel %vm965, %v964, %v857
        %v980 = vsel %vm943, %v865, %v896
        %v983 = vsel %vm943, %v869, %v898
        %v986 = vsel %vm943, %v873, %v900
        %v989 = vsel %vm943, %v879, %v902
        %v991 = vsel %vm956, %v980, %v908
        %v993 = vsel %vm956, %v983, %v910
        %v995 = vsel %vm956, %v986, %v912
        %v997 = vsel %vm956, %v989, %v914
        %v999 = vsel %vm965, %v991, %v922
        %v1002 = vsel %vm965, %v993, %v924
        %v1005 = vsel %vm965, %v995, %v926
        %v1008 = vsel %vm965, %v997, %v928
        %v1011 = vsel %vm943, %v936, 0
        %v1014 = vsel %vm943, %v938, 0
        %v1017 = vsel %vm943, %v940, 0
        %v1020 = vsel %vm943, %v942, 0
        %v1022 = vld [vmem:[#allocation2] sm:$0xf]
        %v1023 = vld [vmem:[#allocation2 + $0x4] sm:$0xf]
        %v1024 = vld [vmem:[#allocation2 + $0x8] sm:$0xf]
        %v1025 = vld [vmem:[#allocation2 + $0xc] sm:$0xf]
        %v1026 = vld [vmem:[#allocation2 + $0x10] sm:$0xf]
        %v1027 = vld [vmem:[#allocation2 + $0x14] sm:$0xf]
        %v1028 = vld [vmem:[#allocation2 + $0x18] sm:$0xf]
        %v1029 = vld [vmem:[#allocation2 + $0x1c] sm:$0xf]
        %v1030 = vld [vmem:[#allocation2 + $0x20] sm:$0xf]
        %v1031 = vld [vmem:[#allocation2 + $0x24] sm:$0xf]
        %v1032 = vld [vmem:[#allocation2 + $0x28] sm:$0xf]
        %v1033 = vld [vmem:[#allocation2 + $0x2c] sm:$0xf]
        %v1034 = vld [vmem:[#allocation2 + $0x30] sm:$0xf]
        %v1035 = vld [vmem:[#allocation2 + $0x34] sm:$0xf]
        %v1036 = vld [vmem:[#allocation2 + $0x38] sm:$0xf]
        %v1037 = vld [vmem:[#allocation2 + $0x3c] sm:$0xf]
        %v1038 = vld [vmem:[#allocation2 + $0x40] sm:$0xf]
        %v1039 = vld [vmem:[#allocation2 + $0x44] sm:$0xf]
        %v1040 = vld [vmem:[#allocation2 + $0x48] sm:$0xf]
        %v1041 = vld [vmem:[#allocation2 + $0x4c] sm:$0xf]
        %v1042 = vld [vmem:[#allocation2 + $0x50] sm:$0xf]
        %v1043 = vld [vmem:[#allocation2 + $0x54] sm:$0xf]
        %v1044 = vld [vmem:[#allocation2 + $0x58] sm:$0xf]
        %v1045 = vld [vmem:[#allocation2 + $0x5c] sm:$0xf]
        %v1046 = vld [vmem:[#allocation2 + $0x60] sm:$0xf]
        %v1047 = vld [vmem:[#allocation2 + $0x64] sm:$0xf]
        %v1048 = vld [vmem:[#allocation2 + $0x68] sm:$0xf]
        %v1049 = vld [vmem:[#allocation2 + $0x6c] sm:$0xf]
        %v1050 = vld [vmem:[#allocation2 + $0x70] sm:$0xf]
        %v1051 = vld [vmem:[#allocation2 + $0x74] sm:$0xf]
        %v1052 = vld [vmem:[#allocation2 + $0x78] sm:$0xf]
        %v1053 = vld [vmem:[#allocation2 + $0x7c] sm:$0xf]
        %v1054 = vld [vmem:[#allocation2 + $0x80] sm:$0xf]
        %v1055 = vld [vmem:[#allocation2 + $0x84] sm:$0xf]
        %v1056 = vld [vmem:[#allocation2 + $0x88] sm:$0xf]
        %v1057 = vld [vmem:[#allocation2 + $0x8c] sm:$0xf]
        %v1058 = vld [vmem:[#allocation2 + $0x90] sm:$0xf]
        %v1059 = vld [vmem:[#allocation2 + $0x94] sm:$0xf]
        %v1060 = vld [vmem:[#allocation2 + $0x98] sm:$0xf]
        %v1061 = vld [vmem:[#allocation2 + $0x9c] sm:$0xf]
        %v1062 = vld [vmem:[#allocation2 + $0xa0] sm:$0xf]
        %v1063 = vld [vmem:[#allocation2 + $0xa4] sm:$0xf]
        %v1064 = vld [vmem:[#allocation2 + $0xa8] sm:$0xf]
        %v1065 = vld [vmem:[#allocation2 + $0xac] sm:$0xf]
        %v1066 = vld [vmem:[#allocation2 + $0xb0] sm:$0xf]
        %v1067 = vld [vmem:[#allocation2 + $0xb4] sm:$0xf]
        %v1068 = vld [vmem:[#allocation2 + $0xb8] sm:$0xf]
        %v1069 = vld [vmem:[#allocation2 + $0xbc] sm:$0xf]
        %v1118 = vunpack.c.l.b16 %v1022
        %v1119 = vunpack.c.l.b16 %v1023
        %v1120 = vunpack.c.l.b16 %v1024
        %v1121 = vunpack.c.l.b16 %v1025
        %v1122 = vunpack.c.l.b16 %v1026
        %v1123 = vunpack.c.l.b16 %v1027
        %v1124 = vunpack.c.l.b16 %v1028
        %v1125 = vunpack.c.l.b16 %v1029
        %v1126 = vunpack.c.l.b16 %v1030
        %v1127 = vunpack.c.l.b16 %v1031
        %v1128 = vunpack.c.l.b16 %v1032
        %v1129 = vunpack.c.l.b16 %v1033
        %v1130 = vunpack.c.l.b16 %v1034
        %v1131 = vunpack.c.l.b16 %v1035
        %v1132 = vunpack.c.l.b16 %v1036
        %v1133 = vunpack.c.l.b16 %v1037
        %v1134 = vunpack.c.l.b16 %v1038
        %v1135 = vunpack.c.l.b16 %v1039
        %v1136 = vunpack.c.l.b16 %v1040
        %v1137 = vunpack.c.l.b16 %v1041
        %v1138 = vunpack.c.l.b16 %v1042
        %v1139 = vunpack.c.l.b16 %v1043
        %v1140 = vunpack.c.l.b16 %v1044
        %v1141 = vunpack.c.l.b16 %v1045
        %v1142 = vunpack.c.l.b16 %v1046
        %v1143 = vunpack.c.l.b16 %v1047
        %v1144 = vunpack.c.l.b16 %v1048
        %v1145 = vunpack.c.l.b16 %v1049
        %v1146 = vunpack.c.l.b16 %v1050
        %v1147 = vunpack.c.l.b16 %v1051
        %v1148 = vunpack.c.l.b16 %v1052
        %v1149 = vunpack.c.l.b16 %v1053
        %v1150 = vunpack.c.l.b16 %v1054
        %v1151 = vunpack.c.l.b16 %v1055
        %v1152 = vunpack.c.l.b16 %v1056
        %v1153 = vunpack.c.l.b16 %v1057
        %v1154 = vunpack.c.l.b16 %v1058
        %v1155 = vunpack.c.l.b16 %v1059
        %v1156 = vunpack.c.l.b16 %v1060
        %v1157 = vunpack.c.l.b16 %v1061
        %v1158 = vunpack.c.l.b16 %v1062
        %v1159 = vunpack.c.l.b16 %v1063
        %v1160 = vunpack.c.l.b16 %v1064
        %v1161 = vunpack.c.l.b16 %v1065
        %v1162 = vunpack.c.l.b16 %v1066
        %v1163 = vunpack.c.l.b16 %v1067
        %v1164 = vunpack.c.l.b16 %v1068
        %v1165 = vunpack.c.l.b16 %v1069
        %v1166 = vpack.c.b16 %v1119, %v1118
        %v1167 = vpack.c.b16 %v1121, %v1120
        %v1168 = vpack.c.b16 %v1123, %v1122
        %v1169 = vpack.c.b16 %v1125, %v1124
        %v1170 = vpack.c.b16 %v1127, %v1126
        %v1171 = vpack.c.b16 %v1129, %v1128
        %v1172 = vpack.c.b16 %v1131, %v1130
        %v1173 = vpack.c.b16 %v1133, %v1132
        %v1174 = vpack.c.b16 %v1135, %v1134
        %v1175 = vpack.c.b16 %v1137, %v1136
        %v1176 = vpack.c.b16 %v1139, %v1138
        %v1177 = vpack.c.b16 %v1141, %v1140
        %v1178 = vpack.c.b16 %v1143, %v1142
        %v1179 = vpack.c.b16 %v1145, %v1144
        %v1180 = vpack.c.b16 %v1147, %v1146
        %v1181 = vpack.c.b16 %v1149, %v1148
        %v1182 = vpack.c.b16 %v1151, %v1150
        %v1183 = vpack.c.b16 %v1153, %v1152
        %v1184 = vpack.c.b16 %v1155, %v1154
        %v1185 = vpack.c.b16 %v1157, %v1156
        %v1186 = vpack.c.b16 %v1159, %v1158
        %v1187 = vpack.c.b16 %v1161, %v1160
        %v1188 = vpack.c.b16 %v1163, %v1162
        %v1189 = vpack.c.b16 %v1165, %v1164
        %1214 = vmatpush.bf16.msra.mxu0 %v1173
        %1215 = vmatpush.bf16.msra.mxu0 %v1172
        %1216 = vmatpush.bf16.msra.mxu0 %v1171
        %1217 = vmatpush.bf16.msra.mxu0 %v1170
        %1218 = vmatpush.bf16.msra.mxu0 %v1169
        %1219 = vmatpush.bf16.msra.mxu0 %v1168
        %1220 = vmatpush.bf16.msra.mxu0 %v1167
        %1221 = vmatpush.bf16.msra.mxu0 %v1166
        %1222 = vmatmul.bf16.gmra.mxu0 %v967
        %v1223 = vpop.f32.mrf.mxu0
        %v1224 = vadd.f32 0.0, %v1223
        %v1225 = vpop.f32.mrf.mxu0
        %v1226 = vadd.f32 0.0, %v1225
        %1227 = vmatmul.bf16.gmra.mxu0 %v970
        %v1228 = vpop.f32.mrf.mxu0
        %v1229 = vadd.f32 0.0, %v1228
        %v1230 = vpop.f32.mrf.mxu0
        %v1231 = vadd.f32 0.0, %v1230
        %1232 = vmatmul.bf16.gmra.mxu0 %v973
        %v1233 = vpop.f32.mrf.mxu0
        %v1234 = vadd.f32 0.0, %v1233
        %v1235 = vpop.f32.mrf.mxu0
        %v1236 = vadd.f32 0.0, %v1235
        %1237 = vmatmul.bf16.gmra.mxu0 %v976
        %v1238 = vpop.f32.mrf.mxu0
        %v1239 = vadd.f32 0.0, %v1238
        %v1240 = vpop.f32.mrf.mxu0
        %v1241 = vadd.f32 0.0, %v1240
        %1242 = vdwg.mxu0
        %1243 = vmatpush.bf16.msra.mxu0 %v1181
        %1244 = vmatpush.bf16.msra.mxu0 %v1180
        %1245 = vmatpush.bf16.msra.mxu0 %v1179
        %1246 = vmatpush.bf16.msra.mxu0 %v1178
        %1247 = vmatpush.bf16.msra.mxu0 %v1177
        %1248 = vmatpush.bf16.msra.mxu0 %v1176
        %1249 = vmatpush.bf16.msra.mxu0 %v1175
        %1250 = vmatpush.bf16.msra.mxu0 %v1174
        %1251 = vmatmul.bf16.gmra.mxu0 %v999
        %v1252 = vpop.f32.mrf.mxu0
        %v1253 = vadd.f32 %v1224, %v1252
        %v1254 = vpop.f32.mrf.mxu0
        %v1255 = vadd.f32 %v1226, %v1254
        %1256 = vmatmul.bf16.gmra.mxu0 %v1002
        %v1257 = vpop.f32.mrf.mxu0
        %v1258 = vadd.f32 %v1229, %v1257
        %v1259 = vpop.f32.mrf.mxu0
        %v1260 = vadd.f32 %v1231, %v1259
        %1261 = vmatmul.bf16.gmra.mxu0 %v1005
        %v1262 = vpop.f32.mrf.mxu0
        %v1263 = vadd.f32 %v1234, %v1262
        %v1264 = vpop.f32.mrf.mxu0
        %v1265 = vadd.f32 %v1236, %v1264
        %1266 = vmatmul.bf16.gmra.mxu0 %v1008
        %v1267 = vpop.f32.mrf.mxu0
        %v1268 = vadd.f32 %v1239, %v1267
        %v1269 = vpop.f32.mrf.mxu0
        %v1270 = vadd.f32 %v1241, %v1269
        %1271 = vdwg.mxu0
        %1272 = vmatpush.bf16.msra.mxu0 %v1189
        %1273 = vmatpush.bf16.msra.mxu0 %v1188
        %1274 = vmatpush.bf16.msra.mxu0 %v1187
        %1275 = vmatpush.bf16.msra.mxu0 %v1186
        %1276 = vmatpush.bf16.msra.mxu0 %v1185
        %1277 = vmatpush.bf16.msra.mxu0 %v1184
        %1278 = vmatpush.bf16.msra.mxu0 %v1183
        %1279 = vmatpush.bf16.msra.mxu0 %v1182
        %1280 = vmatmul.bf16.gmra.mxu0 %v1011
        %v1281 = vpop.f32.mrf.mxu0
        %v1282 = vadd.f32 %v1253, %v1281
        %v1283 = vpop.f32.mrf.mxu0
        %v1284 = vadd.f32 %v1255, %v1283
        %1285 = vmatmul.bf16.gmra.mxu0 %v1014
        %v1286 = vpop.f32.mrf.mxu0
        %v1287 = vadd.f32 %v1258, %v1286
        %v1288 = vpop.f32.mrf.mxu0
        %v1289 = vadd.f32 %v1260, %v1288
        %1290 = vmatmul.bf16.gmra.mxu0 %v1017
        %v1291 = vpop.f32.mrf.mxu0
        %v1292 = vadd.f32 %v1263, %v1291
        %v1293 = vpop.f32.mrf.mxu0
        %v1294 = vadd.f32 %v1265, %v1293
        %1295 = vmatmul.bf16.gmra.mxu0 %v1020
        %v1296 = vpop.f32.mrf.mxu0
        %v1297 = vadd.f32 %v1268, %v1296
        %v1298 = vpop.f32.mrf.mxu0
        %v1299 = vadd.f32 %v1270, %v1298
        %1300 = vdwg.mxu0
        %v1301 = vadd.f32 %v1282, %v1284
        %v1302 = vadd.f32 %v1301, %v1287
        %v1303 = vadd.f32 %v1302, %v1289
        %v1304 = vadd.f32 %v1303, %v1292
        %v1305 = vadd.f32 %v1304, %v1294
        %v1306 = vadd.f32 %v1305, %v1297
        %v1307 = vadd.f32 %v1306, %v1299
        %v1308 = vrot.slane %v1307, 4
        %v1309 = vadd.f32 %v1307, %v1308
        %v1310 = vrot.slane %v1309, 2
        %v1311 = vadd.f32 %v1309, %v1310
        %v1312 = vrot.slane %v1311, 1
        %v1313 = vadd.f32 %v1311, %v1312
        %1314 = vst [vmem:[%s282] sm:$0x1] %v1313
        %v1315 = vmul.f32 %v1282, %v1282
        %v1316 = vmul.f32 %v1284, %v1284
        %v1317 = vmul.f32 %v1287, %v1287
        %v1318 = vmul.f32 %v1289, %v1289
        %v1319 = vmul.f32 %v1292, %v1292
        %v1320 = vmul.f32 %v1294, %v1294
        %v1321 = vmul.f32 %v1297, %v1297
        %v1322 = vmul.f32 %v1299, %v1299
        %v1323 = vadd.f32 %v1315, %v1316
        %v1324 = vadd.f32 %v1323, %v1317
        %v1325 = vadd.f32 %v1324, %v1318
        %v1326 = vadd.f32 %v1325, %v1319
        %v1327 = vadd.f32 %v1326, %v1320
        %v1328 = vadd.f32 %v1327, %v1321
        %v1329 = vadd.f32 %v1328, %v1322
        %v1330 = vrot.slane %v1329, 4
        %v1331 = vadd.f32 %v1329, %v1330
        %v1332 = vrot.slane %v1331, 2
        %v1333 = vadd.f32 %v1331, %v1332
        %v1334 = vrot.slane %v1333, 1
        %v1335 = vadd.f32 %v1333, %v1334
        %1336 = vst [vmem:[%s285] sm:$0x1] %v1335
        %v1337 = vpack.c.bf16 %v1282, %v1282
        %v1338 = vpack.c.bf16 %v1284, %v1284
        %v1339 = vpack.c.bf16 %v1287, %v1287
        %v1340 = vpack.c.bf16 %v1289, %v1289
        %v1341 = vpack.c.bf16 %v1292, %v1292
        %v1342 = vpack.c.bf16 %v1294, %v1294
        %v1343 = vpack.c.bf16 %v1297, %v1297
        %v1344 = vpack.c.bf16 %v1299, %v1299
        %vm1345 = vcmask 519168
        %1346 = vst.msk [vmem:[%s279] sm:$0xf] %vm1345, %v1337
        %1347 = vst.msk [vmem:[%s279 + $0x8] sm:$0xf] %vm1345, %v1338
        %1348 = vst.msk [vmem:[%s279 + $0x10] sm:$0xf] %vm1345, %v1339
        %1349 = vst.msk [vmem:[%s279 + $0x18] sm:$0xf] %vm1345, %v1340
        %1350 = vst.msk [vmem:[%s279 + $0x20] sm:$0xf] %vm1345, %v1341
        %1351 = vst.msk [vmem:[%s279 + $0x28] sm:$0xf] %vm1345, %v1342
        %1352 = vst.msk [vmem:[%s279 + $0x30] sm:$0xf] %vm1345, %v1343
        %1353 = vst.msk [vmem:[%s279 + $0x38] sm:$0xf] %vm1345, %v1344
        %1362 = vrot.lane.b32.xlu0 %v1337, 64
        %v1363 = vpop.permute.xlu0 %1362
        %1364 = vrot.lane.b32.xlu0 %v1338, 64
        %v1365 = vpop.permute.xlu0 %1364
        %1366 = vrot.lane.b32.xlu0 %v1339, 64
        %v1367 = vpop.permute.xlu0 %1366
        %1368 = vrot.lane.b32.xlu0 %v1340, 64
        %v1369 = vpop.permute.xlu0 %1368
        %1370 = vrot.lane.b32.xlu0 %v1341, 64
        %v1371 = vpop.permute.xlu0 %1370
        %1372 = vrot.lane.b32.xlu0 %v1342, 64
        %v1373 = vpop.permute.xlu0 %1372
        %1374 = vrot.lane.b32.xlu0 %v1343, 64
        %v1375 = vpop.permute.xlu0 %1374
        %1376 = vrot.lane.b32.xlu0 %v1344, 64
        %v1377 = vpop.permute.xlu0 %1376
        %s1386 = scalar_lea.vmem %s279, 4
        %1387 = vst.msk [vmem:[%s1386] sm:$0xf] %vm1345, %v1363
        %1388 = vst.msk [vmem:[%s1386 + $0x8] sm:$0xf] %vm1345, %v1365
        %1389 = vst.msk [vmem:[%s1386 + $0x10] sm:$0xf] %vm1345, %v1367
        %1390 = vst.msk [vmem:[%s1386 + $0x18] sm:$0xf] %vm1345, %v1369
        %1391 = vst.msk [vmem:[%s1386 + $0x20] sm:$0xf] %vm1345, %v1371
        %1392 = vst.msk [vmem:[%s1386 + $0x28] sm:$0xf] %vm1345, %v1373
        %1393 = vst.msk [vmem:[%s1386 + $0x30] sm:$0xf] %vm1345, %v1375
        %1394 = vst.msk [vmem:[%s1386 + $0x38] sm:$0xf] %vm1345, %v1377
        %p1395 = scmp.lt.s32.totalorder %s19, 3
        %s1396 = scalar_select %p1395, %s19, 3
        %s1397 = smul.addr %s1396, 16
        %s1398 = smul.addr %s1397, 4
        %s1399 = scalar_lea.vmem %s4, %s1398
        %p1400 = scmp.lt.s32.totalorder %s19, 3
        %s1401 = scalar_select %p1400, %s19, 3
        %s1402 = scalar_lea.vmem %s5, %s1401
        %p1403 = scmp.lt.s32.totalorder %s19, 3
        %s1404 = scalar_select %p1403, %s19, 3
        %s1405 = scalar_lea.vmem %s6, %s1404
        // Predicated region
        $region41: #{_lambda_.6} parent=35 // pred_check
          %p1406 = pneg %p126
        $region42: #{_lambda_.6} parent=35 // pred_check_branch
          %1408 = sbr.rel (%p1406) target = $region44
        $region43: #{_lambda_.6} parent=35 // pred_region
          _
        $region44: #{_lambda_.6} parent=35 // pred_fallthru
          _
        // Predicated region
        $region45: #{_lambda_.6} parent=35 // pred_check
          %p1409 = pneg %p152
        $region46: #{_lambda_.6} parent=35 // pred_check_branch
          %1411 = sbr.rel (%p1409) target = $region48
        $region47: #{_lambda_.6} parent=35 // pred_region
          _
        $region48: #{_lambda_.6} parent=35 // pred_fallthru
          _
        // Predicated region
        $region49: #{_lambda_.6} parent=35 // pred_check
          %p1412 = pneg %p178
        $region50: #{_lambda_.6} parent=35 // pred_check_branch
          %1414 = sbr.rel (%p1412) target = $region52
        $region51: #{_lambda_.6} parent=35 // pred_region
          _
        $region52: #{_lambda_.6} parent=35 // pred_fallthru
          _
      $region36: #{_lambda_.6} parent=5 // pred_fallthru
        _
      %p1415 = scmp.le.s32.totalorder 2, %s14
      // Predicated region
      $region53: #{_lambda_.6} parent=5 // pred_check
        %p1416 = pneg %p1415
      $region54: #{_lambda_.6} parent=5 // pred_check_branch
        %1418 = sbr.rel (%p1416) target = $region56
      $region55: #{_lambda_.6} parent=5 // pred_region
        %s1419 = ssub.s32 %s14, 2
        // Predicated region
        $region57: #{_lambda_.6} parent=55 // pred_check
          %p1420 = pneg %p132
        $region58: #{_lambda_.6} parent=55 // pred_check_branch
          %1422 = sbr.rel (%p1420) target = $region60
        $region59: #{_lambda_.6} parent=55 // pred_region
          %p1423 = scmp.lt.s32.totalorder %s20, 3
          %s1424 = scalar_select %p1423, %s20, 3
          %s1425 = smul.addr %s1424, 16
          %s1426 = smul.addr %s1425, 4
          %s1427 = scalar_lea.vmem %s4, %s1426
        $region60: #{_lambda_.6} parent=55 // pred_fallthru
          _
        // Predicated region
        $region61: #{_lambda_.6} parent=55 // pred_check
          %p1428 = pneg %p158
        $region62: #{_lambda_.6} parent=55 // pred_check_branch
          %1430 = sbr.rel (%p1428) target = $region64
        $region63: #{_lambda_.6} parent=55 // pred_region
          %p1431 = scmp.lt.s32.totalorder %s20, 3
          %s1432 = scalar_select %p1431, %s20, 3
          %s1433 = scalar_lea.vmem %s5, %s1432
        $region64: #{_lambda_.6} parent=55 // pred_fallthru
          _
        // Predicated region
        $region65: #{_lambda_.6} parent=55 // pred_check
          %p1434 = pneg %p184
        $region66: #{_lambda_.6} parent=55 // pred_check_branch
          %1436 = sbr.rel (%p1434) target = $region68
        $region67: #{_lambda_.6} parent=55 // pred_region
          %p1437 = scmp.lt.s32.totalorder %s20, 3
          %s1438 = scalar_select %p1437, %s20, 3
          %s1439 = scalar_lea.vmem %s6, %s1438
        $region68: #{_lambda_.6} parent=55 // pred_fallthru
          _
      $region56: #{_lambda_.6} parent=5 // pred_fallthru
        _
    $region6: #{_lambda_.6} parent=1 // loop_footer
      %s18 = sadd.s32 1, %s14
    $region7: #{_lambda_.6} parent=1 // loop_footer_branch
      %13 = sbr.rel target = $region3
    $region8: #{_lambda_.6} parent=1 // loop_exit
      _
    %1440 = vsyncpa [#allocation3], 1
    %s1441 = scalar_lea.sflag [#allocation3], 1
    %1442 = vsyncpa %s1441, 1

// kernel: _lambda_.7
$region0: #{_lambda_.7}
  #allocation0 [shape = 'u32[]', space=smem, size = 0x4, offset = 0x4, fixed_abs, tag = 'smem constant byte address 0x4 - core index']
  #allocation1 [shape = 'u32[72,128]{1,0:T(1,128)}', space=vmem, size = 0x9000, scoped, tag = 'internal scratch']
  %s0 = inlined_call_operand.vmem [shape: bf16[4,256,32], index: 0, kind: input, shape index: {}]
  %s1 = inlined_call_operand.hbm [shape: bf16[384,128], index: 1, kind: input, shape index: {}]
  %s2 = inlined_call_operand.vmem [shape: f32[1,32], index: 2, kind: input, shape index: {}]
  %s3 = inlined_call_operand.vmem [shape: f32[1,32], index: 3, kind: input, shape index: {}]
  %s4 = inlined_call_operand.vmem [shape: f32[4,16,2,16,64], index: 4, kind: output, shape index: {}]
  %s5 = sld [smem:[#allocation0]]
  $region53: #{_lambda_.7} parent=0
    _
  %s7 = ssub.s32 1, %s5
  %s8 = scalar_select 0, %s7, %s5
  $region1: #{_lambda_.7} parent=0
    #allocation2 [shape = 'u8[98304]{0}', space=vmem, size = 0x18000, scoped, tag = 'input window, operand 1, single buffered']
    #allocation3 [shape = 's32[2]{0}', space=sflag, size = 0x8, scoped, tag = 'scoped memory for _lambda_.7']
    %9 = vsyncpa [#allocation3], 0
    loop: start=0, step=1, limit=6
    $region2: #{_lambda_.7} parent=1 // loop_pre_header
      _
    $region3: #{_lambda_.7} parent=1 // loop_header
      %s11 = sphi 0, %s15
      %p12 = scmp.ge.s32.totalorder %s11, 6
      %s21 = sphi 0, %s23
      %s24 = sphi 0, %s21
      %s25 = sphi 0, %s24
      %s41 = sphi 0, %s25
      %s45 = sphi 0, %s45
      %s47 = sphi 0, %s45
      %s48 = sphi 0, %s47
      %s62 = sphi 0, %s48
      %s66 = sphi 0, %s66
      %s68 = sphi 0, %s66
      %s69 = sphi 0, %s68
      %s83 = sphi 0, %s69
      %s87 = sphi 0, %s87
      %s89 = sphi 0, %s87
      %s90 = sphi 0, %s89
      %s104 = sphi 0, %s90
      %s110 = sphi 0, %s112
      %s113 = sphi 0, %s110
      %s114 = sphi 0, %s113
      %s130 = sphi 0, %s114
    $region4: #{_lambda_.7} parent=1 // loop_header_branch
      %14 = sbr.rel (%p12) target = $region8
    $region5: #{_lambda_.7} parent=1 // loop_body
      %s16 = ssub.s32 %s11, 1
      %s17 = ssub.s32 %s11, 2
      %s18 = sadd.s32 %s11, 1
      %s19 = ssub.s32 %s11, %s18
      %p20 = scmp.eq.s32.totalorder %s19, 0
      %s22 = sadd.s32 %s21, 1
      %s23 = scalar_select %p20, %s21, %s22
      %p26 = pneg %p20
      %p27 = scmp.eq.s32.totalorder %s11, 3
      %p28 = por %p26, %p27
      %p29 = scmp.ne.s32.totalorder %s21, %s24
      %p30 = scmp.eq.s32.totalorder %s11, 0
      %p31 = por %p29, %p30
      %p32 = scmp.ne.s32.totalorder %s21, %s24
      %p33 = scmp.eq.s32.totalorder %s16, 3
      %p34 = por %p32, %p33
      %p35 = scmp.ne.s32.totalorder %s24, %s25
      %p36 = scmp.eq.s32.totalorder %s16, 0
      %p37 = por %p35, %p36
      %p38 = scmp.ne.s32.totalorder %s24, %s25
      %p39 = scmp.eq.s32.totalorder %s17, 3
      %p40 = por %p38, %p39
      %p42 = scmp.ne.s32.totalorder %s25, %s41
      %p43 = scmp.eq.s32.totalorder %s17, 0
      %p44 = por %p42, %p43
      %s46 = sadd.s32 %s45, 1
      %p49 = scmp.eq.s32.totalorder %s11, 3
      %p50 = scmp.ne.s32.totalorder %s45, %s47
      %p51 = scmp.eq.s32.totalorder %s11, 0
      %p52 = por %p50, %p51
      %p53 = scmp.ne.s32.totalorder %s45, %s47
      %p54 = scmp.eq.s32.totalorder %s16, 3
      %p55 = por %p53, %p54
      %p56 = scmp.ne.s32.totalorder %s47, %s48
      %p57 = scmp.eq.s32.totalorder %s16, 0
      %p58 = por %p56, %p57
      %p59 = scmp.ne.s32.totalorder %s47, %s48
      %p60 = scmp.eq.s32.totalorder %s17, 3
      %p61 = por %p59, %p60
      %p63 = scmp.ne.s32.totalorder %s48, %s62
      %p64 = scmp.eq.s32.totalorder %s17, 0
      %p65 = por %p63, %p64
      %s67 = sadd.s32 %s66, 1
      %p70 = scmp.eq.s32.totalorder %s11, 3
      %p71 = scmp.ne.s32.totalorder %s66, %s68
      %p72 = scmp.eq.s32.totalorder %s11, 0
      %p73 = por %p71, %p72
      %p74 = scmp.ne.s32.totalorder %s66, %s68
      %p75 = scmp.eq.s32.totalorder %s16, 3
      %p76 = por %p74, %p75
      %p77 = scmp.ne.s32.totalorder %s68, %s69
      %p78 = scmp.eq.s32.totalorder %s16, 0
      %p79 = por %p77, %p78
      %p80 = scmp.ne.s32.totalorder %s68, %s69
      %p81 = scmp.eq.s32.totalorder %s17, 3
      %p82 = por %p80, %p81
      %p84 = scmp.ne.s32.totalorder %s69, %s83
      %p85 = scmp.eq.s32.totalorder %s17, 0
      %p86 = por %p84, %p85
      %s88 = sadd.s32 %s87, 1
      %p91 = scmp.eq.s32.totalorder %s11, 3
      %p92 = scmp.ne.s32.totalorder %s87, %s89
      %p93 = scmp.eq.s32.totalorder %s11, 0
      %p94 = por %p92, %p93
      %p95 = scmp.ne.s32.totalorder %s87, %s89
      %p96 = scmp.eq.s32.totalorder %s16, 3
      %p97 = por %p95, %p96
      %p98 = scmp.ne.s32.totalorder %s89, %s90
      %p99 = scmp.eq.s32.totalorder %s16, 0
      %p100 = por %p98, %p99
      %p101 = scmp.ne.s32.totalorder %s89, %s90
      %p102 = scmp.eq.s32.totalorder %s17, 3
      %p103 = por %p101, %p102
      %p105 = scmp.ne.s32.totalorder %s90, %s104
      %p106 = scmp.eq.s32.totalorder %s17, 0
      %p107 = por %p105, %p106
      %s108 = ssub.s32 %s11, %s18
      %p109 = scmp.eq.s32.totalorder %s108, 0
      %s111 = sadd.s32 %s110, 1
      %s112 = scalar_select %p109, %s110, %s111
      %p115 = pneg %p109
      %p116 = scmp.eq.s32.totalorder %s11, 3
      %p117 = por %p115, %p116
      %p118 = scmp.ne.s32.totalorder %s110, %s113
      %p119 = scmp.eq.s32.totalorder %s11, 0
      %p120 = por %p118, %p119
      %p121 = scmp.ne.s32.totalorder %s110, %s113
      %p122 = scmp.eq.s32.totalorder %s16, 3
      %p123 = por %p121, %p122
      %p124 = scmp.ne.s32.totalorder %s113, %s114
      %p125 = scmp.eq.s32.totalorder %s16, 0
      %p126 = por %p124, %p125
      %p127 = scmp.ne.s32.totalorder %s113, %s114
      %p128 = scmp.eq.s32.totalorder %s17, 3
      %p129 = por %p127, %p128
      %p131 = scmp.ne.s32.totalorder %s114, %s130
      %p132 = scmp.eq.s32.totalorder %s17, 0
      %p133 = por %p131, %p132
      %p134 = scmp.le.s32.totalorder 1, %s11
      %p135 = scmp.lt.s32.totalorder %s11, 5
      %p136 = pnand %p134, %p135
      %p137 = pneg %p136
      // Predicated region
      $region9: #{_lambda_.7} parent=5 // pred_check
        _
      $region10: #{_lambda_.7} parent=5 // pred_check_branch
        %139 = sbr.rel (%p136) target = $region12
      $region11: #{_lambda_.7} parent=5 // pred_region
        %s140 = ssub.s32 %s11, 1
        // Predicated region
        $region13: #{_lambda_.7} parent=11 // pred_check
          %p141 = pneg %p58
        $region14: #{_lambda_.7} parent=11 // pred_check_branch
          %143 = sbr.rel (%p141) target = $region16
        $region15: #{_lambda_.7} parent=11 // pred_region
          %145 = vsyncadd [#allocation3], 0
          %s146 = sshll.u32 %s1, 4
          %s147 = int_to_ptr.hbm [resolvable:$true] %s146
          %s148 = sshll.u32 [#allocation2], 4
          %s149 = int_to_ptr.vmem [resolvable:$true] %s148
          %154 = dma.hbm_to_vmem [thread:$0]  %s147, 3072, %s149, [#allocation3], 64, 64, 4
        $region16: #{_lambda_.7} parent=11 // pred_fallthru
          _
        // Predicated region
        $region17: #{_lambda_.7} parent=11 // pred_check
          %p155 = pneg %p79
        $region18: #{_lambda_.7} parent=11 // pred_check_branch
          %157 = sbr.rel (%p155) target = $region20
        $region19: #{_lambda_.7} parent=11 // pred_region
          _
        $region20: #{_lambda_.7} parent=11 // pred_fallthru
          _
        // Predicated region
        $region21: #{_lambda_.7} parent=11 // pred_check
          %p158 = pneg %p100
        $region22: #{_lambda_.7} parent=11 // pred_check_branch
          %160 = sbr.rel (%p158) target = $region24
        $region23: #{_lambda_.7} parent=11 // pred_region
          _
        $region24: #{_lambda_.7} parent=11 // pred_fallthru
          _
      $region12: #{_lambda_.7} parent=5 // pred_fallthru
        _
      %p161 = scmp.lt.s32.totalorder %s11, 4
      // Predicated region
      $region25: #{_lambda_.7} parent=5 // pred_check
        %p162 = pneg %p161
      $region26: #{_lambda_.7} parent=5 // pred_check_branch
        %164 = sbr.rel (%p162) target = $region28
      $region27: #{_lambda_.7} parent=5 // pred_region
        // Predicated region
        $region29: #{_lambda_.7} parent=27 // pred_check
          %p165 = pneg %p31
        $region30: #{_lambda_.7} parent=27 // pred_check_branch
          %167 = sbr.rel (%p165) target = $region32
        $region31: #{_lambda_.7} parent=27 // pred_region
          %p168 = scmp.lt.s32.totalorder %s11, 3
          %s169 = scalar_select %p168, %s11, 3
          %s170 = smul.addr %s169, 32
          %s171 = smul.addr %s170, 4
          %s172 = scalar_lea.vmem %s0, %s171
        $region32: #{_lambda_.7} parent=27 // pred_fallthru
          _
      $region28: #{_lambda_.7} parent=5 // pred_fallthru
        _
      %p173 = scmp.le.s32.totalorder 1, %s11
      %p174 = scmp.lt.s32.totalorder %s11, 5
      %p175 = pnand %p173, %p174
      %p176 = pneg %p175
      // Predicated region
      $region33: #{_lambda_.7} parent=5 // pred_check
        _
      $region34: #{_lambda_.7} parent=5 // pred_check_branch
        %178 = sbr.rel (%p175) target = $region36
      $region35: #{_lambda_.7} parent=5 // pred_region
        %s179 = ssub.s32 %s11, 1
        // Predicated region
        $region37: #{_lambda_.7} parent=35 // pred_check
          %p180 = pneg %p58
        $region38: #{_lambda_.7} parent=35 // pred_check_branch
          %182 = sbr.rel (%p180) target = $region40
        $region39: #{_lambda_.7} parent=35 // pred_region
          %184 = dma.done [#allocation3], 3072
        $region40: #{_lambda_.7} parent=35 // pred_fallthru
          _
        %p185 = scmp.lt.s32.totalorder %s16, 3
        %s186 = scalar_select %p185, %s16, 3
        %s187 = smul.addr %s186, 32
        %s188 = smul.addr %s187, 4
        %s189 = scalar_lea.vmem %s0, %s188
        %p190 = pneg %p37
        %p191 = pneg %p34
        %p192 = pneg %p58
        %p193 = pneg %p55
        %p194 = pneg %p79
        %p195 = pneg %p76
        %p196 = pneg %p100
        %p197 = pneg %p97
        %p198 = pneg %p126
        %p199 = pneg %p123
        %p200 = scmp.lt.s32.totalorder %s16, 3
        %s201 = scalar_select %p200, %s16, 3
        %s202 = smul.addr %s201, 64
        %s203 = smul.addr %s202, 8
        %s204 = scalar_lea.vmem %s4, %s203
        %p205 = scmp.lt.s32.totalorder %s16, 3
        %s206 = scalar_select %p205, %s16, 3
        %s207 = smul.addr %s206, 32
        %s208 = smul.addr %s207, 4
        %s209 = scalar_lea.vmem %s0, %s208
        %p210 = scmp.lt.s32.totalorder %s16, 3
        %s211 = scalar_select %p210, %s16, 3
        %s212 = smul.addr %s211, 64
        %s213 = smul.addr %s212, 8
        %s214 = scalar_lea.vmem %s4, %s213
        %v218 = vld [vmem:[%s209] sm:$0xf]
        %v219 = vld [vmem:[%s209 + $0x4] sm:$0xf]
        %v220 = vld [vmem:[%s209 + $0x8] sm:$0xf]
        %v221 = vld [vmem:[%s209 + $0xc] sm:$0xf]
        %v222 = vld [vmem:[%s209 + $0x10] sm:$0xf]
        %v223 = vld [vmem:[%s209 + $0x14] sm:$0xf]
        %v224 = vld [vmem:[%s209 + $0x18] sm:$0xf]
        %v225 = vld [vmem:[%s209 + $0x1c] sm:$0xf]
        %v226 = vld [vmem:[%s209 + $0x20] sm:$0xf]
        %v227 = vld [vmem:[%s209 + $0x24] sm:$0xf]
        %v228 = vld [vmem:[%s209 + $0x28] sm:$0xf]
        %v229 = vld [vmem:[%s209 + $0x2c] sm:$0xf]
        %v230 = vld [vmem:[%s209 + $0x30] sm:$0xf]
        %v231 = vld [vmem:[%s209 + $0x34] sm:$0xf]
        %v232 = vld [vmem:[%s209 + $0x38] sm:$0xf]
        %v233 = vld [vmem:[%s209 + $0x3c] sm:$0xf]
        %v234 = vld [vmem:[%s209 + $0x40] sm:$0xf]
        %v235 = vld [vmem:[%s209 + $0x44] sm:$0xf]
        %v236 = vld [vmem:[%s209 + $0x48] sm:$0xf]
        %v237 = vld [vmem:[%s209 + $0x4c] sm:$0xf]
        %v238 = vld [vmem:[%s209 + $0x50] sm:$0xf]
        %v239 = vld [vmem:[%s209 + $0x54] sm:$0xf]
        %v240 = vld [vmem:[%s209 + $0x58] sm:$0xf]
        %v241 = vld [vmem:[%s209 + $0x5c] sm:$0xf]
        %v242 = vld [vmem:[%s209 + $0x60] sm:$0xf]
        %v243 = vld [vmem:[%s209 + $0x64] sm:$0xf]
        %v244 = vld [vmem:[%s209 + $0x68] sm:$0xf]
        %v245 = vld [vmem:[%s209 + $0x6c] sm:$0xf]
        %v246 = vld [vmem:[%s209 + $0x70] sm:$0xf]
        %v247 = vld [vmem:[%s209 + $0x74] sm:$0xf]
        %v248 = vld [vmem:[%s209 + $0x78] sm:$0xf]
        %v249 = vld [vmem:[%s209 + $0x7c] sm:$0xf]
        %v250 = vunpack.c.l.bf16 %v218
        %v251 = vunpack.c.l.bf16 %v219
        %v252 = vunpack.c.l.bf16 %v220
        %v253 = vunpack.c.l.bf16 %v221
        %v254 = vunpack.c.l.bf16 %v222
        %v255 = vunpack.c.l.bf16 %v223
        %v256 = vunpack.c.l.bf16 %v224
        %v257 = vunpack.c.l.bf16 %v225
        %v258 = vunpack.c.l.bf16 %v226
        %v259 = vunpack.c.l.bf16 %v227
        %v260 = vunpack.c.l.bf16 %v228
        %v261 = vunpack.c.l.bf16 %v229
        %v262 = vunpack.c.l.bf16 %v230
        %v263 = vunpack.c.l.bf16 %v231
        %v264 = vunpack.c.l.bf16 %v232
        %v265 = vunpack.c.l.bf16 %v233
        %v266 = vunpack.c.l.bf16 %v234
        %v267 = vunpack.c.l.bf16 %v235
        %v268 = vunpack.c.l.bf16 %v236
        %v269 = vunpack.c.l.bf16 %v237
        %v270 = vunpack.c.l.bf16 %v238
        %v271 = vunpack.c.l.bf16 %v239
        %v272 = vunpack.c.l.bf16 %v240
        %v273 = vunpack.c.l.bf16 %v241
        %v274 = vunpack.c.l.bf16 %v242
        %v275 = vunpack.c.l.bf16 %v243
        %v276 = vunpack.c.l.bf16 %v244
        %v277 = vunpack.c.l.bf16 %v245
        %v278 = vunpack.c.l.bf16 %v246
        %v279 = vunpack.c.l.bf16 %v247
        %v280 = vunpack.c.l.bf16 %v248
        %v281 = vunpack.c.l.bf16 %v249
        %v282 = vld [vmem:[%s2] sm:$0x1]
        %v284 = vperm.slane %v282, 0
        %v286 = vmul.f32 %v250, %v284
        %v287 = vmul.f32 %v251, %v284
        %v288 = vmul.f32 %v252, %v284
        %v289 = vmul.f32 %v253, %v284
        %v290 = vmul.f32 %v254, %v284
        %v291 = vmul.f32 %v255, %v284
        %v292 = vmul.f32 %v256, %v284
        %v293 = vmul.f32 %v257, %v284
        %v294 = vmul.f32 %v258, %v284
        %v295 = vmul.f32 %v259, %v284
        %v296 = vmul.f32 %v260, %v284
        %v297 = vmul.f32 %v261, %v284
        %v298 = vmul.f32 %v262, %v284
        %v299 = vmul.f32 %v263, %v284
        %v300 = vmul.f32 %v264, %v284
        %v301 = vmul.f32 %v265, %v284
        %v302 = vmul.f32 %v266, %v284
        %v303 = vmul.f32 %v267, %v284
        %v304 = vmul.f32 %v268, %v284
        %v305 = vmul.f32 %v269, %v284
        %v306 = vmul.f32 %v270, %v284
        %v307 = vmul.f32 %v271, %v284
        %v308 = vmul.f32 %v272, %v284
        %v309 = vmul.f32 %v273, %v284
        %v310 = vmul.f32 %v274, %v284
        %v311 = vmul.f32 %v275, %v284
        %v312 = vmul.f32 %v276, %v284
        %v313 = vmul.f32 %v277, %v284
        %v314 = vmul.f32 %v278, %v284
        %v315 = vmul.f32 %v279, %v284
        %v316 = vmul.f32 %v280, %v284
        %v317 = vmul.f32 %v281, %v284
        %v318 = vld [vmem:[%s3] sm:$0x1]
        %v320 = vperm.slane %v318, 0
        %v322 = vadd.f32 %v286, %v320
        %v323 = vadd.f32 %v287, %v320
        %v324 = vadd.f32 %v288, %v320
        %v325 = vadd.f32 %v289, %v320
        %v326 = vadd.f32 %v290, %v320
        %v327 = vadd.f32 %v291, %v320
        %v328 = vadd.f32 %v292, %v320
        %v329 = vadd.f32 %v293, %v320
        %v330 = vadd.f32 %v294, %v320
        %v331 = vadd.f32 %v295, %v320
        %v332 = vadd.f32 %v296, %v320
        %v333 = vadd.f32 %v297, %v320
        %v334 = vadd.f32 %v298, %v320
        %v335 = vadd.f32 %v299, %v320
        %v336 = vadd.f32 %v300, %v320
        %v337 = vadd.f32 %v301, %v320
        %v338 = vadd.f32 %v302, %v320
        %v339 = vadd.f32 %v303, %v320
        %v340 = vadd.f32 %v304, %v320
        %v341 = vadd.f32 %v305, %v320
        %v342 = vadd.f32 %v306, %v320
        %v343 = vadd.f32 %v307, %v320
        %v344 = vadd.f32 %v308, %v320
        %v345 = vadd.f32 %v309, %v320
        %v346 = vadd.f32 %v310, %v320
        %v347 = vadd.f32 %v311, %v320
        %v348 = vadd.f32 %v312, %v320
        %v349 = vadd.f32 %v313, %v320
        %v350 = vadd.f32 %v314, %v320
        %v351 = vadd.f32 %v315, %v320
        %v352 = vadd.f32 %v316, %v320
        %v353 = vadd.f32 %v317, %v320
        %v354 = vmax.f32 %v322, 0.0
        %v355 = vmax.f32 %v323, 0.0
        %v356 = vmax.f32 %v324, 0.0
        %v357 = vmax.f32 %v325, 0.0
        %v358 = vmax.f32 %v326, 0.0
        %v359 = vmax.f32 %v327, 0.0
        %v360 = vmax.f32 %v328, 0.0
        %v361 = vmax.f32 %v329, 0.0
        %v362 = vmax.f32 %v330, 0.0
        %v363 = vmax.f32 %v331, 0.0
        %v364 = vmax.f32 %v332, 0.0
        %v365 = vmax.f32 %v333, 0.0
        %v366 = vmax.f32 %v334, 0.0
        %v367 = vmax.f32 %v335, 0.0
        %v368 = vmax.f32 %v336, 0.0
        %v369 = vmax.f32 %v337, 0.0
        %v370 = vmax.f32 %v338, 0.0
        %v371 = vmax.f32 %v339, 0.0
        %v372 = vmax.f32 %v340, 0.0
        %v373 = vmax.f32 %v341, 0.0
        %v374 = vmax.f32 %v342, 0.0
        %v375 = vmax.f32 %v343, 0.0
        %v376 = vmax.f32 %v344, 0.0
        %v377 = vmax.f32 %v345, 0.0
        %v378 = vmax.f32 %v346, 0.0
        %v379 = vmax.f32 %v347, 0.0
        %v380 = vmax.f32 %v348, 0.0
        %v381 = vmax.f32 %v349, 0.0
        %v382 = vmax.f32 %v350, 0.0
        %v383 = vmax.f32 %v351, 0.0
        %v384 = vmax.f32 %v352, 0.0
        %v385 = vmax.f32 %v353, 0.0
        %v386 = vpack.c.bf16 %v354, %v354
        %v387 = vpack.c.bf16 %v355, %v355
        %v388 = vpack.c.bf16 %v356, %v356
        %v389 = vpack.c.bf16 %v357, %v357
        %v390 = vpack.c.bf16 %v358, %v358
        %v391 = vpack.c.bf16 %v359, %v359
        %v392 = vpack.c.bf16 %v360, %v360
        %v393 = vpack.c.bf16 %v361, %v361
        %v394 = vpack.c.bf16 %v362, %v362
        %v395 = vpack.c.bf16 %v363, %v363
        %v396 = vpack.c.bf16 %v364, %v364
        %v397 = vpack.c.bf16 %v365, %v365
        %v398 = vpack.c.bf16 %v366, %v366
        %v399 = vpack.c.bf16 %v367, %v367
        %v400 = vpack.c.bf16 %v368, %v368
        %v401 = vpack.c.bf16 %v369, %v369
        %v402 = vpack.c.bf16 %v370, %v370
        %v403 = vpack.c.bf16 %v371, %v371
        %v404 = vpack.c.bf16 %v372, %v372
        %v405 = vpack.c.bf16 %v373, %v373
        %v406 = vpack.c.bf16 %v374, %v374
        %v407 = vpack.c.bf16 %v375, %v375
        %v408 = vpack.c.bf16 %v376, %v376
        %v409 = vpack.c.bf16 %v377, %v377
        %v410 = vpack.c.bf16 %v378, %v378
        %v411 = vpack.c.bf16 %v379, %v379
        %v412 = vpack.c.bf16 %v380, %v380
        %v413 = vpack.c.bf16 %v381, %v381
        %v414 = vpack.c.bf16 %v382, %v382
        %v415 = vpack.c.bf16 %v383, %v383
        %v416 = vpack.c.bf16 %v384, %v384
        %v417 = vpack.c.bf16 %v385, %v385
        %v450 = vunpack.c.l.b16 %v386
        %v451 = vunpack.c.l.b16 %v387
        %v452 = vunpack.c.l.b16 %v388
        %v453 = vunpack.c.l.b16 %v389
        %v454 = vunpack.c.l.b16 %v390
        %v455 = vunpack.c.l.b16 %v391
        %v456 = vunpack.c.l.b16 %v392
        %v457 = vunpack.c.l.b16 %v393
        %v458 = vunpack.c.l.b16 %v394
        %v459 = vunpack.c.l.b16 %v395
        %v460 = vunpack.c.l.b16 %v396
        %v461 = vunpack.c.l.b16 %v397
        %v462 = vunpack.c.l.b16 %v398
        %v463 = vunpack.c.l.b16 %v399
        %v464 = vunpack.c.l.b16 %v400
        %v465 = vunpack.c.l.b16 %v401
        %v466 = vunpack.c.l.b16 %v402
        %v467 = vunpack.c.l.b16 %v403
        %v468 = vunpack.c.l.b16 %v404
        %v469 = vunpack.c.l.b16 %v405
        %v470 = vunpack.c.l.b16 %v406
        %v471 = vunpack.c.l.b16 %v407
        %v472 = vunpack.c.l.b16 %v408
        %v473 = vunpack.c.l.b16 %v409
        %v474 = vunpack.c.l.b16 %v410
        %v475 = vunpack.c.l.b16 %v411
        %v476 = vunpack.c.l.b16 %v412
        %v477 = vunpack.c.l.b16 %v413
        %v478 = vunpack.c.l.b16 %v414
        %v479 = vunpack.c.l.b16 %v415
        %v480 = vunpack.c.l.b16 %v416
        %v481 = vunpack.c.l.b16 %v417
        %v482 = vpack.c.b16 %v451, %v450
        %v483 = vpack.c.b16 %v453, %v452
        %v484 = vpack.c.b16 %v455, %v454
        %v485 = vpack.c.b16 %v457, %v456
        %v486 = vpack.c.b16 %v459, %v458
        %v487 = vpack.c.b16 %v461, %v460
        %v488 = vpack.c.b16 %v463, %v462
        %v489 = vpack.c.b16 %v465, %v464
        %v490 = vpack.c.b16 %v467, %v466
        %v491 = vpack.c.b16 %v469, %v468
        %v492 = vpack.c.b16 %v471, %v470
        %v493 = vpack.c.b16 %v473, %v472
        %v494 = vpack.c.b16 %v475, %v474
        %v495 = vpack.c.b16 %v477, %v476
        %v496 = vpack.c.b16 %v479, %v478
        %v497 = vpack.c.b16 %v481, %v480
        %vm498 = vsmask.f32 256
        %v500 = vshrl.u32 %v482, 16
        %v502 = vrot.slane %v500, 7
        %v503 = vshll.u32 %v482, 16
        %v505 = vor.u32 %v502, %v503
        %v507 = vshrl.u32 %v483, 16
        %v509 = vrot.slane %v507, 7
        %v510 = vshll.u32 %v483, 16
        %v512 = vor.u32 %v509, %v510
        %v513 = vsel %vm498, %v502, %v512
        %v515 = vshrl.u32 %v484, 16
        %v517 = vrot.slane %v515, 7
        %v518 = vshll.u32 %v484, 16
        %v520 = vor.u32 %v517, %v518
        %v521 = vsel %vm498, %v509, %v520
        %v523 = vshrl.u32 %v485, 16
        %v525 = vrot.slane %v523, 7
        %v526 = vshll.u32 %v485, 16
        %v528 = vor.u32 %v525, %v526
        %v529 = vsel %vm498, %v517, %v528
        %v531 = vshrl.u32 %v486, 16
        %v533 = vrot.slane %v531, 7
        %v534 = vshll.u32 %v486, 16
        %v536 = vor.u32 %v533, %v534
        %v537 = vsel %vm498, %v525, %v536
        %v539 = vshrl.u32 %v487, 16
        %v541 = vrot.slane %v539, 7
        %v542 = vshll.u32 %v487, 16
        %v544 = vor.u32 %v541, %v542
        %v545 = vsel %vm498, %v533, %v544
        %v547 = vshrl.u32 %v488, 16
        %v549 = vrot.slane %v547, 7
        %v550 = vshll.u32 %v488, 16
        %v552 = vor.u32 %v549, %v550
        %v553 = vsel %vm498, %v541, %v552
        %v555 = vshrl.u32 %v489, 16
        %v557 = vrot.slane %v555, 7
        %v558 = vshll.u32 %v489, 16
        %v560 = vor.u32 %v557, %v558
        %v561 = vsel %vm498, %v549, %v560
        %v563 = vshrl.u32 %v490, 16
        %v565 = vrot.slane %v563, 7
        %v566 = vshll.u32 %v490, 16
        %v568 = vor.u32 %v565, %v566
        %v569 = vsel %vm498, %v557, %v568
        %v571 = vshrl.u32 %v491, 16
        %v573 = vrot.slane %v571, 7
        %v574 = vshll.u32 %v491, 16
        %v576 = vor.u32 %v573, %v574
        %v577 = vsel %vm498, %v565, %v576
        %v579 = vshrl.u32 %v492, 16
        %v581 = vrot.slane %v579, 7
        %v582 = vshll.u32 %v492, 16
        %v584 = vor.u32 %v581, %v582
        %v585 = vsel %vm498, %v573, %v584
        %v587 = vshrl.u32 %v493, 16
        %v589 = vrot.slane %v587, 7
        %v590 = vshll.u32 %v493, 16
        %v592 = vor.u32 %v589, %v590
        %v593 = vsel %vm498, %v581, %v592
        %v595 = vshrl.u32 %v494, 16
        %v597 = vrot.slane %v595, 7
        %v598 = vshll.u32 %v494, 16
        %v600 = vor.u32 %v597, %v598
        %v601 = vsel %vm498, %v589, %v600
        %v603 = vshrl.u32 %v495, 16
        %v605 = vrot.slane %v603, 7
        %v606 = vshll.u32 %v495, 16
        %v608 = vor.u32 %v605, %v606
        %v609 = vsel %vm498, %v597, %v608
        %v611 = vshrl.u32 %v496, 16
        %v613 = vrot.slane %v611, 7
        %v614 = vshll.u32 %v496, 16
        %v616 = vor.u32 %v613, %v614
        %v617 = vsel %vm498, %v605, %v616
        %v619 = vshrl.u32 %v497, 16
        %v621 = vrot.slane %v619, 7
        %v622 = vshll.u32 %v497, 16
        %v624 = vor.u32 %v621, %v622
        %v625 = vsel %vm498, %v613, %v624
        %vm643 = vcmask 1040384
        %vm644 = vmand %vm643, %vm498
        %v645 = vsel %vm644, 0, %v505
        %v646 = vsel %vm644, %v621, 0
        %v647 = vlaneseq
        %v648 = vshrl.u32 %v647, 7
        %v649 = vadd.s32 %v648, 8
        %v650 = vadd.s32 %v648, 16
        %v651 = vadd.s32 %v648, 24
        %v652 = vadd.s32 %v648, 32
        %v653 = vadd.s32 %v648, 40
        %v654 = vadd.s32 %v648, 48
        %v655 = vadd.s32 %v648, 56
        %v656 = vadd.s32 %v648, 64
        %v657 = vadd.s32 %v648, 72
        %v658 = vadd.s32 %v648, 80
        %v659 = vadd.s32 %v648, 88
        %v660 = vadd.s32 %v648, 96
        %v661 = vadd.s32 %v648, 104
        %v662 = vadd.s32 %v648, 112
        %v663 = vadd.s32 %v648, 120
        %v664 = vadd.s32 %v648, 128
        %v665 = vadd.s32 %v648, 136
        %v666 = vadd.s32 %v648, 144
        %v667 = vadd.s32 %v648, 152
        %v668 = vadd.s32 %v648, 160
        %v669 = vadd.s32 %v648, 168
        %v670 = vadd.s32 %v648, 176
        %v671 = vadd.s32 %v648, 184
        %v672 = vadd.s32 %v648, 192
        %v673 = vadd.s32 %v648, 200
        %v674 = vadd.s32 %v648, 208
        %v675 = vadd.s32 %v648, 216
        %v676 = vadd.s32 %v648, 224
        %v677 = vadd.s32 %v648, 232
        %v678 = vadd.s32 %v648, 240
        %v679 = vadd.s32 %v648, 248
        %vm680 = vcmp.lt.s32.totalorder %v648, 0
        %v681 = vsub.s32 0, %v648
        %v682 = vsel %vm680, %v681, %v648
        %v683 = vshrl.u32 %v682, 4
        %v684 = vand.u32 %v682, 15
        %v685 = vsub.s32 0, %v684
        %v686 = vsel %vm680, %v685, %v684
        %vm687 = vcmp.lt.s32.totalorder %v649, 0
        %v688 = vsub.s32 0, %v649
        %v689 = vsel %vm687, %v688, %v649
        %v690 = vshrl.u32 %v689, 4
        %v691 = vand.u32 %v689, 15
        %v692 = vsub.s32 0, %v691
        %v693 = vsel %vm687, %v692, %v691
        %vm694 = vcmp.lt.s32.totalorder %v650, 0
        %v695 = vsub.s32 0, %v650
        %v696 = vsel %vm694, %v695, %v650
        %v697 = vshrl.u32 %v696, 4
        %v698 = vand.u32 %v696, 15
        %v699 = vsub.s32 0, %v698
        %v700 = vsel %vm694, %v699, %v698
        %vm701 = vcmp.lt.s32.totalorder %v651, 0
        %v702 = vsub.s32 0, %v651
        %v703 = vsel %vm701, %v702, %v651
        %v704 = vshrl.u32 %v703, 4
        %v705 = vand.u32 %v703, 15
        %v706 = vsub.s32 0, %v705
        %v707 = vsel %vm701, %v706, %v705
        %vm708 = vcmp.lt.s32.totalorder %v652, 0
        %v709 = vsub.s32 0, %v652
        %v710 = vsel %vm708, %v709, %v652
        %v711 = vshrl.u32 %v710, 4
        %v712 = vand.u32 %v710, 15
        %v713 = vsub.s32 0, %v712
        %v714 = vsel %vm708, %v713, %v712
        %vm715 = vcmp.lt.s32.totalorder %v653, 0
        %v716 = vsub.s32 0, %v653
        %v717 = vsel %vm715, %v716, %v653
        %v718 = vshrl.u32 %v717, 4
        %v719 = vand.u32 %v717, 15
        %v720 = vsub.s32 0, %v719
        %v721 = vsel %vm715, %v720, %v719
        %vm722 = vcmp.lt.s32.totalorder %v654, 0
        %v723 = vsub.s32 0, %v654
        %v724 = vsel %vm722, %v723, %v654
        %v725 = vshrl.u32 %v724, 4
        %v726 = vand.u32 %v724, 15
        %v727 = vsub.s32 0, %v726
        %v728 = vsel %vm722, %v727, %v726
        %vm729 = vcmp.lt.s32.totalorder %v655, 0
        %v730 = vsub.s32 0, %v655
        %v731 = vsel %vm729, %v730, %v655
        %v732 = vshrl.u32 %v731, 4
        %v733 = vand.u32 %v731, 15
        %v734 = vsub.s32 0, %v733
        %v735 = vsel %vm729, %v734, %v733
        %vm736 = vcmp.lt.s32.totalorder %v656, 0
        %v737 = vsub.s32 0, %v656
        %v738 = vsel %vm736, %v737, %v656
        %v739 = vshrl.u32 %v738, 4
        %v740 = vand.u32 %v738, 15
        %v741 = vsub.s32 0, %v740
        %v742 = vsel %vm736, %v741, %v740
        %vm743 = vcmp.lt.s32.totalorder %v657, 0
        %v744 = vsub.s32 0, %v657
        %v745 = vsel %vm743, %v744, %v657
        %v746 = vshrl.u32 %v745, 4
        %v747 = vand.u32 %v745, 15
        %v748 = vsub.s32 0, %v747
        %v749 = vsel %vm743, %v748, %v747
        %vm750 = vcmp.lt.s32.totalorder %v658, 0
        %v751 = vsub.s32 0, %v658
        %v752 = vsel %vm750, %v751, %v658
        %v753 = vshrl.u32 %v752, 4
        %v754 = vand.u32 %v752, 15
        %v755 = vsub.s32 0, %v754
        %v756 = vsel %vm750, %v755, %v754
        %vm757 = vcmp.lt.s32.totalorder %v659, 0
        %v758 = vsub.s32 0, %v659
        %v759 = vsel %vm757, %v758, %v659
        %v760 = vshrl.u32 %v759, 4
        %v761 = vand.u32 %v759, 15
        %v762 = vsub.s32 0, %v761
        %v763 = vsel %vm757, %v762, %v761
        %vm764 = vcmp.lt.s32.totalorder %v660, 0
        %v765 = vsub.s32 0, %v660
        %v766 = vsel %vm764, %v765, %v660
        %v767 = vshrl.u32 %v766, 4
        %v768 = vand.u32 %v766, 15
        %v769 = vsub.s32 0, %v768
        %v770 = vsel %vm764, %v769, %v768
        %vm771 = vcmp.lt.s32.totalorder %v661, 0
        %v772 = vsub.s32 0, %v661
        %v773 = vsel %vm771, %v772, %v661
        %v774 = vshrl.u32 %v773, 4
        %v775 = vand.u32 %v773, 15
        %v776 = vsub.s32 0, %v775
        %v777 = vsel %vm771, %v776, %v775
        %vm778 = vcmp.lt.s32.totalorder %v662, 0
        %v779 = vsub.s32 0, %v662
        %v780 = vsel %vm778, %v779, %v662
        %v781 = vshrl.u32 %v780, 4
        %v782 = vand.u32 %v780, 15
        %v783 = vsub.s32 0, %v782
        %v784 = vsel %vm778, %v783, %v782
        %vm785 = vcmp.lt.s32.totalorder %v663, 0
        %v786 = vsub.s32 0, %v663
        %v787 = vsel %vm785, %v786, %v663
        %v788 = vshrl.u32 %v787, 4
        %v789 = vand.u32 %v787, 15
        %v790 = vsub.s32 0, %v789
        %v791 = vsel %vm785, %v790, %v789
        %vm792 = vcmp.lt.s32.totalorder %v664, 0
        %v793 = vsub.s32 0, %v664
        %v794 = vsel %vm792, %v793, %v664
        %v795 = vshrl.u32 %v794, 4
        %v796 = vand.u32 %v794, 15
        %v797 = vsub.s32 0, %v796
        %v798 = vsel %vm792, %v797, %v796
        %vm799 = vcmp.lt.s32.totalorder %v665, 0
        %v800 = vsub.s32 0, %v665
        %v801 = vsel %vm799, %v800, %v665
        %v802 = vshrl.u32 %v801, 4
        %v803 = vand.u32 %v801, 15
        %v804 = vsub.s32 0, %v803
        %v805 = vsel %vm799, %v804, %v803
        %vm806 = vcmp.lt.s32.totalorder %v666, 0
        %v807 = vsub.s32 0, %v666
        %v808 = vsel %vm806, %v807, %v666
        %v809 = vshrl.u32 %v808, 4
        %v810 = vand.u32 %v808, 15
        %v811 = vsub.s32 0, %v810
        %v812 = vsel %vm806, %v811, %v810
        %vm813 = vcmp.lt.s32.totalorder %v667, 0
        %v814 = vsub.s32 0, %v667
        %v815 = vsel %vm813, %v814, %v667
        %v816 = vshrl.u32 %v815, 4
        %v817 = vand.u32 %v815, 15
        %v818 = vsub.s32 0, %v817
        %v819 = vsel %vm813, %v818, %v817
        %vm820 = vcmp.lt.s32.totalorder %v668, 0
        %v821 = vsub.s32 0, %v668
        %v822 = vsel %vm820, %v821, %v668
        %v823 = vshrl.u32 %v822, 4
        %v824 = vand.u32 %v822, 15
        %v825 = vsub.s32 0, %v824
        %v826 = vsel %vm820, %v825, %v824
        %vm827 = vcmp.lt.s32.totalorder %v669, 0
        %v828 = vsub.s32 0, %v669
        %v829 = vsel %vm827, %v828, %v669
        %v830 = vshrl.u32 %v829, 4
        %v831 = vand.u32 %v829, 15
        %v832 = vsub.s32 0, %v831
        %v833 = vsel %vm827, %v832, %v831
        %vm834 = vcmp.lt.s32.totalorder %v670, 0
        %v835 = vsub.s32 0, %v670
        %v836 = vsel %vm834, %v835, %v670
        %v837 = vshrl.u32 %v836, 4
        %v838 = vand.u32 %v836, 15
        %v839 = vsub.s32 0, %v838
        %v840 = vsel %vm834, %v839, %v838
        %vm841 = vcmp.lt.s32.totalorder %v671, 0
        %v842 = vsub.s32 0, %v671
        %v843 = vsel %vm841, %v842, %v671
        %v844 = vshrl.u32 %v843, 4
        %v845 = vand.u32 %v843, 15
        %v846 = vsub.s32 0, %v845
        %v847 = vsel %vm841, %v846, %v845
        %vm848 = vcmp.lt.s32.totalorder %v672, 0
        %v849 = vsub.s32 0, %v672
        %v850 = vsel %vm848, %v849, %v672
        %v851 = vshrl.u32 %v850, 4
        %v852 = vand.u32 %v850, 15
        %v853 = vsub.s32 0, %v852
        %v854 = vsel %vm848, %v853, %v852
        %vm855 = vcmp.lt.s32.totalorder %v673, 0
        %v856 = vsub.s32 0, %v673
        %v857 = vsel %vm855, %v856, %v673
        %v858 = vshrl.u32 %v857, 4
        %v859 = vand.u32 %v857, 15
        %v860 = vsub.s32 0, %v859
        %v861 = vsel %vm855, %v860, %v859
        %vm862 = vcmp.lt.s32.totalorder %v674, 0
        %v863 = vsub.s32 0, %v674
        %v864 = vsel %vm862, %v863, %v674
        %v865 = vshrl.u32 %v864, 4
        %v866 = vand.u32 %v864, 15
        %v867 = vsub.s32 0, %v866
        %v868 = vsel %vm862, %v867, %v866
        %vm869 = vcmp.lt.s32.totalorder %v675, 0
        %v870 = vsub.s32 0, %v675
        %v871 = vsel %vm869, %v870, %v675
        %v872 = vshrl.u32 %v871, 4
        %v873 = vand.u32 %v871, 15
        %v874 = vsub.s32 0, %v873
        %v875 = vsel %vm869, %v874, %v873
        %vm876 = vcmp.lt.s32.totalorder %v676, 0
        %v877 = vsub.s32 0, %v676
        %v878 = vsel %vm876, %v877, %v676
        %v879 = vshrl.u32 %v878, 4
        %v880 = vand.u32 %v878, 15
        %v881 = vsub.s32 0, %v880
        %v882 = vsel %vm876, %v881, %v880
        %vm883 = vcmp.lt.s32.totalorder %v677, 0
        %v884 = vsub.s32 0, %v677
        %v885 = vsel %vm883, %v884, %v677
        %v886 = vshrl.u32 %v885, 4
        %v887 = vand.u32 %v885, 15
        %v888 = vsub.s32 0, %v887
        %v889 = vsel %vm883, %v888, %v887
        %vm890 = vcmp.lt.s32.totalorder %v678, 0
        %v891 = vsub.s32 0, %v678
        %v892 = vsel %vm890, %v891, %v678
        %v893 = vshrl.u32 %v892, 4
        %v894 = vand.u32 %v892, 15
        %v895 = vsub.s32 0, %v894
        %v896 = vsel %vm890, %v895, %v894
        %vm897 = vcmp.lt.s32.totalorder %v679, 0
        %v898 = vsub.s32 0, %v679
        %v899 = vsel %vm897, %v898, %v679
        %v900 = vshrl.u32 %v899, 4
        %v901 = vand.u32 %v899, 15
        %v902 = vsub.s32 0, %v901
        %v903 = vsel %vm897, %v902, %v901
        %vm904 = vcmp.ne.s32.totalorder %v686, 0
        %vm905 = vcmp.ne.s32.totalorder %v693, 0
        %vm906 = vcmp.ne.s32.totalorder %v700, 0
        %vm907 = vcmp.ne.s32.totalorder %v707, 0
        %vm908 = vcmp.ne.s32.totalorder %v714, 0
        %vm909 = vcmp.ne.s32.totalorder %v721, 0
        %vm910 = vcmp.ne.s32.totalorder %v728, 0
        %vm911 = vcmp.ne.s32.totalorder %v735, 0
        %vm912 = vcmp.ne.s32.totalorder %v742, 0
        %vm913 = vcmp.ne.s32.totalorder %v749, 0
        %vm914 = vcmp.ne.s32.totalorder %v756, 0
        %vm915 = vcmp.ne.s32.totalorder %v763, 0
        %vm916 = vcmp.ne.s32.totalorder %v770, 0
        %vm917 = vcmp.ne.s32.totalorder %v777, 0
        %vm918 = vcmp.ne.s32.totalorder %v784, 0
        %vm919 = vcmp.ne.s32.totalorder %v791, 0
        %vm920 = vcmp.ne.s32.totalorder %v798, 0
        %vm921 = vcmp.ne.s32.totalorder %v805, 0
        %vm922 = vcmp.ne.s32.totalorder %v812, 0
        %vm923 = vcmp.ne.s32.totalorder %v819, 0
        %vm924 = vcmp.ne.s32.totalorder %v826, 0
        %vm925 = vcmp.ne.s32.totalorder %v833, 0
        %vm926 = vcmp.ne.s32.totalorder %v840, 0
        %vm927 = vcmp.ne.s32.totalorder %v847, 0
        %vm928 = vcmp.ne.s32.totalorder %v854, 0
        %vm929 = vcmp.ne.s32.totalorder %v861, 0
        %vm930 = vcmp.ne.s32.totalorder %v868, 0
        %vm931 = vcmp.ne.s32.totalorder %v875, 0
        %vm932 = vcmp.ne.s32.totalorder %v882, 0
        %vm933 = vcmp.ne.s32.totalorder %v889, 0
        %vm934 = vcmp.ne.s32.totalorder %v896, 0
        %vm935 = vcmp.ne.s32.totalorder %v903, 0
        %vm936 = vcmp.lt.s32.totalorder %v686, 0
        %vm937 = vcmp.lt.s32.totalorder %v693, 0
        %vm938 = vcmp.lt.s32.totalorder %v700, 0
        %vm939 = vcmp.lt.s32.totalorder %v707, 0
        %vm940 = vcmp.lt.s32.totalorder %v714, 0
        %vm941 = vcmp.lt.s32.totalorder %v721, 0
        %vm942 = vcmp.lt.s32.totalorder %v728, 0
        %vm943 = vcmp.lt.s32.totalorder %v735, 0
        %vm944 = vcmp.lt.s32.totalorder %v742, 0
        %vm945 = vcmp.lt.s32.totalorder %v749, 0
        %vm946 = vcmp.lt.s32.totalorder %v756, 0
        %vm947 = vcmp.lt.s32.totalorder %v763, 0
        %vm948 = vcmp.lt.s32.totalorder %v770, 0
        %vm949 = vcmp.lt.s32.totalorder %v777, 0
        %vm950 = vcmp.lt.s32.totalorder %v784, 0
        %vm951 = vcmp.lt.s32.totalorder %v791, 0
        %vm952 = vcmp.lt.s32.totalorder %v798, 0
        %vm953 = vcmp.lt.s32.totalorder %v805, 0
        %vm954 = vcmp.lt.s32.totalorder %v812, 0
        %vm955 = vcmp.lt.s32.totalorder %v819, 0
        %vm956 = vcmp.lt.s32.totalorder %v826, 0
        %vm957 = vcmp.lt.s32.totalorder %v833, 0
        %vm958 = vcmp.lt.s32.totalorder %v840, 0
        %vm959 = vcmp.lt.s32.totalorder %v847, 0
        %vm960 = vcmp.lt.s32.totalorder %v854, 0
        %vm961 = vcmp.lt.s32.totalorder %v861, 0
        %vm962 = vcmp.lt.s32.totalorder %v868, 0
        %vm963 = vcmp.lt.s32.totalorder %v875, 0
        %vm964 = vcmp.lt.s32.totalorder %v882, 0
        %vm965 = vcmp.lt.s32.totalorder %v889, 0
        %vm966 = vcmp.lt.s32.totalorder %v896, 0
        %vm967 = vcmp.lt.s32.totalorder %v903, 0
        %vm968 = vmand %vm936, %vm904
        %vm969 = vmand %vm937, %vm905
        %vm970 = vmand %vm938, %vm906
        %vm971 = vmand %vm939, %vm907
        %vm972 = vmand %vm940, %vm908
        %vm973 = vmand %vm941, %vm909
        %vm974 = vmand %vm942, %vm910
        %vm975 = vmand %vm943, %vm911
        %vm976 = vmand %vm944, %vm912
        %vm977 = vmand %vm945, %vm913
        %vm978 = vmand %vm946, %vm914
        %vm979 = vmand %vm947, %vm915
        %vm980 = vmand %vm948, %vm916
        %vm981 = vmand %vm949, %vm917
        %vm982 = vmand %vm950, %vm918
        %vm983 = vmand %vm951, %vm919
        %vm984 = vmand %vm952, %vm920
        %vm985 = vmand %vm953, %vm921
        %vm986 = vmand %vm954, %vm922
        %vm987 = vmand %vm955, %vm923
        %vm988 = vmand %vm956, %vm924
        %vm989 = vmand %vm957, %vm925
        %vm990 = vmand %vm958, %vm926
        %vm991 = vmand %vm959, %vm927
        %vm992 = vmand %vm960, %vm928
        %vm993 = vmand %vm961, %vm929
        %vm994 = vmand %vm962, %vm930
        %vm995 = vmand %vm963, %vm931
        %vm996 = vmand %vm964, %vm932
        %vm997 = vmand %vm965, %vm933
        %vm998 = vmand %vm966, %vm934
        %vm999 = vmand %vm967, %vm935
        %v1000 = vadd.s32 %v686, 16
        %v1001 = vadd.s32 %v693, 16
        %v1002 = vadd.s32 %v700, 16
        %v1003 = vadd.s32 %v707, 16
        %v1004 = vadd.s32 %v714, 16
        %v1005 = vadd.s32 %v721, 16
        %v1006 = vadd.s32 %v728, 16
        %v1007 = vadd.s32 %v735, 16
        %v1008 = vadd.s32 %v742, 16
        %v1009 = vadd.s32 %v749, 16
        %v1010 = vadd.s32 %v756, 16
        %v1011 = vadd.s32 %v763, 16
        %v1012 = vadd.s32 %v770, 16
        %v1013 = vadd.s32 %v777, 16
        %v1014 = vadd.s32 %v784, 16
        %v1015 = vadd.s32 %v791, 16
        %v1016 = vadd.s32 %v798, 16
        %v1017 = vadd.s32 %v805, 16
        %v1018 = vadd.s32 %v812, 16
        %v1019 = vadd.s32 %v819, 16
        %v1020 = vadd.s32 %v826, 16
        %v1021 = vadd.s32 %v833, 16
        %v1022 = vadd.s32 %v840, 16
        %v1023 = vadd.s32 %v847, 16
        %v1024 = vadd.s32 %v854, 16
        %v1025 = vadd.s32 %v861, 16
        %v1026 = vadd.s32 %v868, 16
        %v1027 = vadd.s32 %v875, 16
        %v1028 = vadd.s32 %v882, 16
        %v1029 = vadd.s32 %v889, 16
        %v1030 = vadd.s32 %v896, 16
        %v1031 = vadd.s32 %v903, 16
        %v1032 = vsel %vm968, %v1000, %v686
        %v1033 = vsel %vm969, %v1001, %v693
        %v1034 = vsel %vm970, %v1002, %v700
        %v1035 = vsel %vm971, %v1003, %v707
        %v1036 = vsel %vm972, %v1004, %v714
        %v1037 = vsel %vm973, %v1005, %v721
        %v1038 = vsel %vm974, %v1006, %v728
        %v1039 = vsel %vm975, %v1007, %v735
        %v1040 = vsel %vm976, %v1008, %v742
        %v1041 = vsel %vm977, %v1009, %v749
        %v1042 = vsel %vm978, %v1010, %v756
        %v1043 = vsel %vm979, %v1011, %v763
        %v1044 = vsel %vm980, %v1012, %v770
        %v1045 = vsel %vm981, %v1013, %v777
        %v1046 = vsel %vm982, %v1014, %v784
        %v1047 = vsel %vm983, %v1015, %v791
        %v1048 = vsel %vm984, %v1016, %v798
        %v1049 = vsel %vm985, %v1017, %v805
        %v1050 = vsel %vm986, %v1018, %v812
        %v1051 = vsel %vm987, %v1019, %v819
        %v1052 = vsel %vm988, %v1020, %v826
        %v1053 = vsel %vm989, %v1021, %v833
        %v1054 = vsel %vm990, %v1022, %v840
        %v1055 = vsel %vm991, %v1023, %v847
        %v1056 = vsel %vm992, %v1024, %v854
        %v1057 = vsel %vm993, %v1025, %v861
        %v1058 = vsel %vm994, %v1026, %v868
        %v1059 = vsel %vm995, %v1027, %v875
        %v1060 = vsel %vm996, %v1028, %v882
        %v1061 = vsel %vm997, %v1029, %v889
        %v1062 = vsel %vm998, %v1030, %v896
        %v1063 = vsel %vm999, %v1031, %v903
        %vm1064 = vcmp.ne.s32.totalorder %v1032, 0
        %vm1065 = vcmp.ne.s32.totalorder %v1033, 0
        %vm1066 = vcmp.ne.s32.totalorder %v1034, 0
        %vm1067 = vcmp.ne.s32.totalorder %v1035, 0
        %vm1068 = vcmp.ne.s32.totalorder %v1036, 0
        %vm1069 = vcmp.ne.s32.totalorder %v1037, 0
        %vm1070 = vcmp.ne.s32.totalorder %v1038, 0
        %vm1071 = vcmp.ne.s32.totalorder %v1039, 0
        %vm1072 = vcmp.ne.s32.totalorder %v1040, 0
        %vm1073 = vcmp.ne.s32.totalorder %v1041, 0
        %vm1074 = vcmp.ne.s32.totalorder %v1042, 0
        %vm1075 = vcmp.ne.s32.totalorder %v1043, 0
        %vm1076 = vcmp.ne.s32.totalorder %v1044, 0
        %vm1077 = vcmp.ne.s32.totalorder %v1045, 0
        %vm1078 = vcmp.ne.s32.totalorder %v1046, 0
        %vm1079 = vcmp.ne.s32.totalorder %v1047, 0
        %vm1080 = vcmp.ne.s32.totalorder %v1048, 0
        %vm1081 = vcmp.ne.s32.totalorder %v1049, 0
        %vm1082 = vcmp.ne.s32.totalorder %v1050, 0
        %vm1083 = vcmp.ne.s32.totalorder %v1051, 0
        %vm1084 = vcmp.ne.s32.totalorder %v1052, 0
        %vm1085 = vcmp.ne.s32.totalorder %v1053, 0
        %vm1086 = vcmp.ne.s32.totalorder %v1054, 0
        %vm1087 = vcmp.ne.s32.totalorder %v1055, 0
        %vm1088 = vcmp.ne.s32.totalorder %v1056, 0
        %vm1089 = vcmp.ne.s32.totalorder %v1057, 0
        %vm1090 = vcmp.ne.s32.totalorder %v1058, 0
        %vm1091 = vcmp.ne.s32.totalorder %v1059, 0
        %vm1092 = vcmp.ne.s32.totalorder %v1060, 0
        %vm1093 = vcmp.ne.s32.totalorder %v1061, 0
        %vm1094 = vcmp.ne.s32.totalorder %v1062, 0
        %vm1095 = vcmp.ne.s32.totalorder %v1063, 0
        %vm1096 = vcmp.ne.s32.totalorder %v1032, 15
        %vm1097 = vcmp.ne.s32.totalorder %v1033, 15
        %vm1098 = vcmp.ne.s32.totalorder %v1034, 15
        %vm1099 = vcmp.ne.s32.totalorder %v1035, 15
        %vm1100 = vcmp.ne.s32.totalorder %v1036, 15
        %vm1101 = vcmp.ne.s32.totalorder %v1037, 15
        %vm1102 = vcmp.ne.s32.totalorder %v1038, 15
        %vm1103 = vcmp.ne.s32.totalorder %v1039, 15
        %vm1104 = vcmp.ne.s32.totalorder %v1040, 15
        %vm1105 = vcmp.ne.s32.totalorder %v1041, 15
        %vm1106 = vcmp.ne.s32.totalorder %v1042, 15
        %vm1107 = vcmp.ne.s32.totalorder %v1043, 15
        %vm1108 = vcmp.ne.s32.totalorder %v1044, 15
        %vm1109 = vcmp.ne.s32.totalorder %v1045, 15
        %vm1110 = vcmp.ne.s32.totalorder %v1046, 15
        %vm1111 = vcmp.ne.s32.totalorder %v1047, 15
        %vm1112 = vcmp.ne.s32.totalorder %v1048, 15
        %vm1113 = vcmp.ne.s32.totalorder %v1049, 15
        %vm1114 = vcmp.ne.s32.totalorder %v1050, 15
        %vm1115 = vcmp.ne.s32.totalorder %v1051, 15
        %vm1116 = vcmp.ne.s32.totalorder %v1052, 15
        %vm1117 = vcmp.ne.s32.totalorder %v1053, 15
        %vm1118 = vcmp.ne.s32.totalorder %v1054, 15
        %vm1119 = vcmp.ne.s32.totalorder %v1055, 15
        %vm1120 = vcmp.ne.s32.totalorder %v1056, 15
        %vm1121 = vcmp.ne.s32.totalorder %v1057, 15
        %vm1122 = vcmp.ne.s32.totalorder %v1058, 15
        %vm1123 = vcmp.ne.s32.totalorder %v1059, 15
        %vm1124 = vcmp.ne.s32.totalorder %v1060, 15
        %vm1125 = vcmp.ne.s32.totalorder %v1061, 15
        %vm1126 = vcmp.ne.s32.totalorder %v1062, 15
        %vm1127 = vcmp.ne.s32.totalorder %v1063, 15
        %vm1128 = vmpackc.low %vm1066, %vm1066
        %vm1129 = vmpackc.low %vm1067, %vm1067
        %vm1130 = vmpackc.low %vm1068, %vm1068
        %vm1131 = vmpackc.low %vm1069, %vm1069
        %vm1132 = vmpackc.low %vm1070, %vm1070
        %vm1133 = vmpackc.low %vm1071, %vm1071
        %vm1134 = vmpackc.low %vm1072, %vm1072
        %vm1135 = vmpackc.low %vm1073, %vm1073
        %vm1136 = vmpackc.low %vm1074, %vm1074
        %vm1137 = vmpackc.low %vm1075, %vm1075
        %vm1138 = vmpackc.low %vm1076, %vm1076
        %vm1139 = vmpackc.low %vm1077, %vm1077
        %vm1140 = vmpackc.low %vm1078, %vm1078
        %vm1141 = vmpackc.low %vm1079, %vm1079
        %vm1142 = vmpackc.low %vm1080, %vm1080
        %vm1143 = vmpackc.low %vm1081, %vm1081
        %vm1144 = vmpackc.low %vm1082, %vm1082
        %vm1145 = vmpackc.low %vm1083, %vm1083
        %vm1146 = vmpackc.low %vm1084, %vm1084
        %vm1147 = vmpackc.low %vm1085, %vm1085
        %vm1148 = vmpackc.low %vm1086, %vm1086
        %vm1149 = vmpackc.low %vm1087, %vm1087
        %vm1150 = vmpackc.low %vm1088, %vm1088
        %vm1151 = vmpackc.low %vm1089, %vm1089
        %vm1152 = vmpackc.low %vm1090, %vm1090
        %vm1153 = vmpackc.low %vm1091, %vm1091
        %vm1154 = vmpackc.low %vm1092, %vm1092
        %vm1155 = vmpackc.low %vm1093, %vm1093
        %vm1156 = vmpackc.low %vm1094, %vm1094
        %vm1157 = vmpackc.low %vm1095, %vm1095
        %v1158 = vsel %vm1128, 65537, 0
        %v1159 = vsel %vm1129, 65537, 0
        %v1160 = vsel %vm1130, 65537, 0
        %v1161 = vsel %vm1131, 65537, 0
        %v1162 = vsel %vm1132, 65537, 0
        %v1163 = vsel %vm1133, 65537, 0
        %v1164 = vsel %vm1134, 65537, 0
        %v1165 = vsel %vm1135, 65537, 0
        %v1166 = vsel %vm1136, 65537, 0
        %v1167 = vsel %vm1137, 65537, 0
        %v1168 = vsel %vm1138, 65537, 0
        %v1169 = vsel %vm1139, 65537, 0
        %v1170 = vsel %vm1140, 65537, 0
        %v1171 = vsel %vm1141, 65537, 0
        %v1172 = vsel %vm1142, 65537, 0
        %v1173 = vsel %vm1143, 65537, 0
        %v1174 = vsel %vm1144, 65537, 0
        %v1175 = vsel %vm1145, 65537, 0
        %v1176 = vsel %vm1146, 65537, 0
        %v1177 = vsel %vm1147, 65537, 0
        %v1178 = vsel %vm1148, 65537, 0
        %v1179 = vsel %vm1149, 65537, 0
        %v1180 = vsel %vm1150, 65537, 0
        %v1181 = vsel %vm1151, 65537, 0
        %v1182 = vsel %vm1152, 65537, 0
        %v1183 = vsel %vm1153, 65537, 0
        %v1184 = vsel %vm1154, 65537, 0
        %v1185 = vsel %vm1155, 65537, 0
        %v1186 = vsel %vm1156, 65537, 0
        %v1187 = vsel %vm1157, 65537, 0
        %v1188 = vunpack.c.l.b16 %v1158
        %v1189 = vunpack.c.l.b16 %v1159
        %v1190 = vunpack.c.l.b16 %v1160
        %v1191 = vunpack.c.l.b16 %v1161
        %v1192 = vunpack.c.l.b16 %v1162
        %v1193 = vunpack.c.l.b16 %v1163
        %v1194 = vunpack.c.l.b16 %v1164
        %v1195 = vunpack.c.l.b16 %v1165
        %v1196 = vunpack.c.l.b16 %v1166
        %v1197 = vunpack.c.l.b16 %v1167
        %v1198 = vunpack.c.l.b16 %v1168
        %v1199 = vunpack.c.l.b16 %v1169
        %v1200 = vunpack.c.l.b16 %v1170
        %v1201 = vunpack.c.l.b16 %v1171
        %v1202 = vunpack.c.l.b16 %v1172
        %v1203 = vunpack.c.l.b16 %v1173
        %v1204 = vunpack.c.l.b16 %v1174
        %v1205 = vunpack.c.l.b16 %v1175
        %v1206 = vunpack.c.l.b16 %v1176
        %v1207 = vunpack.c.l.b16 %v1177
        %v1208 = vunpack.c.l.b16 %v1178
        %v1209 = vunpack.c.l.b16 %v1179
        %v1210 = vunpack.c.l.b16 %v1180
        %v1211 = vunpack.c.l.b16 %v1181
        %v1212 = vunpack.c.l.b16 %v1182
        %v1213 = vunpack.c.l.b16 %v1183
        %v1214 = vunpack.c.l.b16 %v1184
        %v1215 = vunpack.c.l.b16 %v1185
        %v1216 = vunpack.c.l.b16 %v1186
        %v1217 = vunpack.c.l.b16 %v1187
        %v1218 = vpack.c.b16 %v1189, %v1188
        %v1219 = vpack.c.b16 %v1191, %v1190
        %v1220 = vpack.c.b16 %v1193, %v1192
        %v1221 = vpack.c.b16 %v1195, %v1194
        %v1222 = vpack.c.b16 %v1197, %v1196
        %v1223 = vpack.c.b16 %v1199, %v1198
        %v1224 = vpack.c.b16 %v1201, %v1200
        %v1225 = vpack.c.b16 %v1203, %v1202
        %v1226 = vpack.c.b16 %v1205, %v1204
        %v1227 = vpack.c.b16 %v1207, %v1206
        %v1228 = vpack.c.b16 %v1209, %v1208
        %v1229 = vpack.c.b16 %v1211, %v1210
        %v1230 = vpack.c.b16 %v1213, %v1212
        %v1231 = vpack.c.b16 %v1215, %v1214
        %v1232 = vpack.c.b16 %v1217, %v1216
        %v1233 = vunpack.c.l.b16 %v1218
        %v1234 = vunpack.c.h.b16 %v1218
        %v1235 = vunpack.c.l.b16 0
        %v1236 = vunpack.c.h.b16 0
        %vm1237 = vcmp.ne.s32.totalorder %v1233, %v1235
        %vm1238 = vcmp.ne.s32.totalorder %v1234, %v1236
        %vm1239 = vmpackc.low %vm1238, %vm1237
        %v1240 = vunpack.c.l.b16 %v1219
        %v1241 = vunpack.c.h.b16 %v1219
        %v1242 = vunpack.c.l.b16 0
        %v1243 = vunpack.c.h.b16 0
        %vm1244 = vcmp.ne.s32.totalorder %v1240, %v1242
        %vm1245 = vcmp.ne.s32.totalorder %v1241, %v1243
        %vm1246 = vmpackc.low %vm1245, %vm1244
        %v1247 = vunpack.c.l.b16 %v1220
        %v1248 = vunpack.c.h.b16 %v1220
        %v1249 = vunpack.c.l.b16 0
        %v1250 = vunpack.c.h.b16 0
        %vm1251 = vcmp.ne.s32.totalorder %v1247, %v1249
        %vm1252 = vcmp.ne.s32.totalorder %v1248, %v1250
        %vm1253 = vmpackc.low %vm1252, %vm1251
        %v1254 = vunpack.c.l.b16 %v1221
        %v1255 = vunpack.c.h.b16 %v1221
        %v1256 = vunpack.c.l.b16 0
        %v1257 = vunpack.c.h.b16 0
        %vm1258 = vcmp.ne.s32.totalorder %v1254, %v1256
        %vm1259 = vcmp.ne.s32.totalorder %v1255, %v1257
        %vm1260 = vmpackc.low %vm1259, %vm1258
        %v1261 = vunpack.c.l.b16 %v1222
        %v1262 = vunpack.c.h.b16 %v1222
        %v1263 = vunpack.c.l.b16 0
        %v1264 = vunpack.c.h.b16 0
        %vm1265 = vcmp.ne.s32.totalorder %v1261, %v1263
        %vm1266 = vcmp.ne.s32.totalorder %v1262, %v1264
        %vm1267 = vmpackc.low %vm1266, %vm1265
        %v1268 = vunpack.c.l.b16 %v1223
        %v1269 = vunpack.c.h.b16 %v1223
        %v1270 = vunpack.c.l.b16 0
        %v1271 = vunpack.c.h.b16 0
        %vm1272 = vcmp.ne.s32.totalorder %v1268, %v1270
        %vm1273 = vcmp.ne.s32.totalorder %v1269, %v1271
        %vm1274 = vmpackc.low %vm1273, %vm1272
        %v1275 = vunpack.c.l.b16 %v1224
        %v1276 = vunpack.c.h.b16 %v1224
        %v1277 = vunpack.c.l.b16 0
        %v1278 = vunpack.c.h.b16 0
        %vm1279 = vcmp.ne.s32.totalorder %v1275, %v1277
        %vm1280 = vcmp.ne.s32.totalorder %v1276, %v1278
        %vm1281 = vmpackc.low %vm1280, %vm1279
        %v1282 = vunpack.c.l.b16 %v1225
        %v1283 = vunpack.c.h.b16 %v1225
        %v1284 = vunpack.c.l.b16 0
        %v1285 = vunpack.c.h.b16 0
        %vm1286 = vcmp.ne.s32.totalorder %v1282, %v1284
        %vm1287 = vcmp.ne.s32.totalorder %v1283, %v1285
        %vm1288 = vmpackc.low %vm1287, %vm1286
        %v1289 = vunpack.c.l.b16 %v1226
        %v1290 = vunpack.c.h.b16 %v1226
        %v1291 = vunpack.c.l.b16 0
        %v1292 = vunpack.c.h.b16 0
        %vm1293 = vcmp.ne.s32.totalorder %v1289, %v1291
        %vm1294 = vcmp.ne.s32.totalorder %v1290, %v1292
        %vm1295 = vmpackc.low %vm1294, %vm1293
        %v1296 = vunpack.c.l.b16 %v1227
        %v1297 = vunpack.c.h.b16 %v1227
        %v1298 = vunpack.c.l.b16 0
        %v1299 = vunpack.c.h.b16 0
        %vm1300 = vcmp.ne.s32.totalorder %v1296, %v1298
        %vm1301 = vcmp.ne.s32.totalorder %v1297, %v1299
        %vm1302 = vmpackc.low %vm1301, %vm1300
        %v1303 = vunpack.c.l.b16 %v1228
        %v1304 = vunpack.c.h.b16 %v1228
        %v1305 = vunpack.c.l.b16 0
        %v1306 = vunpack.c.h.b16 0
        %vm1307 = vcmp.ne.s32.totalorder %v1303, %v1305
        %vm1308 = vcmp.ne.s32.totalorder %v1304, %v1306
        %vm1309 = vmpackc.low %vm1308, %vm1307
        %v1310 = vunpack.c.l.b16 %v1229
        %v1311 = vunpack.c.h.b16 %v1229
        %v1312 = vunpack.c.l.b16 0
        %v1313 = vunpack.c.h.b16 0
        %vm1314 = vcmp.ne.s32.totalorder %v1310, %v1312
        %vm1315 = vcmp.ne.s32.totalorder %v1311, %v1313
        %vm1316 = vmpackc.low %vm1315, %vm1314
        %v1317 = vunpack.c.l.b16 %v1230
        %v1318 = vunpack.c.h.b16 %v1230
        %v1319 = vunpack.c.l.b16 0
        %v1320 = vunpack.c.h.b16 0
        %vm1321 = vcmp.ne.s32.totalorder %v1317, %v1319
        %vm1322 = vcmp.ne.s32.totalorder %v1318, %v1320
        %vm1323 = vmpackc.low %vm1322, %vm1321
        %v1324 = vunpack.c.l.b16 %v1231
        %v1325 = vunpack.c.h.b16 %v1231
        %v1326 = vunpack.c.l.b16 0
        %v1327 = vunpack.c.h.b16 0
        %vm1328 = vcmp.ne.s32.totalorder %v1324, %v1326
        %vm1329 = vcmp.ne.s32.totalorder %v1325, %v1327
        %vm1330 = vmpackc.low %vm1329, %vm1328
        %v1331 = vunpack.c.l.b16 %v1232
        %v1332 = vunpack.c.h.b16 %v1232
        %v1333 = vunpack.c.l.b16 0
        %v1334 = vunpack.c.h.b16 0
        %vm1335 = vcmp.ne.s32.totalorder %v1331, %v1333
        %vm1336 = vcmp.ne.s32.totalorder %v1332, %v1334
        %vm1337 = vmpackc.low %vm1336, %vm1335
        %v1338 = vsel %vm1239, %v645, 0
        %v1339 = vsel %vm1246, %v513, 0
        %v1340 = vsel %vm1253, %v521, 0
        %v1341 = vsel %vm1260, %v529, 0
        %v1342 = vsel %vm1267, %v537, 0
        %v1343 = vsel %vm1274, %v545, 0
        %v1344 = vsel %vm1281, %v553, 0
        %v1345 = vsel %vm1288, %v561, 0
        %v1346 = vsel %vm1295, %v569, 0
        %v1347 = vsel %vm1302, %v577, 0
        %v1348 = vsel %vm1309, %v585, 0
        %v1349 = vsel %vm1316, %v593, 0
        %v1350 = vsel %vm1323, %v601, 0
        %v1351 = vsel %vm1330, %v609, 0
        %v1352 = vsel %vm1337, %v617, 0
        %vm1353 = vmpackc.low %vm1096, %vm1096
        %vm1354 = vmpackc.low %vm1097, %vm1097
        %vm1355 = vmpackc.low %vm1098, %vm1098
        %vm1356 = vmpackc.low %vm1099, %vm1099
        %vm1357 = vmpackc.low %vm1100, %vm1100
        %vm1358 = vmpackc.low %vm1101, %vm1101
        %vm1359 = vmpackc.low %vm1102, %vm1102
        %vm1360 = vmpackc.low %vm1103, %vm1103
        %vm1361 = vmpackc.low %vm1104, %vm1104
        %vm1362 = vmpackc.low %vm1105, %vm1105
        %vm1363 = vmpackc.low %vm1106, %vm1106
        %vm1364 = vmpackc.low %vm1107, %vm1107
        %vm1365 = vmpackc.low %vm1108, %vm1108
        %vm1366 = vmpackc.low %vm1109, %vm1109
        %vm1367 = vmpackc.low %vm1110, %vm1110
        %vm1368 = vmpackc.low %vm1111, %vm1111
        %vm1369 = vmpackc.low %vm1112, %vm1112
        %vm1370 = vmpackc.low %vm1113, %vm1113
        %vm1371 = vmpackc.low %vm1114, %vm1114
        %vm1372 = vmpackc.low %vm1115, %vm1115
        %vm1373 = vmpackc.low %vm1116, %vm1116
        %vm1374 = vmpackc.low %vm1117, %vm1117
        %vm1375 = vmpackc.low %vm1118, %vm1118
        %vm1376 = vmpackc.low %vm1119, %vm1119
        %vm1377 = vmpackc.low %vm1120, %vm1120
        %vm1378 = vmpackc.low %vm1121, %vm1121
        %vm1379 = vmpackc.low %vm1122, %vm1122
        %vm1380 = vmpackc.low %vm1123, %vm1123
        %vm1381 = vmpackc.low %vm1124, %vm1124
        %vm1382 = vmpackc.low %vm1125, %vm1125
        %vm1383 = vmpackc.low %vm1126, %vm1126
        %vm1384 = vmpackc.low %vm1127, %vm1127
        %v1385 = vsel %vm1353, 65537, 0
        %v1386 = vsel %vm1354, 65537, 0
        %v1387 = vsel %vm1355, 65537, 0
        %v1388 = vsel %vm1356, 65537, 0
        %v1389 = vsel %vm1357, 65537, 0
        %v1390 = vsel %vm1358, 65537, 0
        %v1391 = vsel %vm1359, 65537, 0
        %v1392 = vsel %vm1360, 65537, 0
        %v1393 = vsel %vm1361, 65537, 0
        %v1394 = vsel %vm1362, 65537, 0
        %v1395 = vsel %vm1363, 65537, 0
        %v1396 = vsel %vm1364, 65537, 0
        %v1397 = vsel %vm1365, 65537, 0
        %v1398 = vsel %vm1366, 65537, 0
        %v1399 = vsel %vm1367, 65537, 0
        %v1400 = vsel %vm1368, 65537, 0
        %v1401 = vsel %vm1369, 65537, 0
        %v1402 = vsel %vm1370, 65537, 0
        %v1403 = vsel %vm1371, 65537, 0
        %v1404 = vsel %vm1372, 65537, 0
        %v1405 = vsel %vm1373, 65537, 0
        %v1406 = vsel %vm1374, 65537, 0
        %v1407 = vsel %vm1375, 65537, 0
        %v1408 = vsel %vm1376, 65537, 0
        %v1409 = vsel %vm1377, 65537, 0
        %v1410 = vsel %vm1378, 65537, 0
        %v1411 = vsel %vm1379, 65537, 0
        %v1412 = vsel %vm1380, 65537, 0
        %v1413 = vsel %vm1381, 65537, 0
        %v1414 = vsel %vm1382, 65537, 0
        %v1415 = vsel %vm1383, 65537, 0
        %v1416 = vsel %vm1384, 65537, 0
        %v1417 = vunpack.c.l.b16 %v1385
        %v1418 = vunpack.c.l.b16 %v1386
        %v1419 = vunpack.c.l.b16 %v1387
        %v1420 = vunpack.c.l.b16 %v1388
        %v1421 = vunpack.c.l.b16 %v1389
        %v1422 = vunpack.c.l.b16 %v1390
        %v1423 = vunpack.c.l.b16 %v1391
        %v1424 = vunpack.c.l.b16 %v1392
        %v1425 = vunpack.c.l.b16 %v1393
        %v1426 = vunpack.c.l.b16 %v1394
        %v1427 = vunpack.c.l.b16 %v1395
        %v1428 = vunpack.c.l.b16 %v1396
        %v1429 = vunpack.c.l.b16 %v1397
        %v1430 = vunpack.c.l.b16 %v1398
        %v1431 = vunpack.c.l.b16 %v1399
        %v1432 = vunpack.c.l.b16 %v1400
        %v1433 = vunpack.c.l.b16 %v1401
        %v1434 = vunpack.c.l.b16 %v1402
        %v1435 = vunpack.c.l.b16 %v1403
        %v1436 = vunpack.c.l.b16 %v1404
        %v1437 = vunpack.c.l.b16 %v1405
        %v1438 = vunpack.c.l.b16 %v1406
        %v1439 = vunpack.c.l.b16 %v1407
        %v1440 = vunpack.c.l.b16 %v1408
        %v1441 = vunpack.c.l.b16 %v1409
        %v1442 = vunpack.c.l.b16 %v1410
        %v1443 = vunpack.c.l.b16 %v1411
        %v1444 = vunpack.c.l.b16 %v1412
        %v1445 = vunpack.c.l.b16 %v1413
        %v1446 = vunpack.c.l.b16 %v1414
        %v1447 = vunpack.c.l.b16 %v1415
        %v1448 = vunpack.c.l.b16 %v1416
        %v1449 = vpack.c.b16 %v1418, %v1417
        %v1450 = vpack.c.b16 %v1420, %v1419
        %v1451 = vpack.c.b16 %v1422, %v1421
        %v1452 = vpack.c.b16 %v1424, %v1423
        %v1453 = vpack.c.b16 %v1426, %v1425
        %v1454 = vpack.c.b16 %v1428, %v1427
        %v1455 = vpack.c.b16 %v1430, %v1429
        %v1456 = vpack.c.b16 %v1432, %v1431
        %v1457 = vpack.c.b16 %v1434, %v1433
        %v1458 = vpack.c.b16 %v1436, %v1435
        %v1459 = vpack.c.b16 %v1438, %v1437
        %v1460 = vpack.c.b16 %v1440, %v1439
        %v1461 = vpack.c.b16 %v1442, %v1441
        %v1462 = vpack.c.b16 %v1444, %v1443
        %v1463 = vpack.c.b16 %v1446, %v1445
        %v1464 = vpack.c.b16 %v1448, %v1447
        %v1465 = vrot.slane %v1449, 7
        %v1466 = vrot.slane %v1450, 7
        %v1467 = vsel %vm643, %v1465, %v1466
        %v1468 = vrot.slane %v1451, 7
        %v1469 = vsel %vm643, %v1466, %v1468
        %v1470 = vrot.slane %v1452, 7
        %v1471 = vsel %vm643, %v1468, %v1470
        %v1472 = vrot.slane %v1453, 7
        %v1473 = vsel %vm643, %v1470, %v1472
        %v1474 = vrot.slane %v1454, 7
        %v1475 = vsel %vm643, %v1472, %v1474
        %v1476 = vrot.slane %v1455, 7
        %v1477 = vsel %vm643, %v1474, %v1476
        %v1478 = vrot.slane %v1456, 7
        %v1479 = vsel %vm643, %v1476, %v1478
        %v1480 = vrot.slane %v1457, 7
        %v1481 = vsel %vm643, %v1478, %v1480
        %v1482 = vrot.slane %v1458, 7
        %v1483 = vsel %vm643, %v1480, %v1482
        %v1484 = vrot.slane %v1459, 7
        %v1485 = vsel %vm643, %v1482, %v1484
        %v1486 = vrot.slane %v1460, 7
        %v1487 = vsel %vm643, %v1484, %v1486
        %v1488 = vrot.slane %v1461, 7
        %v1489 = vsel %vm643, %v1486, %v1488
        %v1490 = vrot.slane %v1462, 7
        %v1491 = vsel %vm643, %v1488, %v1490
        %v1492 = vrot.slane %v1463, 7
        %v1493 = vsel %vm643, %v1490, %v1492
        %v1494 = vrot.slane %v1464, 7
        %v1495 = vsel %vm643, %v1492, %v1494
        %v1496 = vunpack.c.l.b16 %v1467
        %v1497 = vunpack.c.h.b16 %v1467
        %v1498 = vunpack.c.l.b16 0
        %v1499 = vunpack.c.h.b16 0
        %vm1500 = vcmp.ne.s32.totalorder %v1496, %v1498
        %vm1501 = vcmp.ne.s32.totalorder %v1497, %v1499
        %vm1502 = vmpackc.low %vm1501, %vm1500
        %v1503 = vunpack.c.l.b16 %v1469
        %v1504 = vunpack.c.h.b16 %v1469
        %v1505 = vunpack.c.l.b16 0
        %v1506 = vunpack.c.h.b16 0
        %vm1507 = vcmp.ne.s32.totalorder %v1503, %v1505
        %vm1508 = vcmp.ne.s32.totalorder %v1504, %v1506
        %vm1509 = vmpackc.low %vm1508, %vm1507
        %v1510 = vunpack.c.l.b16 %v1471
        %v1511 = vunpack.c.h.b16 %v1471
        %v1512 = vunpack.c.l.b16 0
        %v1513 = vunpack.c.h.b16 0
        %vm1514 = vcmp.ne.s32.totalorder %v1510, %v1512
        %vm1515 = vcmp.ne.s32.totalorder %v1511, %v1513
        %vm1516 = vmpackc.low %vm1515, %vm1514
        %v1517 = vunpack.c.l.b16 %v1473
        %v1518 = vunpack.c.h.b16 %v1473
        %v1519 = vunpack.c.l.b16 0
        %v1520 = vunpack.c.h.b16 0
        %vm1521 = vcmp.ne.s32.totalorder %v1517, %v1519
        %vm1522 = vcmp.ne.s32.totalorder %v1518, %v1520
        %vm1523 = vmpackc.low %vm1522, %vm1521
        %v1524 = vunpack.c.l.b16 %v1475
        %v1525 = vunpack.c.h.b16 %v1475
        %v1526 = vunpack.c.l.b16 0
        %v1527 = vunpack.c.h.b16 0
        %vm1528 = vcmp.ne.s32.totalorder %v1524, %v1526
        %vm1529 = vcmp.ne.s32.totalorder %v1525, %v1527
        %vm1530 = vmpackc.low %vm1529, %vm1528
        %v1531 = vunpack.c.l.b16 %v1477
        %v1532 = vunpack.c.h.b16 %v1477
        %v1533 = vunpack.c.l.b16 0
        %v1534 = vunpack.c.h.b16 0
        %vm1535 = vcmp.ne.s32.totalorder %v1531, %v1533
        %vm1536 = vcmp.ne.s32.totalorder %v1532, %v1534
        %vm1537 = vmpackc.low %vm1536, %vm1535
        %v1538 = vunpack.c.l.b16 %v1479
        %v1539 = vunpack.c.h.b16 %v1479
        %v1540 = vunpack.c.l.b16 0
        %v1541 = vunpack.c.h.b16 0
        %vm1542 = vcmp.ne.s32.totalorder %v1538, %v1540
        %vm1543 = vcmp.ne.s32.totalorder %v1539, %v1541
        %vm1544 = vmpackc.low %vm1543, %vm1542
        %v1545 = vunpack.c.l.b16 %v1481
        %v1546 = vunpack.c.h.b16 %v1481
        %v1547 = vunpack.c.l.b16 0
        %v1548 = vunpack.c.h.b16 0
        %vm1549 = vcmp.ne.s32.totalorder %v1545, %v1547
        %vm1550 = vcmp.ne.s32.totalorder %v1546, %v1548
        %vm1551 = vmpackc.low %vm1550, %vm1549
        %v1552 = vunpack.c.l.b16 %v1483
        %v1553 = vunpack.c.h.b16 %v1483
        %v1554 = vunpack.c.l.b16 0
        %v1555 = vunpack.c.h.b16 0
        %vm1556 = vcmp.ne.s32.totalorder %v1552, %v1554
        %vm1557 = vcmp.ne.s32.totalorder %v1553, %v1555
        %vm1558 = vmpackc.low %vm1557, %vm1556
        %v1559 = vunpack.c.l.b16 %v1485
        %v1560 = vunpack.c.h.b16 %v1485
        %v1561 = vunpack.c.l.b16 0
        %v1562 = vunpack.c.h.b16 0
        %vm1563 = vcmp.ne.s32.totalorder %v1559, %v1561
        %vm1564 = vcmp.ne.s32.totalorder %v1560, %v1562
        %vm1565 = vmpackc.low %vm1564, %vm1563
        %v1566 = vunpack.c.l.b16 %v1487
        %v1567 = vunpack.c.h.b16 %v1487
        %v1568 = vunpack.c.l.b16 0
        %v1569 = vunpack.c.h.b16 0
        %vm1570 = vcmp.ne.s32.totalorder %v1566, %v1568
        %vm1571 = vcmp.ne.s32.totalorder %v1567, %v1569
        %vm1572 = vmpackc.low %vm1571, %vm1570
        %v1573 = vunpack.c.l.b16 %v1489
        %v1574 = vunpack.c.h.b16 %v1489
        %v1575 = vunpack.c.l.b16 0
        %v1576 = vunpack.c.h.b16 0
        %vm1577 = vcmp.ne.s32.totalorder %v1573, %v1575
        %vm1578 = vcmp.ne.s32.totalorder %v1574, %v1576
        %vm1579 = vmpackc.low %vm1578, %vm1577
        %v1580 = vunpack.c.l.b16 %v1491
        %v1581 = vunpack.c.h.b16 %v1491
        %v1582 = vunpack.c.l.b16 0
        %v1583 = vunpack.c.h.b16 0
        %vm1584 = vcmp.ne.s32.totalorder %v1580, %v1582
        %vm1585 = vcmp.ne.s32.totalorder %v1581, %v1583
        %vm1586 = vmpackc.low %vm1585, %vm1584
        %v1587 = vunpack.c.l.b16 %v1493
        %v1588 = vunpack.c.h.b16 %v1493
        %v1589 = vunpack.c.l.b16 0
        %v1590 = vunpack.c.h.b16 0
        %vm1591 = vcmp.ne.s32.totalorder %v1587, %v1589
        %vm1592 = vcmp.ne.s32.totalorder %v1588, %v1590
        %vm1593 = vmpackc.low %vm1592, %vm1591
        %v1594 = vunpack.c.l.b16 %v1495
        %v1595 = vunpack.c.h.b16 %v1495
        %v1596 = vunpack.c.l.b16 0
        %v1597 = vunpack.c.h.b16 0
        %vm1598 = vcmp.ne.s32.totalorder %v1594, %v1596
        %vm1599 = vcmp.ne.s32.totalorder %v1595, %v1597
        %vm1600 = vmpackc.low %vm1599, %vm1598
        %v1601 = vunpack.c.l.b16 %v1494
        %v1602 = vunpack.c.h.b16 %v1494
        %v1603 = vunpack.c.l.b16 0
        %v1604 = vunpack.c.h.b16 0
        %vm1605 = vcmp.ne.s32.totalorder %v1601, %v1603
        %vm1606 = vcmp.ne.s32.totalorder %v1602, %v1604
        %vm1607 = vmpackc.low %vm1606, %vm1605
        %v1608 = vsel %vm1502, %v645, 0
        %v1609 = vsel %vm1509, %v513, 0
        %v1610 = vsel %vm1516, %v521, 0
        %v1611 = vsel %vm1523, %v529, 0
        %v1612 = vsel %vm1530, %v537, 0
        %v1613 = vsel %vm1537, %v545, 0
        %v1614 = vsel %vm1544, %v553, 0
        %v1615 = vsel %vm1551, %v561, 0
        %v1616 = vsel %vm1558, %v569, 0
        %v1617 = vsel %vm1565, %v577, 0
        %v1618 = vsel %vm1572, %v585, 0
        %v1619 = vsel %vm1579, %v593, 0
        %v1620 = vsel %vm1586, %v601, 0
        %v1621 = vsel %vm1593, %v609, 0
        %v1622 = vsel %vm1600, %v617, 0
        %v1623 = vsel %vm1607, %v625, 0
        %vm1624 = vmpackc.low %vm1064, %vm1064
        %vm1625 = vmpackc.low %vm1065, %vm1065
        %v1626 = vsel %vm1624, 65537, 0
        %v1627 = vsel %vm1625, 65537, 0
        %v1628 = vunpack.c.l.b16 %v1626
        %v1629 = vunpack.c.l.b16 %v1627
        %v1630 = vpack.c.b16 %v1629, %v1628
        %v1631 = vunpack.c.l.b16 %v1630
        %v1632 = vunpack.c.h.b16 %v1630
        %v1633 = vunpack.c.l.b16 0
        %v1634 = vunpack.c.h.b16 0
        %vm1635 = vcmp.ne.s32.totalorder %v1631, %v1633
        %vm1636 = vcmp.ne.s32.totalorder %v1632, %v1634
        %vm1637 = vmpackc.low %vm1636, %vm1635
        %v1638 = vsel %vm1637, %v645, 0
        %v1639 = vsel %vm1239, %v513, 0
        %v1640 = vsel %vm1246, %v521, 0
        %v1641 = vsel %vm1253, %v529, 0
        %v1642 = vsel %vm1260, %v537, 0
        %v1643 = vsel %vm1267, %v545, 0
        %v1644 = vsel %vm1274, %v553, 0
        %v1645 = vsel %vm1281, %v561, 0
        %v1646 = vsel %vm1288, %v569, 0
        %v1647 = vsel %vm1295, %v577, 0
        %v1648 = vsel %vm1302, %v585, 0
        %v1649 = vsel %vm1309, %v593, 0
        %v1650 = vsel %vm1316, %v601, 0
        %v1651 = vsel %vm1323, %v609, 0
        %v1652 = vsel %vm1330, %v617, 0
        %v1653 = vsel %vm1337, %v625, 0
        %v1654 = vunpack.c.l.b16 %v1465
        %v1655 = vunpack.c.h.b16 %v1465
        %v1656 = vunpack.c.l.b16 0
        %v1657 = vunpack.c.h.b16 0
        %vm1658 = vcmp.ne.s32.totalorder %v1654, %v1656
        %vm1659 = vcmp.ne.s32.totalorder %v1655, %v1657
        %vm1660 = vmpackc.low %vm1659, %vm1658
        %v1661 = vsel %vm1660, %v645, 0
        %v1662 = vsel %vm1502, %v513, 0
        %v1663 = vsel %vm1509, %v521, 0
        %v1664 = vsel %vm1516, %v529, 0
        %v1665 = vsel %vm1523, %v537, 0
        %v1666 = vsel %vm1530, %v545, 0
        %v1667 = vsel %vm1537, %v553, 0
        %v1668 = vsel %vm1544, %v561, 0
        %v1669 = vsel %vm1551, %v569, 0
        %v1670 = vsel %vm1558, %v577, 0
        %v1671 = vsel %vm1565, %v585, 0
        %v1672 = vsel %vm1572, %v593, 0
        %v1673 = vsel %vm1579, %v601, 0
        %v1674 = vsel %vm1586, %v609, 0
        %v1675 = vsel %vm1593, %v617, 0
        %v1676 = vsel %vm1600, %v625, 0
        %v1677 = vsel %vm1607, %v646, 0
        %v1678 = vsel %vm1637, %v513, 0
        %v1679 = vsel %vm1239, %v521, 0
        %v1680 = vsel %vm1246, %v529, 0
        %v1681 = vsel %vm1253, %v537, 0
        %v1682 = vsel %vm1260, %v545, 0
        %v1683 = vsel %vm1267, %v553, 0
        %v1684 = vsel %vm1274, %v561, 0
        %v1685 = vsel %vm1281, %v569, 0
        %v1686 = vsel %vm1288, %v577, 0
        %v1687 = vsel %vm1295, %v585, 0
        %v1688 = vsel %vm1302, %v593, 0
        %v1689 = vsel %vm1309, %v601, 0
        %v1690 = vsel %vm1316, %v609, 0
        %v1691 = vsel %vm1323, %v617, 0
        %v1692 = vsel %vm1330, %v625, 0
        %v1693 = vsel %vm1337, %v646, 0
        %v1694 = vsel %vm1660, %v513, 0
        %v1695 = vsel %vm1502, %v521, 0
        %v1696 = vsel %vm1509, %v529, 0
        %v1697 = vsel %vm1516, %v537, 0
        %v1698 = vsel %vm1523, %v545, 0
        %v1699 = vsel %vm1530, %v553, 0
        %v1700 = vsel %vm1537, %v561, 0
        %v1701 = vsel %vm1544, %v569, 0
        %v1702 = vsel %vm1551, %v577, 0
        %v1703 = vsel %vm1558, %v585, 0
        %v1704 = vsel %vm1565, %v593, 0
        %v1705 = vsel %vm1572, %v601, 0
        %v1706 = vsel %vm1579, %v609, 0
        %v1707 = vsel %vm1586, %v617, 0
        %v1708 = vsel %vm1593, %v625, 0
        %v1709 = vsel %vm1600, %v646, 0
        %vm1710 = vsmask.f32 7424
        %v1712 = vshrl.u32 0, 16
        %v1714 = vshll.u32 0, 16
        %v1716 = vrot.slane %v1714, 1
        %v1717 = vor.u32 %v1712, %v1716
        %v1719 = vshll.u32 %v645, 16
        %v1721 = vrot.slane %v1719, 1
        %v1722 = vsel %vm1710, %v1717, %v1721
        %v1723 = vshrl.u32 %v645, 16
        %v1725 = vor.u32 %v1723, %v1721
        %v1727 = vshll.u32 %v513, 16
        %v1729 = vrot.slane %v1727, 1
        %v1730 = vsel %vm1710, %v1725, %v1729
        %v1731 = vshrl.u32 %v513, 16
        %v1733 = vor.u32 %v1731, %v1729
        %v1735 = vshll.u32 %v521, 16
        %v1737 = vrot.slane %v1735, 1
        %v1738 = vsel %vm1710, %v1733, %v1737
        %v1739 = vshrl.u32 %v521, 16
        %v1741 = vor.u32 %v1739, %v1737
        %v1743 = vshll.u32 %v529, 16
        %v1745 = vrot.slane %v1743, 1
        %v1746 = vsel %vm1710, %v1741, %v1745
        %v1747 = vshrl.u32 %v529, 16
        %v1749 = vor.u32 %v1747, %v1745
        %v1751 = vshll.u32 %v537, 16
        %v1753 = vrot.slane %v1751, 1
        %v1754 = vsel %vm1710, %v1749, %v1753
        %v1755 = vshrl.u32 %v537, 16
        %v1757 = vor.u32 %v1755, %v1753
        %v1759 = vshll.u32 %v545, 16
        %v1761 = vrot.slane %v1759, 1
        %v1762 = vsel %vm1710, %v1757, %v1761
        %v1763 = vshrl.u32 %v545, 16
        %v1765 = vor.u32 %v1763, %v1761
        %v1767 = vshll.u32 %v553, 16
        %v1769 = vrot.slane %v1767, 1
        %v1770 = vsel %vm1710, %v1765, %v1769
        %v1771 = vshrl.u32 %v553, 16
        %v1773 = vor.u32 %v1771, %v1769
        %v1775 = vshll.u32 %v561, 16
        %v1777 = vrot.slane %v1775, 1
        %v1778 = vsel %vm1710, %v1773, %v1777
        %v1779 = vshrl.u32 %v561, 16
        %v1781 = vor.u32 %v1779, %v1777
        %v1783 = vshll.u32 %v569, 16
        %v1785 = vrot.slane %v1783, 1
        %v1786 = vsel %vm1710, %v1781, %v1785
        %v1787 = vshrl.u32 %v569, 16
        %v1789 = vor.u32 %v1787, %v1785
        %v1791 = vshll.u32 %v577, 16
        %v1793 = vrot.slane %v1791, 1
        %v1794 = vsel %vm1710, %v1789, %v1793
        %v1795 = vshrl.u32 %v577, 16
        %v1797 = vor.u32 %v1795, %v1793
        %v1799 = vshll.u32 %v585, 16
        %v1801 = vrot.slane %v1799, 1
        %v1802 = vsel %vm1710, %v1797, %v1801
        %v1803 = vshrl.u32 %v585, 16
        %v1805 = vor.u32 %v1803, %v1801
        %v1807 = vshll.u32 %v593, 16
        %v1809 = vrot.slane %v1807, 1
        %v1810 = vsel %vm1710, %v1805, %v1809
        %v1811 = vshrl.u32 %v593, 16
        %v1813 = vor.u32 %v1811, %v1809
        %v1815 = vshll.u32 %v601, 16
        %v1817 = vrot.slane %v1815, 1
        %v1818 = vsel %vm1710, %v1813, %v1817
        %v1819 = vshrl.u32 %v601, 16
        %v1821 = vor.u32 %v1819, %v1817
        %v1823 = vshll.u32 %v609, 16
        %v1825 = vrot.slane %v1823, 1
        %v1826 = vsel %vm1710, %v1821, %v1825
        %v1827 = vshrl.u32 %v609, 16
        %v1829 = vor.u32 %v1827, %v1825
        %v1831 = vshll.u32 %v617, 16
        %v1833 = vrot.slane %v1831, 1
        %v1834 = vsel %vm1710, %v1829, %v1833
        %v1835 = vshrl.u32 %v617, 16
        %v1837 = vor.u32 %v1835, %v1833
        %v1839 = vshll.u32 %v625, 16
        %v1841 = vrot.slane %v1839, 1
        %v1842 = vsel %vm1710, %v1837, %v1841
        %1843 = vrot.lane.b32.xlu0 %v1722, 32
        %v1844 = vpop.permute.xlu0 %1843
        %1845 = vrot.lane.b32.xlu0 %v1730, 32
        %v1846 = vpop.permute.xlu0 %1845
        %1847 = vrot.lane.b32.xlu0 %v1738, 32
        %v1848 = vpop.permute.xlu0 %1847
        %1849 = vrot.lane.b32.xlu0 %v1746, 32
        %v1850 = vpop.permute.xlu0 %1849
        %1851 = vrot.lane.b32.xlu0 %v1754, 32
        %v1852 = vpop.permute.xlu0 %1851
        %1853 = vrot.lane.b32.xlu0 %v1762, 32
        %v1854 = vpop.permute.xlu0 %1853
        %1855 = vrot.lane.b32.xlu0 %v1770, 32
        %v1856 = vpop.permute.xlu0 %1855
        %1857 = vrot.lane.b32.xlu0 %v1778, 32
        %v1858 = vpop.permute.xlu0 %1857
        %1859 = vrot.lane.b32.xlu0 %v1786, 32
        %v1860 = vpop.permute.xlu0 %1859
        %1861 = vrot.lane.b32.xlu0 %v1794, 32
        %v1862 = vpop.permute.xlu0 %1861
        %1863 = vrot.lane.b32.xlu0 %v1802, 32
        %v1864 = vpop.permute.xlu0 %1863
        %1865 = vrot.lane.b32.xlu0 %v1810, 32
        %v1866 = vpop.permute.xlu0 %1865
        %1867 = vrot.lane.b32.xlu0 %v1818, 32
        %v1868 = vpop.permute.xlu0 %1867
        %1869 = vrot.lane.b32.xlu0 %v1826, 32
        %v1870 = vpop.permute.xlu0 %1869
        %1871 = vrot.lane.b32.xlu0 %v1834, 32
        %v1872 = vpop.permute.xlu0 %1871
        %1873 = vrot.lane.b32.xlu0 %v1842, 32
        %v1874 = vpop.permute.xlu0 %1873
        %vm1892 = vcmask 1046528
        %v1893 = vrot.slane 0, 1
        %v1894 = vrot.slane %v1608, 1
        %v1895 = vsel %vm1892, %v1893, %v1894
        %v1896 = vrot.slane %v1609, 1
        %v1897 = vsel %vm1892, %v1894, %v1896
        %v1898 = vrot.slane %v1610, 1
        %v1899 = vsel %vm1892, %v1896, %v1898
        %v1900 = vrot.slane %v1611, 1
        %v1901 = vsel %vm1892, %v1898, %v1900
        %v1902 = vrot.slane %v1612, 1
        %v1903 = vsel %vm1892, %v1900, %v1902
        %v1904 = vrot.slane %v1613, 1
        %v1905 = vsel %vm1892, %v1902, %v1904
        %v1906 = vrot.slane %v1614, 1
        %v1907 = vsel %vm1892, %v1904, %v1906
        %v1908 = vrot.slane %v1615, 1
        %v1909 = vsel %vm1892, %v1906, %v1908
        %v1910 = vrot.slane %v1616, 1
        %v1911 = vsel %vm1892, %v1908, %v1910
        %v1912 = vrot.slane %v1617, 1
        %v1913 = vsel %vm1892, %v1910, %v1912
        %v1914 = vrot.slane %v1618, 1
        %v1915 = vsel %vm1892, %v1912, %v1914
        %v1916 = vrot.slane %v1619, 1
        %v1917 = vsel %vm1892, %v1914, %v1916
        %v1918 = vrot.slane %v1620, 1
        %v1919 = vsel %vm1892, %v1916, %v1918
        %v1920 = vrot.slane %v1621, 1
        %v1921 = vsel %vm1892, %v1918, %v1920
        %v1922 = vrot.slane %v1622, 1
        %v1923 = vsel %vm1892, %v1920, %v1922
        %v1924 = vrot.slane %v1623, 1
        %v1925 = vsel %vm1892, %v1922, %v1924
        %1926 = vrot.lane.b32.xlu0 %v1895, 64
        %v1927 = vpop.permute.xlu0 %1926
        %1928 = vrot.lane.b32.xlu0 %v1897, 64
        %v1929 = vpop.permute.xlu0 %1928
        %1930 = vrot.lane.b32.xlu0 %v1899, 64
        %v1931 = vpop.permute.xlu0 %1930
        %1932 = vrot.lane.b32.xlu0 %v1901, 64
        %v1933 = vpop.permute.xlu0 %1932
        %1934 = vrot.lane.b32.xlu0 %v1903, 64
        %v1935 = vpop.permute.xlu0 %1934
        %1936 = vrot.lane.b32.xlu0 %v1905, 64
        %v1937 = vpop.permute.xlu0 %1936
        %1938 = vrot.lane.b32.xlu0 %v1907, 64
        %v1939 = vpop.permute.xlu0 %1938
        %1940 = vrot.lane.b32.xlu0 %v1909, 64
        %v1941 = vpop.permute.xlu0 %1940
        %1942 = vrot.lane.b32.xlu0 %v1911, 64
        %v1943 = vpop.permute.xlu0 %1942
        %1944 = vrot.lane.b32.xlu0 %v1913, 64
        %v1945 = vpop.permute.xlu0 %1944
        %1946 = vrot.lane.b32.xlu0 %v1915, 64
        %v1947 = vpop.permute.xlu0 %1946
        %1948 = vrot.lane.b32.xlu0 %v1917, 64
        %v1949 = vpop.permute.xlu0 %1948
        %1950 = vrot.lane.b32.xlu0 %v1919, 64
        %v1951 = vpop.permute.xlu0 %1950
        %1952 = vrot.lane.b32.xlu0 %v1921, 64
        %v1953 = vpop.permute.xlu0 %1952
        %1954 = vrot.lane.b32.xlu0 %v1923, 64
        %v1955 = vpop.permute.xlu0 %1954
        %1956 = vrot.lane.b32.xlu0 %v1925, 64
        %v1957 = vpop.permute.xlu0 %1956
        %1974 = vrot.lane.b32.xlu0 %v1638, 96
        %v1975 = vpop.permute.xlu0 %1974
        %1976 = vrot.lane.b32.xlu0 %v1639, 96
        %v1977 = vpop.permute.xlu0 %1976
        %1978 = vrot.lane.b32.xlu0 %v1640, 96
        %v1979 = vpop.permute.xlu0 %1978
        %1980 = vrot.lane.b32.xlu0 %v1641, 96
        %v1981 = vpop.permute.xlu0 %1980
        %1982 = vrot.lane.b32.xlu0 %v1642, 96
        %v1983 = vpop.permute.xlu0 %1982
        %1984 = vrot.lane.b32.xlu0 %v1643, 96
        %v1985 = vpop.permute.xlu0 %1984
        %1986 = vrot.lane.b32.xlu0 %v1644, 96
        %v1987 = vpop.permute.xlu0 %1986
        %1988 = vrot.lane.b32.xlu0 %v1645, 96
        %v1989 = vpop.permute.xlu0 %1988
        %1990 = vrot.lane.b32.xlu0 %v1646, 96
        %v1991 = vpop.permute.xlu0 %1990
        %1992 = vrot.lane.b32.xlu0 %v1647, 96
        %v1993 = vpop.permute.xlu0 %1992
        %1994 = vrot.lane.b32.xlu0 %v1648, 96
        %v1995 = vpop.permute.xlu0 %1994
        %1996 = vrot.lane.b32.xlu0 %v1649, 96
        %v1997 = vpop.permute.xlu0 %1996
        %1998 = vrot.lane.b32.xlu0 %v1650, 96
        %v1999 = vpop.permute.xlu0 %1998
        %2000 = vrot.lane.b32.xlu0 %v1651, 96
        %v2001 = vpop.permute.xlu0 %2000
        %2002 = vrot.lane.b32.xlu0 %v1652, 96
        %v2003 = vpop.permute.xlu0 %2002
        %2004 = vrot.lane.b32.xlu0 %v1653, 96
        %v2005 = vpop.permute.xlu0 %2004
        %v2006 = vshrl.u32 %v625, 16
        %v2008 = vor.u32 %v2006, %v1841
        %v2010 = vshll.u32 %v646, 16
        %v2012 = vrot.slane %v2010, 1
        %v2013 = vsel %vm1710, %v2008, %v2012
        %v2031 = vrot.slane %v1661, 1
        %v2032 = vrot.slane %v1662, 1
        %v2033 = vsel %vm1892, %v2031, %v2032
        %v2034 = vrot.slane %v1663, 1
        %v2035 = vsel %vm1892, %v2032, %v2034
        %v2036 = vrot.slane %v1664, 1
        %v2037 = vsel %vm1892, %v2034, %v2036
        %v2038 = vrot.slane %v1665, 1
        %v2039 = vsel %vm1892, %v2036, %v2038
        %v2040 = vrot.slane %v1666, 1
        %v2041 = vsel %vm1892, %v2038, %v2040
        %v2042 = vrot.slane %v1667, 1
        %v2043 = vsel %vm1892, %v2040, %v2042
        %v2044 = vrot.slane %v1668, 1
        %v2045 = vsel %vm1892, %v2042, %v2044
        %v2046 = vrot.slane %v1669, 1
        %v2047 = vsel %vm1892, %v2044, %v2046
        %v2048 = vrot.slane %v1670, 1
        %v2049 = vsel %vm1892, %v2046, %v2048
        %v2050 = vrot.slane %v1671, 1
        %v2051 = vsel %vm1892, %v2048, %v2050
        %v2052 = vrot.slane %v1672, 1
        %v2053 = vsel %vm1892, %v2050, %v2052
        %v2054 = vrot.slane %v1673, 1
        %v2055 = vsel %vm1892, %v2052, %v2054
        %v2056 = vrot.slane %v1674, 1
        %v2057 = vsel %vm1892, %v2054, %v2056
        %v2058 = vrot.slane %v1675, 1
        %v2059 = vsel %vm1892, %v2056, %v2058
        %v2060 = vrot.slane %v1676, 1
        %v2061 = vsel %vm1892, %v2058, %v2060
        %v2062 = vrot.slane %v1677, 1
        %v2063 = vsel %vm1892, %v2060, %v2062
        %2064 = vrot.lane.b32.xlu0 %v2033, 32
        %v2065 = vpop.permute.xlu0 %2064
        %2066 = vrot.lane.b32.xlu0 %v2035, 32
        %v2067 = vpop.permute.xlu0 %2066
        %2068 = vrot.lane.b32.xlu0 %v2037, 32
        %v2069 = vpop.permute.xlu0 %2068
        %2070 = vrot.lane.b32.xlu0 %v2039, 32
        %v2071 = vpop.permute.xlu0 %2070
        %2072 = vrot.lane.b32.xlu0 %v2041, 32
        %v2073 = vpop.permute.xlu0 %2072
        %2074 = vrot.lane.b32.xlu0 %v2043, 32
        %v2075 = vpop.permute.xlu0 %2074
        %2076 = vrot.lane.b32.xlu0 %v2045, 32
        %v2077 = vpop.permute.xlu0 %2076
        %2078 = vrot.lane.b32.xlu0 %v2047, 32
        %v2079 = vpop.permute.xlu0 %2078
        %2080 = vrot.lane.b32.xlu0 %v2049, 32
        %v2081 = vpop.permute.xlu0 %2080
        %2082 = vrot.lane.b32.xlu0 %v2051, 32
        %v2083 = vpop.permute.xlu0 %2082
        %2084 = vrot.lane.b32.xlu0 %v2053, 32
        %v2085 = vpop.permute.xlu0 %2084
        %2086 = vrot.lane.b32.xlu0 %v2055, 32
        %v2087 = vpop.permute.xlu0 %2086
        %2088 = vrot.lane.b32.xlu0 %v2057, 32
        %v2089 = vpop.permute.xlu0 %2088
        %2090 = vrot.lane.b32.xlu0 %v2059, 32
        %v2091 = vpop.permute.xlu0 %2090
        %2092 = vrot.lane.b32.xlu0 %v2061, 32
        %v2093 = vpop.permute.xlu0 %2092
        %2094 = vrot.lane.b32.xlu0 %v2063, 32
        %v2095 = vpop.permute.xlu0 %2094
        %2112 = vrot.lane.b32.xlu0 %v1678, 64
        %v2113 = vpop.permute.xlu0 %2112
        %2114 = vrot.lane.b32.xlu0 %v1679, 64
        %v2115 = vpop.permute.xlu0 %2114
        %2116 = vrot.lane.b32.xlu0 %v1680, 64
        %v2117 = vpop.permute.xlu0 %2116
        %2118 = vrot.lane.b32.xlu0 %v1681, 64
        %v2119 = vpop.permute.xlu0 %2118
        %2120 = vrot.lane.b32.xlu0 %v1682, 64
        %v2121 = vpop.permute.xlu0 %2120
        %2122 = vrot.lane.b32.xlu0 %v1683, 64
        %v2123 = vpop.permute.xlu0 %2122
        %2124 = vrot.lane.b32.xlu0 %v1684, 64
        %v2125 = vpop.permute.xlu0 %2124
        %2126 = vrot.lane.b32.xlu0 %v1685, 64
        %v2127 = vpop.permute.xlu0 %2126
        %2128 = vrot.lane.b32.xlu0 %v1686, 64
        %v2129 = vpop.permute.xlu0 %2128
        %2130 = vrot.lane.b32.xlu0 %v1687, 64
        %v2131 = vpop.permute.xlu0 %2130
        %2132 = vrot.lane.b32.xlu0 %v1688, 64
        %v2133 = vpop.permute.xlu0 %2132
        %2134 = vrot.lane.b32.xlu0 %v1689, 64
        %v2135 = vpop.permute.xlu0 %2134
        %2136 = vrot.lane.b32.xlu0 %v1690, 64
        %v2137 = vpop.permute.xlu0 %2136
        %2138 = vrot.lane.b32.xlu0 %v1691, 64
        %v2139 = vpop.permute.xlu0 %2138
        %2140 = vrot.lane.b32.xlu0 %v1692, 64
        %v2141 = vpop.permute.xlu0 %2140
        %2142 = vrot.lane.b32.xlu0 %v1693, 64
        %v2143 = vpop.permute.xlu0 %2142
        %v2144 = vshrl.u32 %v646, 16
        %v2146 = vor.u32 %v2144, %v2012
        %v2147 = vsel %vm1710, %v2146, %v1716
        %2148 = vrot.lane.b32.xlu0 %v1738, 96
        %v2149 = vpop.permute.xlu0 %2148
        %2150 = vrot.lane.b32.xlu0 %v1746, 96
        %v2151 = vpop.permute.xlu0 %2150
        %2152 = vrot.lane.b32.xlu0 %v1754, 96
        %v2153 = vpop.permute.xlu0 %2152
        %2154 = vrot.lane.b32.xlu0 %v1762, 96
        %v2155 = vpop.permute.xlu0 %2154
        %2156 = vrot.lane.b32.xlu0 %v1770, 96
        %v2157 = vpop.permute.xlu0 %2156
        %2158 = vrot.lane.b32.xlu0 %v1778, 96
        %v2159 = vpop.permute.xlu0 %2158
        %2160 = vrot.lane.b32.xlu0 %v1786, 96
        %v2161 = vpop.permute.xlu0 %2160
        %2162 = vrot.lane.b32.xlu0 %v1794, 96
        %v2163 = vpop.permute.xlu0 %2162
        %2164 = vrot.lane.b32.xlu0 %v1802, 96
        %v2165 = vpop.permute.xlu0 %2164
        %2166 = vrot.lane.b32.xlu0 %v1810, 96
        %v2167 = vpop.permute.xlu0 %2166
        %2168 = vrot.lane.b32.xlu0 %v1818, 96
        %v2169 = vpop.permute.xlu0 %2168
        %2170 = vrot.lane.b32.xlu0 %v1826, 96
        %v2171 = vpop.permute.xlu0 %2170
        %2172 = vrot.lane.b32.xlu0 %v1834, 96
        %v2173 = vpop.permute.xlu0 %2172
        %2174 = vrot.lane.b32.xlu0 %v1842, 96
        %v2175 = vpop.permute.xlu0 %2174
        %2176 = vrot.lane.b32.xlu0 %v2013, 96
        %v2177 = vpop.permute.xlu0 %2176
        %2178 = vrot.lane.b32.xlu0 %v2147, 96
        %v2179 = vpop.permute.xlu0 %2178
        %v2196 = vrot.slane %v1694, 1
        %v2197 = vrot.slane %v1695, 1
        %v2198 = vsel %vm1892, %v2196, %v2197
        %v2199 = vrot.slane %v1696, 1
        %v2200 = vsel %vm1892, %v2197, %v2199
        %v2201 = vrot.slane %v1697, 1
        %v2202 = vsel %vm1892, %v2199, %v2201
        %v2203 = vrot.slane %v1698, 1
        %v2204 = vsel %vm1892, %v2201, %v2203
        %v2205 = vrot.slane %v1699, 1
        %v2206 = vsel %vm1892, %v2203, %v2205
        %v2207 = vrot.slane %v1700, 1
        %v2208 = vsel %vm1892, %v2205, %v2207
        %v2209 = vrot.slane %v1701, 1
        %v2210 = vsel %vm1892, %v2207, %v2209
        %v2211 = vrot.slane %v1702, 1
        %v2212 = vsel %vm1892, %v2209, %v2211
        %v2213 = vrot.slane %v1703, 1
        %v2214 = vsel %vm1892, %v2211, %v2213
        %v2215 = vrot.slane %v1704, 1
        %v2216 = vsel %vm1892, %v2213, %v2215
        %v2217 = vrot.slane %v1705, 1
        %v2218 = vsel %vm1892, %v2215, %v2217
        %v2219 = vrot.slane %v1706, 1
        %v2220 = vsel %vm1892, %v2217, %v2219
        %v2221 = vrot.slane %v1707, 1
        %v2222 = vsel %vm1892, %v2219, %v2221
        %v2223 = vrot.slane %v1708, 1
        %v2224 = vsel %vm1892, %v2221, %v2223
        %v2225 = vrot.slane %v1709, 1
        %v2226 = vsel %vm1892, %v2223, %v2225
        %v2227 = vsel %vm1892, %v2225, %v1893
        %vm2228 = vcmask 261120
        %v2230 = vsel %vm2228, 0, %v1844
        %v2233 = vsel %vm2228, %v1338, %v1846
        %v2236 = vsel %vm2228, %v1339, %v1848
        %v2239 = vsel %vm2228, %v1340, %v1850
        %v2242 = vsel %vm2228, %v1341, %v1852
        %v2245 = vsel %vm2228, %v1342, %v1854
        %v2248 = vsel %vm2228, %v1343, %v1856
        %v2251 = vsel %vm2228, %v1344, %v1858
        %v2254 = vsel %vm2228, %v1345, %v1860
        %v2257 = vsel %vm2228, %v1346, %v1862
        %v2260 = vsel %vm2228, %v1347, %v1864
        %v2263 = vsel %vm2228, %v1348, %v1866
        %v2266 = vsel %vm2228, %v1349, %v1868
        %v2269 = vsel %vm2228, %v1350, %v1870
        %v2272 = vsel %vm2228, %v1351, %v1872
        %v2275 = vsel %vm2228, %v1352, %v1874
        %vm2276 = vcmask 523264
        %v2278 = vsel %vm2276, %v2230, %v1927
        %v2280 = vsel %vm2276, %v2233, %v1929
        %v2282 = vsel %vm2276, %v2236, %v1931
        %v2284 = vsel %vm2276, %v2239, %v1933
        %v2286 = vsel %vm2276, %v2242, %v1935
        %v2288 = vsel %vm2276, %v2245, %v1937
        %v2290 = vsel %vm2276, %v2248, %v1939
        %v2292 = vsel %vm2276, %v2251, %v1941
        %v2294 = vsel %vm2276, %v2254, %v1943
        %v2296 = vsel %vm2276, %v2257, %v1945
        %v2298 = vsel %vm2276, %v2260, %v1947
        %v2300 = vsel %vm2276, %v2263, %v1949
        %v2302 = vsel %vm2276, %v2266, %v1951
        %v2304 = vsel %vm2276, %v2269, %v1953
        %v2306 = vsel %vm2276, %v2272, %v1955
        %v2308 = vsel %vm2276, %v2275, %v1957
        %vm2309 = vcmask 785408
        %v2311 = vsel %vm2309, %v2278, %v1975
        %v2314 = vsel %vm2309, %v2280, %v1977
        %v2317 = vsel %vm2309, %v2282, %v1979
        %v2320 = vsel %vm2309, %v2284, %v1981
        %v2323 = vsel %vm2309, %v2286, %v1983
        %v2326 = vsel %vm2309, %v2288, %v1985
        %v2329 = vsel %vm2309, %v2290, %v1987
        %v2332 = vsel %vm2309, %v2292, %v1989
        %v2335 = vsel %vm2309, %v2294, %v1991
        %v2338 = vsel %vm2309, %v2296, %v1993
        %v2341 = vsel %vm2309, %v2298, %v1995
        %v2344 = vsel %vm2309, %v2300, %v1997
        %v2347 = vsel %vm2309, %v2302, %v1999
        %v2350 = vsel %vm2309, %v2304, %v2001
        %v2353 = vsel %vm2309, %v2306, %v2003
        %v2356 = vsel %vm2309, %v2308, %v2005
        %v2360 = vsel %vm2228, %v1730, %v2065
        %v2363 = vsel %vm2228, %v1738, %v2067
        %v2366 = vsel %vm2228, %v1746, %v2069
        %v2369 = vsel %vm2228, %v1754, %v2071
        %v2372 = vsel %vm2228, %v1762, %v2073
        %v2375 = vsel %vm2228, %v1770, %v2075
        %v2378 = vsel %vm2228, %v1778, %v2077
        %v2381 = vsel %vm2228, %v1786, %v2079
        %v2384 = vsel %vm2228, %v1794, %v2081
        %v2387 = vsel %vm2228, %v1802, %v2083
        %v2390 = vsel %vm2228, %v1810, %v2085
        %v2393 = vsel %vm2228, %v1818, %v2087
        %v2396 = vsel %vm2228, %v1826, %v2089
        %v2399 = vsel %vm2228, %v1834, %v2091
        %v2402 = vsel %vm2228, %v1842, %v2093
        %v2405 = vsel %vm2228, %v2013, %v2095
        %v2407 = vsel %vm2276, %v2360, %v2113
        %v2409 = vsel %vm2276, %v2363, %v2115
        %v2411 = vsel %vm2276, %v2366, %v2117
        %v2413 = vsel %vm2276, %v2369, %v2119
        %v2415 = vsel %vm2276, %v2372, %v2121
        %v2417 = vsel %vm2276, %v2375, %v2123
        %v2419 = vsel %vm2276, %v2378, %v2125
        %v2421 = vsel %vm2276, %v2381, %v2127
        %v2423 = vsel %vm2276, %v2384, %v2129
        %v2425 = vsel %vm2276, %v2387, %v2131
        %v2427 = vsel %vm2276, %v2390, %v2133
        %v2429 = vsel %vm2276, %v2393, %v2135
        %v2431 = vsel %vm2276, %v2396, %v2137
        %v2433 = vsel %vm2276, %v2399, %v2139
        %v2435 = vsel %vm2276, %v2402, %v2141
        %v2437 = vsel %vm2276, %v2405, %v2143
        %v2439 = vsel %vm2309, %v2407, %v2149
        %v2442 = vsel %vm2309, %v2409, %v2151
        %v2445 = vsel %vm2309, %v2411, %v2153
        %v2448 = vsel %vm2309, %v2413, %v2155
        %v2451 = vsel %vm2309, %v2415, %v2157
        %v2454 = vsel %vm2309, %v2417, %v2159
        %v2457 = vsel %vm2309, %v2419, %v2161
        %v2460 = vsel %vm2309, %v2421, %v2163
        %v2463 = vsel %vm2309, %v2423, %v2165
        %v2466 = vsel %vm2309, %v2425, %v2167
        %v2469 = vsel %vm2309, %v2427, %v2169
        %v2472 = vsel %vm2309, %v2429, %v2171
        %v2475 = vsel %vm2309, %v2431, %v2173
        %v2478 = vsel %vm2309, %v2433, %v2175
        %v2481 = vsel %vm2309, %v2435, %v2177
        %v2484 = vsel %vm2309, %v2437, %v2179
        %v2487 = vsel %vm2228, %v2198, 0
        %v2490 = vsel %vm2228, %v2200, 0
        %v2493 = vsel %vm2228, %v2202, 0
        %v2496 = vsel %vm2228, %v2204, 0
        %v2499 = vsel %vm2228, %v2206, 0
        %v2502 = vsel %vm2228, %v2208, 0
        %v2505 = vsel %vm2228, %v2210, 0
        %v2508 = vsel %vm2228, %v2212, 0
        %v2511 = vsel %vm2228, %v2214, 0
        %v2514 = vsel %vm2228, %v2216, 0
        %v2517 = vsel %vm2228, %v2218, 0
        %v2520 = vsel %vm2228, %v2220, 0
        %v2523 = vsel %vm2228, %v2222, 0
        %v2526 = vsel %vm2228, %v2224, 0
        %v2529 = vsel %vm2228, %v2226, 0
        %v2532 = vsel %vm2228, %v2227, 0
        %v2534 = vld [vmem:[#allocation2] sm:$0xf]
        %v2535 = vld [vmem:[#allocation2 + $0x4] sm:$0xf]
        %v2536 = vld [vmem:[#allocation2 + $0x8] sm:$0xf]
        %v2537 = vld [vmem:[#allocation2 + $0xc] sm:$0xf]
        %v2538 = vld [vmem:[#allocation2 + $0x10] sm:$0xf]
        %v2539 = vld [vmem:[#allocation2 + $0x14] sm:$0xf]
        %v2540 = vld [vmem:[#allocation2 + $0x18] sm:$0xf]
        %v2541 = vld [vmem:[#allocation2 + $0x1c] sm:$0xf]
        %v2542 = vld [vmem:[#allocation2 + $0x20] sm:$0xf]
        %v2543 = vld [vmem:[#allocation2 + $0x24] sm:$0xf]
        %v2544 = vld [vmem:[#allocation2 + $0x28] sm:$0xf]
        %v2545 = vld [vmem:[#allocation2 + $0x2c] sm:$0xf]
        %v2546 = vld [vmem:[#allocation2 + $0x30] sm:$0xf]
        %v2547 = vld [vmem:[#allocation2 + $0x34] sm:$0xf]
        %v2548 = vld [vmem:[#allocation2 + $0x38] sm:$0xf]
        %v2549 = vld [vmem:[#allocation2 + $0x3c] sm:$0xf]
        %v2550 = vld [vmem:[#allocation2 + $0x40] sm:$0xf]
        %v2551 = vld [vmem:[#allocation2 + $0x44] sm:$0xf]
        %v2552 = vld [vmem:[#allocation2 + $0x48] sm:$0xf]
        %v2553 = vld [vmem:[#allocation2 + $0x4c] sm:$0xf]
        %v2554 = vld [vmem:[#allocation2 + $0x50] sm:$0xf]
        %v2555 = vld [vmem:[#allocation2 + $0x54] sm:$0xf]
        %v2556 = vld [vmem:[#allocation2 + $0x58] sm:$0xf]
        %v2557 = vld [vmem:[#allocation2 + $0x5c] sm:$0xf]
        %v2558 = vld [vmem:[#allocation2 + $0x60] sm:$0xf]
        %v2559 = vld [vmem:[#allocation2 + $0x64] sm:$0xf]
        %v2560 = vld [vmem:[#allocation2 + $0x68] sm:$0xf]
        %v2561 = vld [vmem:[#allocation2 + $0x6c] sm:$0xf]
        %v2562 = vld [vmem:[#allocation2 + $0x70] sm:$0xf]
        %v2563 = vld [vmem:[#allocation2 + $0x74] sm:$0xf]
        %v2564 = vld [vmem:[#allocation2 + $0x78] sm:$0xf]
        %v2565 = vld [vmem:[#allocation2 + $0x7c] sm:$0xf]
        %v2566 = vld [vmem:[#allocation2 + $0x80] sm:$0xf]
        %v2567 = vld [vmem:[#allocation2 + $0x84] sm:$0xf]
        %v2568 = vld [vmem:[#allocation2 + $0x88] sm:$0xf]
        %v2569 = vld [vmem:[#allocation2 + $0x8c] sm:$0xf]
        %v2570 = vld [vmem:[#allocation2 + $0x90] sm:$0xf]
        %v2571 = vld [vmem:[#allocation2 + $0x94] sm:$0xf]
        %v2572 = vld [vmem:[#allocation2 + $0x98] sm:$0xf]
        %v2573 = vld [vmem:[#allocation2 + $0x9c] sm:$0xf]
        %v2574 = vld [vmem:[#allocation2 + $0xa0] sm:$0xf]
        %v2575 = vld [vmem:[#allocation2 + $0xa4] sm:$0xf]
        %v2576 = vld [vmem:[#allocation2 + $0xa8] sm:$0xf]
        %v2577 = vld [vmem:[#allocation2 + $0xac] sm:$0xf]
        %v2578 = vld [vmem:[#allocation2 + $0xb0] sm:$0xf]
        %v2579 = vld [vmem:[#allocation2 + $0xb4] sm:$0xf]
        %v2580 = vld [vmem:[#allocation2 + $0xb8] sm:$0xf]
        %v2581 = vld [vmem:[#allocation2 + $0xbc] sm:$0xf]
        %v2630 = vunpack.c.l.b16 %v2534
        %v2631 = vunpack.c.l.b16 %v2535
        %v2632 = vunpack.c.l.b16 %v2536
        %v2633 = vunpack.c.l.b16 %v2537
        %v2634 = vunpack.c.l.b16 %v2538
        %v2635 = vunpack.c.l.b16 %v2539
        %v2636 = vunpack.c.l.b16 %v2540
        %v2637 = vunpack.c.l.b16 %v2541
        %v2638 = vunpack.c.l.b16 %v2542
        %v2639 = vunpack.c.l.b16 %v2543
        %v2640 = vunpack.c.l.b16 %v2544
        %v2641 = vunpack.c.l.b16 %v2545
        %v2642 = vunpack.c.l.b16 %v2546
        %v2643 = vunpack.c.l.b16 %v2547
        %v2644 = vunpack.c.l.b16 %v2548
        %v2645 = vunpack.c.l.b16 %v2549
        %v2646 = vunpack.c.l.b16 %v2550
        %v2647 = vunpack.c.l.b16 %v2551
        %v2648 = vunpack.c.l.b16 %v2552
        %v2649 = vunpack.c.l.b16 %v2553
        %v2650 = vunpack.c.l.b16 %v2554
        %v2651 = vunpack.c.l.b16 %v2555
        %v2652 = vunpack.c.l.b16 %v2556
        %v2653 = vunpack.c.l.b16 %v2557
        %v2654 = vunpack.c.l.b16 %v2558
        %v2655 = vunpack.c.l.b16 %v2559
        %v2656 = vunpack.c.l.b16 %v2560
        %v2657 = vunpack.c.l.b16 %v2561
        %v2658 = vunpack.c.l.b16 %v2562
        %v2659 = vunpack.c.l.b16 %v2563
        %v2660 = vunpack.c.l.b16 %v2564
        %v2661 = vunpack.c.l.b16 %v2565
        %v2662 = vunpack.c.l.b16 %v2566
        %v2663 = vunpack.c.l.b16 %v2567
        %v2664 = vunpack.c.l.b16 %v2568
        %v2665 = vunpack.c.l.b16 %v2569
        %v2666 = vunpack.c.l.b16 %v2570
        %v2667 = vunpack.c.l.b16 %v2571
        %v2668 = vunpack.c.l.b16 %v2572
        %v2669 = vunpack.c.l.b16 %v2573
        %v2670 = vunpack.c.l.b16 %v2574
        %v2671 = vunpack.c.l.b16 %v2575
        %v2672 = vunpack.c.l.b16 %v2576
        %v2673 = vunpack.c.l.b16 %v2577
        %v2674 = vunpack.c.l.b16 %v2578
        %v2675 = vunpack.c.l.b16 %v2579
        %v2676 = vunpack.c.l.b16 %v2580
        %v2677 = vunpack.c.l.b16 %v2581
        %v2678 = vpack.c.b16 %v2631, %v2630
        %v2679 = vpack.c.b16 %v2633, %v2632
        %v2680 = vpack.c.b16 %v2635, %v2634
        %v2681 = vpack.c.b16 %v2637, %v2636
        %v2682 = vpack.c.b16 %v2639, %v2638
        %v2683 = vpack.c.b16 %v2641, %v2640
        %v2684 = vpack.c.b16 %v2643, %v2642
        %v2685 = vpack.c.b16 %v2645, %v2644
        %v2686 = vpack.c.b16 %v2647, %v2646
        %v2687 = vpack.c.b16 %v2649, %v2648
        %v2688 = vpack.c.b16 %v2651, %v2650
        %v2689 = vpack.c.b16 %v2653, %v2652
        %v2690 = vpack.c.b16 %v2655, %v2654
        %v2691 = vpack.c.b16 %v2657, %v2656
        %v2692 = vpack.c.b16 %v2659, %v2658
        %v2693 = vpack.c.b16 %v2661, %v2660
        %v2694 = vpack.c.b16 %v2663, %v2662
        %v2695 = vpack.c.b16 %v2665, %v2664
        %v2696 = vpack.c.b16 %v2667, %v2666
        %v2697 = vpack.c.b16 %v2669, %v2668
        %v2698 = vpack.c.b16 %v2671, %v2670
        %v2699 = vpack.c.b16 %v2673, %v2672
        %v2700 = vpack.c.b16 %v2675, %v2674
        %v2701 = vpack.c.b16 %v2677, %v2676
        %2726 = vmatpush.bf16.msra.mxu0 %v2685
        %2727 = vmatpush.bf16.msra.mxu0 %v2684
        %2728 = vmatpush.bf16.msra.mxu0 %v2683
        %2729 = vmatpush.bf16.msra.mxu0 %v2682
        %2730 = vmatpush.bf16.msra.mxu0 %v2681
        %2731 = vmatpush.bf16.msra.mxu0 %v2680
        %2732 = vmatpush.bf16.msra.mxu0 %v2679
        %2733 = vmatpush.bf16.msra.mxu0 %v2678
        %2734 = vmatmul.bf16.gmra.mxu0 %v2311
        %v2735 = vpop.f32.mrf.mxu0
        %v2736 = vadd.f32 0.0, %v2735
        %v2737 = vpop.f32.mrf.mxu0
        %v2738 = vadd.f32 0.0, %v2737
        %2739 = vmatmul.bf16.gmra.mxu0 %v2314
        %v2740 = vpop.f32.mrf.mxu0
        %v2741 = vadd.f32 0.0, %v2740
        %v2742 = vpop.f32.mrf.mxu0
        %v2743 = vadd.f32 0.0, %v2742
        %2744 = vmatmul.bf16.gmra.mxu0 %v2317
        %v2745 = vpop.f32.mrf.mxu0
        %v2746 = vadd.f32 0.0, %v2745
        %v2747 = vpop.f32.mrf.mxu0
        %v2748 = vadd.f32 0.0, %v2747
        %2749 = vmatmul.bf16.gmra.mxu0 %v2320
        %v2750 = vpop.f32.mrf.mxu0
        %v2751 = vadd.f32 0.0, %v2750
        %v2752 = vpop.f32.mrf.mxu0
        %v2753 = vadd.f32 0.0, %v2752
        %2754 = vmatmul.bf16.gmra.mxu0 %v2323
        %v2755 = vpop.f32.mrf.mxu0
        %v2756 = vadd.f32 0.0, %v2755
        %v2757 = vpop.f32.mrf.mxu0
        %v2758 = vadd.f32 0.0, %v2757
        %2759 = vmatmul.bf16.gmra.mxu0 %v2326
        %v2760 = vpop.f32.mrf.mxu0
        %v2761 = vadd.f32 0.0, %v2760
        %v2762 = vpop.f32.mrf.mxu0
        %v2763 = vadd.f32 0.0, %v2762
        %2764 = vmatmul.bf16.gmra.mxu0 %v2329
        %v2765 = vpop.f32.mrf.mxu0
        %v2766 = vadd.f32 0.0, %v2765
        %v2767 = vpop.f32.mrf.mxu0
        %v2768 = vadd.f32 0.0, %v2767
        %2769 = vmatmul.bf16.gmra.mxu0 %v2332
        %v2770 = vpop.f32.mrf.mxu0
        %v2771 = vadd.f32 0.0, %v2770
        %v2772 = vpop.f32.mrf.mxu0
        %v2773 = vadd.f32 0.0, %v2772
        %2774 = vmatmul.bf16.gmra.mxu0 %v2335
        %v2775 = vpop.f32.mrf.mxu0
        %v2776 = vadd.f32 0.0, %v2775
        %v2777 = vpop.f32.mrf.mxu0
        %v2778 = vadd.f32 0.0, %v2777
        %2779 = vmatmul.bf16.gmra.mxu0 %v2338
        %v2780 = vpop.f32.mrf.mxu0
        %v2781 = vadd.f32 0.0, %v2780
        %v2782 = vpop.f32.mrf.mxu0
        %v2783 = vadd.f32 0.0, %v2782
        %2784 = vmatmul.bf16.gmra.mxu0 %v2341
        %v2785 = vpop.f32.mrf.mxu0
        %v2786 = vadd.f32 0.0, %v2785
        %v2787 = vpop.f32.mrf.mxu0
        %v2788 = vadd.f32 0.0, %v2787
        %2789 = vmatmul.bf16.gmra.mxu0 %v2344
        %v2790 = vpop.f32.mrf.mxu0
        %v2791 = vadd.f32 0.0, %v2790
        %v2792 = vpop.f32.mrf.mxu0
        %v2793 = vadd.f32 0.0, %v2792
        %2794 = vmatmul.bf16.gmra.mxu0 %v2347
        %v2795 = vpop.f32.mrf.mxu0
        %v2796 = vadd.f32 0.0, %v2795
        %v2797 = vpop.f32.mrf.mxu0
        %v2798 = vadd.f32 0.0, %v2797
        %2799 = vmatmul.bf16.gmra.mxu0 %v2350
        %v2800 = vpop.f32.mrf.mxu0
        %v2801 = vadd.f32 0.0, %v2800
        %v2802 = vpop.f32.mrf.mxu0
        %v2803 = vadd.f32 0.0, %v2802
        %2804 = vmatmul.bf16.gmra.mxu0 %v2353
        %v2805 = vpop.f32.mrf.mxu0
        %v2806 = vadd.f32 0.0, %v2805
        %v2807 = vpop.f32.mrf.mxu0
        %v2808 = vadd.f32 0.0, %v2807
        %2809 = vmatmul.bf16.gmra.mxu0 %v2356
        %v2810 = vpop.f32.mrf.mxu0
        %v2811 = vadd.f32 0.0, %v2810
        %v2812 = vpop.f32.mrf.mxu0
        %v2813 = vadd.f32 0.0, %v2812
        %2814 = vdwg.mxu0
        %2815 = vmatpush.bf16.msra.mxu0 %v2693
        %2816 = vmatpush.bf16.msra.mxu0 %v2692
        %2817 = vmatpush.bf16.msra.mxu0 %v2691
        %2818 = vmatpush.bf16.msra.mxu0 %v2690
        %2819 = vmatpush.bf16.msra.mxu0 %v2689
        %2820 = vmatpush.bf16.msra.mxu0 %v2688
        %2821 = vmatpush.bf16.msra.mxu0 %v2687
        %2822 = vmatpush.bf16.msra.mxu0 %v2686
        %2823 = vmatmul.bf16.gmra.mxu0 %v2439
        %v2824 = vpop.f32.mrf.mxu0
        %v2825 = vadd.f32 %v2736, %v2824
        %v2826 = vpop.f32.mrf.mxu0
        %v2827 = vadd.f32 %v2738, %v2826
        %2828 = vmatmul.bf16.gmra.mxu0 %v2442
        %v2829 = vpop.f32.mrf.mxu0
        %v2830 = vadd.f32 %v2741, %v2829
        %v2831 = vpop.f32.mrf.mxu0
        %v2832 = vadd.f32 %v2743, %v2831
        %2833 = vmatmul.bf16.gmra.mxu0 %v2445
        %v2834 = vpop.f32.mrf.mxu0
        %v2835 = vadd.f32 %v2746, %v2834
        %v2836 = vpop.f32.mrf.mxu0
        %v2837 = vadd.f32 %v2748, %v2836
        %2838 = vmatmul.bf16.gmra.mxu0 %v2448
        %v2839 = vpop.f32.mrf.mxu0
        %v2840 = vadd.f32 %v2751, %v2839
        %v2841 = vpop.f32.mrf.mxu0
        %v2842 = vadd.f32 %v2753, %v2841
        %2843 = vmatmul.bf16.gmra.mxu0 %v2451
        %v2844 = vpop.f32.mrf.mxu0
        %v2845 = vadd.f32 %v2756, %v2844
        %v2846 = vpop.f32.mrf.mxu0
        %v2847 = vadd.f32 %v2758, %v2846
        %2848 = vmatmul.bf16.gmra.mxu0 %v2454
        %v2849 = vpop.f32.mrf.mxu0
        %v2850 = vadd.f32 %v2761, %v2849
        %v2851 = vpop.f32.mrf.mxu0
        %v2852 = vadd.f32 %v2763, %v2851
        %2853 = vmatmul.bf16.gmra.mxu0 %v2457
        %v2854 = vpop.f32.mrf.mxu0
        %v2855 = vadd.f32 %v2766, %v2854
        %v2856 = vpop.f32.mrf.mxu0
        %v2857 = vadd.f32 %v2768, %v2856
        %2858 = vmatmul.bf16.gmra.mxu0 %v2460
        %v2859 = vpop.f32.mrf.mxu0
        %v2860 = vadd.f32 %v2771, %v2859
        %v2861 = vpop.f32.mrf.mxu0
        %v2862 = vadd.f32 %v2773, %v2861
        %2863 = vmatmul.bf16.gmra.mxu0 %v2463
        %v2864 = vpop.f32.mrf.mxu0
        %v2865 = vadd.f32 %v2776, %v2864
        %v2866 = vpop.f32.mrf.mxu0
        %v2867 = vadd.f32 %v2778, %v2866
        %2868 = vmatmul.bf16.gmra.mxu0 %v2466
        %v2869 = vpop.f32.mrf.mxu0
        %v2870 = vadd.f32 %v2781, %v2869
        %v2871 = vpop.f32.mrf.mxu0
        %v2872 = vadd.f32 %v2783, %v2871
        %2873 = vmatmul.bf16.gmra.mxu0 %v2469
        %v2874 = vpop.f32.mrf.mxu0
        %v2875 = vadd.f32 %v2786, %v2874
        %v2876 = vpop.f32.mrf.mxu0
        %v2877 = vadd.f32 %v2788, %v2876
        %2878 = vmatmul.bf16.gmra.mxu0 %v2472
        %v2879 = vpop.f32.mrf.mxu0
        %v2880 = vadd.f32 %v2791, %v2879
        %v2881 = vpop.f32.mrf.mxu0
        %v2882 = vadd.f32 %v2793, %v2881
        %2883 = vmatmul.bf16.gmra.mxu0 %v2475
        %v2884 = vpop.f32.mrf.mxu0
        %v2885 = vadd.f32 %v2796, %v2884
        %v2886 = vpop.f32.mrf.mxu0
        %v2887 = vadd.f32 %v2798, %v2886
        %2888 = vmatmul.bf16.gmra.mxu0 %v2478
        %v2889 = vpop.f32.mrf.mxu0
        %v2890 = vadd.f32 %v2801, %v2889
        %v2891 = vpop.f32.mrf.mxu0
        %v2892 = vadd.f32 %v2803, %v2891
        %2893 = vmatmul.bf16.gmra.mxu0 %v2481
        %v2894 = vpop.f32.mrf.mxu0
        %v2895 = vadd.f32 %v2806, %v2894
        %v2896 = vpop.f32.mrf.mxu0
        %v2897 = vadd.f32 %v2808, %v2896
        %2898 = vmatmul.bf16.gmra.mxu0 %v2484
        %v2899 = vpop.f32.mrf.mxu0
        %v2900 = vadd.f32 %v2811, %v2899
        %v2901 = vpop.f32.mrf.mxu0
        %v2902 = vadd.f32 %v2813, %v2901
        %2903 = vdwg.mxu0
        %2904 = vmatpush.bf16.msra.mxu0 %v2701
        %2905 = vmatpush.bf16.msra.mxu0 %v2700
        %2906 = vmatpush.bf16.msra.mxu0 %v2699
        %2907 = vmatpush.bf16.msra.mxu0 %v2698
        %2908 = vmatpush.bf16.msra.mxu0 %v2697
        %2909 = vmatpush.bf16.msra.mxu0 %v2696
        %2910 = vmatpush.bf16.msra.mxu0 %v2695
        %2911 = vmatpush.bf16.msra.mxu0 %v2694
        %2912 = vmatmul.bf16.gmra.mxu0 %v2487
        %v2913 = vpop.f32.mrf.mxu0
        %v2914 = vadd.f32 %v2825, %v2913
        %v2915 = vpop.f32.mrf.mxu0
        %v2916 = vadd.f32 %v2827, %v2915
        %2917 = vmatmul.bf16.gmra.mxu0 %v2490
        %v2918 = vpop.f32.mrf.mxu0
        %v2919 = vadd.f32 %v2830, %v2918
        %v2920 = vpop.f32.mrf.mxu0
        %v2921 = vadd.f32 %v2832, %v2920
        %2922 = vmatmul.bf16.gmra.mxu0 %v2493
        %v2923 = vpop.f32.mrf.mxu0
        %v2924 = vadd.f32 %v2835, %v2923
        %v2925 = vpop.f32.mrf.mxu0
        %v2926 = vadd.f32 %v2837, %v2925
        %2927 = vmatmul.bf16.gmra.mxu0 %v2496
        %v2928 = vpop.f32.mrf.mxu0
        %v2929 = vadd.f32 %v2840, %v2928
        %v2930 = vpop.f32.mrf.mxu0
        %v2931 = vadd.f32 %v2842, %v2930
        %2932 = vmatmul.bf16.gmra.mxu0 %v2499
        %v2933 = vpop.f32.mrf.mxu0
        %v2934 = vadd.f32 %v2845, %v2933
        %v2935 = vpop.f32.mrf.mxu0
        %v2936 = vadd.f32 %v2847, %v2935
        %2937 = vmatmul.bf16.gmra.mxu0 %v2502
        %v2938 = vpop.f32.mrf.mxu0
        %v2939 = vadd.f32 %v2850, %v2938
        %v2940 = vpop.f32.mrf.mxu0
        %v2941 = vadd.f32 %v2852, %v2940
        %2942 = vmatmul.bf16.gmra.mxu0 %v2505
        %v2943 = vpop.f32.mrf.mxu0
        %v2944 = vadd.f32 %v2855, %v2943
        %v2945 = vpop.f32.mrf.mxu0
        %v2946 = vadd.f32 %v2857, %v2945
        %2947 = vmatmul.bf16.gmra.mxu0 %v2508
        %v2948 = vpop.f32.mrf.mxu0
        %v2949 = vadd.f32 %v2860, %v2948
        %v2950 = vpop.f32.mrf.mxu0
        %v2951 = vadd.f32 %v2862, %v2950
        %2952 = vmatmul.bf16.gmra.mxu0 %v2511
        %v2953 = vpop.f32.mrf.mxu0
        %v2954 = vadd.f32 %v2865, %v2953
        %v2955 = vpop.f32.mrf.mxu0
        %v2956 = vadd.f32 %v2867, %v2955
        %2957 = vmatmul.bf16.gmra.mxu0 %v2514
        %v2958 = vpop.f32.mrf.mxu0
        %v2959 = vadd.f32 %v2870, %v2958
        %v2960 = vpop.f32.mrf.mxu0
        %v2961 = vadd.f32 %v2872, %v2960
        %2962 = vmatmul.bf16.gmra.mxu0 %v2517
        %v2963 = vpop.f32.mrf.mxu0
        %v2964 = vadd.f32 %v2875, %v2963
        %v2965 = vpop.f32.mrf.mxu0
        %v2966 = vadd.f32 %v2877, %v2965
        %2967 = vmatmul.bf16.gmra.mxu0 %v2520
        %v2968 = vpop.f32.mrf.mxu0
        %v2969 = vadd.f32 %v2880, %v2968
        %v2970 = vpop.f32.mrf.mxu0
        %v2971 = vadd.f32 %v2882, %v2970
        %2972 = vmatmul.bf16.gmra.mxu0 %v2523
        %v2973 = vpop.f32.mrf.mxu0
        %v2974 = vadd.f32 %v2885, %v2973
        %v2975 = vpop.f32.mrf.mxu0
        %v2976 = vadd.f32 %v2887, %v2975
        %2977 = vmatmul.bf16.gmra.mxu0 %v2526
        %v2978 = vpop.f32.mrf.mxu0
        %v2979 = vadd.f32 %v2890, %v2978
        %v2980 = vpop.f32.mrf.mxu0
        %v2981 = vadd.f32 %v2892, %v2980
        %2982 = vmatmul.bf16.gmra.mxu0 %v2529
        %v2983 = vpop.f32.mrf.mxu0
        %v2984 = vadd.f32 %v2895, %v2983
        %v2985 = vpop.f32.mrf.mxu0
        %v2986 = vadd.f32 %v2897, %v2985
        %2987 = vmatmul.bf16.gmra.mxu0 %v2532
        %v2988 = vpop.f32.mrf.mxu0
        %v2989 = vadd.f32 %v2900, %v2988
        %v2990 = vpop.f32.mrf.mxu0
        %v2991 = vadd.f32 %v2902, %v2990
        %2992 = vdwg.mxu0
        %v2993 = vtanh.pop %v2914
        %v2994 = vtanh.pop %v2916
        %v2995 = vtanh.pop %v2919
        %v2996 = vtanh.pop %v2921
        %v2997 = vtanh.pop %v2924
        %v2998 = vtanh.pop %v2926
        %v2999 = vtanh.pop %v2929
        %v3000 = vtanh.pop %v2931
        %v3001 = vtanh.pop %v2934
        %v3002 = vtanh.pop %v2936
        %v3003 = vtanh.pop %v2939
        %v3004 = vtanh.pop %v2941
        %v3005 = vtanh.pop %v2944
        %v3006 = vtanh.pop %v2946
        %v3007 = vtanh.pop %v2949
        %v3008 = vtanh.pop %v2951
        %v3009 = vtanh.pop %v2954
        %v3010 = vtanh.pop %v2956
        %v3011 = vtanh.pop %v2959
        %v3012 = vtanh.pop %v2961
        %v3013 = vtanh.pop %v2964
        %v3014 = vtanh.pop %v2966
        %v3015 = vtanh.pop %v2969
        %v3016 = vtanh.pop %v2971
        %v3017 = vtanh.pop %v2974
        %v3018 = vtanh.pop %v2976
        %v3019 = vtanh.pop %v2979
        %v3020 = vtanh.pop %v2981
        %v3021 = vtanh.pop %v2984
        %v3022 = vtanh.pop %v2986
        %v3023 = vtanh.pop %v2989
        %v3024 = vtanh.pop %v2991
        %3025 = vst.msk [vmem:[%s214] sm:$0xff] %vm2276, %v2993
        %3026 = vst.msk [vmem:[%s214 + $0x8] sm:$0xff] %vm2276, %v2994
        %3027 = vst.msk [vmem:[%s214 + $0x20] sm:$0xff] %vm2276, %v2995
        %3028 = vst.msk [vmem:[%s214 + $0x28] sm:$0xff] %vm2276, %v2996
        %3029 = vst.msk [vmem:[%s214 + $0x40] sm:$0xff] %vm2276, %v2997
        %3030 = vst.msk [vmem:[%s214 + $0x48] sm:$0xff] %vm2276, %v2998
        %3031 = vst.msk [vmem:[%s214 + $0x60] sm:$0xff] %vm2276, %v2999
        %3032 = vst.msk [vmem:[%s214 + $0x68] sm:$0xff] %vm2276, %v3000
        %3033 = vst.msk [vmem:[%s214 + $0x80] sm:$0xff] %vm2276, %v3001
        %3034 = vst.msk [vmem:[%s214 + $0x88] sm:$0xff] %vm2276, %v3002
        %3035 = vst.msk [vmem:[%s214 + $0xa0] sm:$0xff] %vm2276, %v3003
        %3036 = vst.msk [vmem:[%s214 + $0xa8] sm:$0xff] %vm2276, %v3004
        %3037 = vst.msk [vmem:[%s214 + $0xc0] sm:$0xff] %vm2276, %v3005
        %3038 = vst.msk [vmem:[%s214 + $0xc8] sm:$0xff] %vm2276, %v3006
        %3039 = vst.msk [vmem:[%s214 + $0xe0] sm:$0xff] %vm2276, %v3007
        %3040 = vst.msk [vmem:[%s214 + $0xe8] sm:$0xff] %vm2276, %v3008
        %3041 = vst.msk [vmem:[%s214 + $0x100] sm:$0xff] %vm2276, %v3009
        %3042 = vst.msk [vmem:[%s214 + $0x108] sm:$0xff] %vm2276, %v3010
        %3043 = vst.msk [vmem:[%s214 + $0x120] sm:$0xff] %vm2276, %v3011
        %3044 = vst.msk [vmem:[%s214 + $0x128] sm:$0xff] %vm2276, %v3012
        %3045 = vst.msk [vmem:[%s214 + $0x140] sm:$0xff] %vm2276, %v3013
        %3046 = vst.msk [vmem:[%s214 + $0x148] sm:$0xff] %vm2276, %v3014
        %3047 = vst.msk [vmem:[%s214 + $0x160] sm:$0xff] %vm2276, %v3015
        %3048 = vst.msk [vmem:[%s214 + $0x168] sm:$0xff] %vm2276, %v3016
        %3049 = vst.msk [vmem:[%s214 + $0x180] sm:$0xff] %vm2276, %v3017
        %3050 = vst.msk [vmem:[%s214 + $0x188] sm:$0xff] %vm2276, %v3018
        %3051 = vst.msk [vmem:[%s214 + $0x1a0] sm:$0xff] %vm2276, %v3019
        %3052 = vst.msk [vmem:[%s214 + $0x1a8] sm:$0xff] %vm2276, %v3020
        %3053 = vst.msk [vmem:[%s214 + $0x1c0] sm:$0xff] %vm2276, %v3021
        %3054 = vst.msk [vmem:[%s214 + $0x1c8] sm:$0xff] %vm2276, %v3022
        %3055 = vst.msk [vmem:[%s214 + $0x1e0] sm:$0xff] %vm2276, %v3023
        %3056 = vst.msk [vmem:[%s214 + $0x1e8] sm:$0xff] %vm2276, %v3024
        %3089 = vrot.lane.b32.xlu0 %v2993, 64
        %v3090 = vpop.permute.xlu0 %3089
        %3091 = vrot.lane.b32.xlu0 %v2994, 64
        %v3092 = vpop.permute.xlu0 %3091
        %3093 = vrot.lane.b32.xlu0 %v2995, 64
        %v3094 = vpop.permute.xlu0 %3093
        %3095 = vrot.lane.b32.xlu0 %v2996, 64
        %v3096 = vpop.permute.xlu0 %3095
        %3097 = vrot.lane.b32.xlu0 %v2997, 64
        %v3098 = vpop.permute.xlu0 %3097
        %3099 = vrot.lane.b32.xlu0 %v2998, 64
        %v3100 = vpop.permute.xlu0 %3099
        %3101 = vrot.lane.b32.xlu0 %v2999, 64
        %v3102 = vpop.permute.xlu0 %3101
        %3103 = vrot.lane.b32.xlu0 %v3000, 64
        %v3104 = vpop.permute.xlu0 %3103
        %3105 = vrot.lane.b32.xlu0 %v3001, 64
        %v3106 = vpop.permute.xlu0 %3105
        %3107 = vrot.lane.b32.xlu0 %v3002, 64
        %v3108 = vpop.permute.xlu0 %3107
        %3109 = vrot.lane.b32.xlu0 %v3003, 64
        %v3110 = vpop.permute.xlu0 %3109
        %3111 = vrot.lane.b32.xlu0 %v3004, 64
        %v3112 = vpop.permute.xlu0 %3111
        %3113 = vrot.lane.b32.xlu0 %v3005, 64
        %v3114 = vpop.permute.xlu0 %3113
        %3115 = vrot.lane.b32.xlu0 %v3006, 64
        %v3116 = vpop.permute.xlu0 %3115
        %3117 = vrot.lane.b32.xlu0 %v3007, 64
        %v3118 = vpop.permute.xlu0 %3117
        %3119 = vrot.lane.b32.xlu0 %v3008, 64
        %v3120 = vpop.permute.xlu0 %3119
        %3121 = vrot.lane.b32.xlu0 %v3009, 64
        %v3122 = vpop.permute.xlu0 %3121
        %3123 = vrot.lane.b32.xlu0 %v3010, 64
        %v3124 = vpop.permute.xlu0 %3123
        %3125 = vrot.lane.b32.xlu0 %v3011, 64
        %v3126 = vpop.permute.xlu0 %3125
        %3127 = vrot.lane.b32.xlu0 %v3012, 64
        %v3128 = vpop.permute.xlu0 %3127
        %3129 = vrot.lane.b32.xlu0 %v3013, 64
        %v3130 = vpop.permute.xlu0 %3129
        %3131 = vrot.lane.b32.xlu0 %v3014, 64
        %v3132 = vpop.permute.xlu0 %3131
        %3133 = vrot.lane.b32.xlu0 %v3015, 64
        %v3134 = vpop.permute.xlu0 %3133
        %3135 = vrot.lane.b32.xlu0 %v3016, 64
        %v3136 = vpop.permute.xlu0 %3135
        %3137 = vrot.lane.b32.xlu0 %v3017, 64
        %v3138 = vpop.permute.xlu0 %3137
        %3139 = vrot.lane.b32.xlu0 %v3018, 64
        %v3140 = vpop.permute.xlu0 %3139
        %3141 = vrot.lane.b32.xlu0 %v3019, 64
        %v3142 = vpop.permute.xlu0 %3141
        %3143 = vrot.lane.b32.xlu0 %v3020, 64
        %v3144 = vpop.permute.xlu0 %3143
        %3145 = vrot.lane.b32.xlu0 %v3021, 64
        %v3146 = vpop.permute.xlu0 %3145
        %3147 = vrot.lane.b32.xlu0 %v3022, 64
        %v3148 = vpop.permute.xlu0 %3147
        %3149 = vrot.lane.b32.xlu0 %v3023, 64
        %v3150 = vpop.permute.xlu0 %3149
        %3151 = vrot.lane.b32.xlu0 %v3024, 64
        %v3152 = vpop.permute.xlu0 %3151
        %s3185 = scalar_lea.vmem %s214, 16
        %3186 = vst.msk [vmem:[%s3185] sm:$0xff] %vm2276, %v3090
        %3187 = vst.msk [vmem:[%s3185 + $0x8] sm:$0xff] %vm2276, %v3092
        %3188 = vst.msk [vmem:[%s3185 + $0x20] sm:$0xff] %vm2276, %v3094
        %3189 = vst.msk [vmem:[%s3185 + $0x28] sm:$0xff] %vm2276, %v3096
        %3190 = vst.msk [vmem:[%s3185 + $0x40] sm:$0xff] %vm2276, %v3098
        %3191 = vst.msk [vmem:[%s3185 + $0x48] sm:$0xff] %vm2276, %v3100
        %3192 = vst.msk [vmem:[%s3185 + $0x60] sm:$0xff] %vm2276, %v3102
        %3193 = vst.msk [vmem:[%s3185 + $0x68] sm:$0xff] %vm2276, %v3104
        %3194 = vst.msk [vmem:[%s3185 + $0x80] sm:$0xff] %vm2276, %v3106
        %3195 = vst.msk [vmem:[%s3185 + $0x88] sm:$0xff] %vm2276, %v3108
        %3196 = vst.msk [vmem:[%s3185 + $0xa0] sm:$0xff] %vm2276, %v3110
        %3197 = vst.msk [vmem:[%s3185 + $0xa8] sm:$0xff] %vm2276, %v3112
        %3198 = vst.msk [vmem:[%s3185 + $0xc0] sm:$0xff] %vm2276, %v3114
        %3199 = vst.msk [vmem:[%s3185 + $0xc8] sm:$0xff] %vm2276, %v3116
        %3200 = vst.msk [vmem:[%s3185 + $0xe0] sm:$0xff] %vm2276, %v3118
        %3201 = vst.msk [vmem:[%s3185 + $0xe8] sm:$0xff] %vm2276, %v3120
        %3202 = vst.msk [vmem:[%s3185 + $0x100] sm:$0xff] %vm2276, %v3122
        %3203 = vst.msk [vmem:[%s3185 + $0x108] sm:$0xff] %vm2276, %v3124
        %3204 = vst.msk [vmem:[%s3185 + $0x120] sm:$0xff] %vm2276, %v3126
        %3205 = vst.msk [vmem:[%s3185 + $0x128] sm:$0xff] %vm2276, %v3128
        %3206 = vst.msk [vmem:[%s3185 + $0x140] sm:$0xff] %vm2276, %v3130
        %3207 = vst.msk [vmem:[%s3185 + $0x148] sm:$0xff] %vm2276, %v3132
        %3208 = vst.msk [vmem:[%s3185 + $0x160] sm:$0xff] %vm2276, %v3134
        %3209 = vst.msk [vmem:[%s3185 + $0x168] sm:$0xff] %vm2276, %v3136
        %3210 = vst.msk [vmem:[%s3185 + $0x180] sm:$0xff] %vm2276, %v3138
        %3211 = vst.msk [vmem:[%s3185 + $0x188] sm:$0xff] %vm2276, %v3140
        %3212 = vst.msk [vmem:[%s3185 + $0x1a0] sm:$0xff] %vm2276, %v3142
        %3213 = vst.msk [vmem:[%s3185 + $0x1a8] sm:$0xff] %vm2276, %v3144
        %3214 = vst.msk [vmem:[%s3185 + $0x1c0] sm:$0xff] %vm2276, %v3146
        %3215 = vst.msk [vmem:[%s3185 + $0x1c8] sm:$0xff] %vm2276, %v3148
        %3216 = vst.msk [vmem:[%s3185 + $0x1e0] sm:$0xff] %vm2276, %v3150
        %3217 = vst.msk [vmem:[%s3185 + $0x1e8] sm:$0xff] %vm2276, %v3152
        %p3218 = scmp.lt.s32.totalorder %s16, 3
        %s3219 = scalar_select %p3218, %s16, 3
        %s3220 = smul.addr %s3219, 64
        %s3221 = smul.addr %s3220, 8
        %s3222 = scalar_lea.vmem %s4, %s3221
        // Predicated region
        $region41: #{_lambda_.7} parent=35 // pred_check
          %p3223 = pneg %p123
        $region42: #{_lambda_.7} parent=35 // pred_check_branch
          %3225 = sbr.rel (%p3223) target = $region44
        $region43: #{_lambda_.7} parent=35 // pred_region
          _
        $region44: #{_lambda_.7} parent=35 // pred_fallthru
          _
      $region36: #{_lambda_.7} parent=5 // pred_fallthru
        _
      %p3226 = scmp.le.s32.totalorder 2, %s11
      // Predicated region
      $region45: #{_lambda_.7} parent=5 // pred_check
        %p3227 = pneg %p3226
      $region46: #{_lambda_.7} parent=5 // pred_check_branch
        %3229 = sbr.rel (%p3227) target = $region48
      $region47: #{_lambda_.7} parent=5 // pred_region
        %s3230 = ssub.s32 %s11, 2
        // Predicated region
        $region49: #{_lambda_.7} parent=47 // pred_check
          %p3231 = pneg %p129
        $region50: #{_lambda_.7} parent=47 // pred_check_branch
          %3233 = sbr.rel (%p3231) target = $region52
        $region51: #{_lambda_.7} parent=47 // pred_region
          %p3234 = scmp.lt.s32.totalorder %s17, 3
          %s3235 = scalar_select %p3234, %s17, 3
          %s3236 = smul.addr %s3235, 64
          %s3237 = smul.addr %s3236, 8
          %s3238 = scalar_lea.vmem %s4, %s3237
        $region52: #{_lambda_.7} parent=47 // pred_fallthru
          _
      $region48: #{_lambda_.7} parent=5 // pred_fallthru
        _
    $region6: #{_lambda_.7} parent=1 // loop_footer
      %s15 = sadd.s32 1, %s11
    $region7: #{_lambda_.7} parent=1 // loop_footer_branch
      %10 = sbr.rel target = $region3
    $region8: #{_lambda_.7} parent=1 // loop_exit
      _
    %3239 = vsyncpa [#allocation3], 1
    %s3240 = scalar_lea.sflag [#allocation3], 1
    %3241 = vsyncpa %s3240, 1

</llo_original>
